<compile_context>
chip_gen: v6e
topology: v6e:2x2x1
jax: 0.10.0
libtpu: 0.0.40
codegen_flags: <defaults>
</compile_context>

<pallas_src>
import math

import jax
import jax.numpy as jnp
from jax import lax
from jax.experimental import pallas as pl
from jax.experimental.pallas import tpu as pltpu  # noqa: F401  (TPU backend)

# ---------------- model config (small, consistent with the module) ----------------
F_DIM = 6        # price_feat_dim
D = 32           # d_model
M = 32           # memory_dim
NH = 2           # num_heads
HD = D // NH     # head_dim
A = 4            # num_actions (discrete)
RS = 2           # recursion_steps
B = 2            # batch
S = 8            # seq_len
EPS = 1e-5       # nn.LayerNorm default eps

# ---------------- packed parameter slab layout (compile-time constants) ----------------
# Matrices: pre-transposed [in_features, out_features], rows padded to multiple of 8,
# columns zero-padded to 128 lanes.  Vectors: one row each, first `cols` lanes valid.
_W_SHAPES = [
    ('enc_w1', F_DIM, D),
    ('enc_w2', D, D),
    ('wqkv', D, 3 * D),                  # fused q|k|v, wq pre-scaled by 1/sqrt(HD)
    ('wo', D, D),
    ('lstm_wih', D, 4 * M), ('lstm_whh', M, 4 * M),
    ('gw1', 2 * M, 2 * M), ('gw2', 2 * M, 2 * M),
    ('cw', 2 * M, M),
    ('rw1', M, 2 * M), ('rw2', 2 * M, M),
    ('ow', M, D),
    ('pw_vw1', D, A + D),                # fused policy-head | value-head layer 1
    ('vw2', D, 2),
    ('rot', S, D),                       # rotary buffer tiled across both heads
    ('cmask', S, S),                     # additive causal mask (0 / -1e30)
]

_V_SHAPES = [
    ('enc_b1', D), ('enc_g1', D), ('enc_be1', D),
    ('enc_b2', D), ('enc_g2', D), ('enc_be2', D),
    ('tpa_ln_g', D), ('tpa_ln_b', D), ('bo', D),
    ('lstm_b', 4 * M),
    ('long_mem_total', M),
    ('gb1', 2 * M), ('gg1', 2 * M), ('gbe1', 2 * M),
    ('gb2', 2 * M), ('gg2', 2 * M), ('gbe2', 2 * M),
    ('cb', M), ('cg', M), ('cbe', M),
    ('rb1', 2 * M), ('rg1', 2 * M), ('rbe1', 2 * M),
    ('rb2', M), ('rg2', M), ('rbe2', M),
    ('rscale', 1),
    ('ob', D), ('og', D), ('obe', D),
    ('pb_vb1', A + D), ('vb2', 2),
]


def _build_layout():
    wl, off = {}, 0
    for name, rows, cols in _W_SHAPES:
        wl[name] = (off, rows, cols)
        off += ((rows + 7) // 8) * 8
    vl = {}
    for name, cols in _V_SHAPES:
        vl[name] = (off, cols)
        off += 1
    return wl, vl, ((off + 7) // 8) * 8


W_LAYOUT, V_LAYOUT, P_ROWS = _build_layout()

# Packed output layout (single lane-dense [B,128] store).
OUT_POL = 0          # [:, 0:A]        policy logits
OUT_VAL = A          # [:, A:A+2]      value head
OUT_H = 32           # [:, 32:64]      final LSTM h
OUT_C = 64           # [:, 64:96]      final LSTM c


# ---------------------------- fused kernel ----------------------------
def brain_kernel(price_ref, p_ref, out_ref):
    def W(name):                                  # [in, out] weight slice
        off, rows, cols = W_LAYOUT[name]
        return p_ref[off:off + rows, :cols]

    def V(name):                                  # [1, cols] vector slice
        row, cols = V_LAYOUT[name]
        return p_ref[row:row + 1, :cols]

    def ln(x, gname, bname):
        # single-pass stats: two independent lane reductions (overlap on XLU)
        mu = jnp.mean(x, axis=-1, keepdims=True)
        ms = jnp.mean(x * x, axis=-1, keepdims=True)
        var = ms - mu * mu
        return (x - mu) * lax.rsqrt(var + EPS) * V(gname) + V(bname)

    def lin(x, wname, bname=None):
        y = jnp.dot(x, W(wname), preferred_element_type=jnp.float32)
        if bname is not None:
            y = y + V(bname)
        return y

    xf = price_ref[...]                           # [B*S, F]
    bs = xf.shape[0]
    b, s = bs // S, S

    # ---- price encoder (Linear-LN-ReLU-Linear-LN) ----
    h = jnp.maximum(ln(lin(xf, 'enc_w1', 'enc_b1'), 'enc_g1', 'enc_be1'), 0.0)
    enc = ln(lin(h, 'enc_w2', 'enc_b2'), 'enc_g2', 'enc_be2')   # [B*S, D]

    # ---- TPA attention (pre-LN, fused QKV, rotary, additive causal mask, residual) ----
    x_ln = ln(enc, 'tpa_ln_g', 'tpa_ln_b')
    qkv = lin(x_ln, 'wqkv').reshape(b, s, 3 * D)  # one matmul for q|k|v
    rot = W('rot')[None]                          # [1, S, D]
    q = qkv[:, :, 0 * D:1 * D] * rot              # wq already scaled by 1/sqrt(HD)
    k = qkv[:, :, 1 * D:2 * D] * rot
    v = qkv[:, :, 2 * D:3 * D]

    def to_heads(t):                              # [B,S,D] -> [NH*B, S, HD], head-major
        return jnp.concatenate(
            [t[:, :, hh * HD:(hh + 1) * HD] for hh in range(NH)], axis=0)

    qh, kh, vh = to_heads(q), to_heads(k), to_heads(v)
    cmask = W('cmask')[None]                      # [1, S, S] additive (0 / -1e30)
    sc = jnp.einsum('nqd,nkd->nqk', qh, kh,
                    preferred_element_type=jnp.float32) + cmask
    sc = sc - jnp.max(sc, axis=-1, keepdims=True)
    pr = jnp.exp(sc)
    attn = pr * pl.reciprocal(jnp.sum(pr, axis=-1, keepdims=True), approx=True)
    oh = jnp.einsum('nqk,nkd->nqd', attn, vh, preferred_element_type=jnp.float32)
    attn_out = jnp.concatenate(
        [oh[hh * b:(hh + 1) * b] for hh in range(NH)], axis=-1).reshape(bs, D)
    xres = enc + lin(attn_out, 'wo', 'bo')        # residual, [B*S, D]

    # ---- LSTM: input projection hoisted out of the recurrence ----
    gates_x = lin(xres, 'lstm_wih', 'lstm_b').reshape(b, s, 4 * M)
    whh = W('lstm_whh')                           # [M, 4M]
    hS = jnp.zeros((b, M), jnp.float32)
    cS = jnp.zeros((b, M), jnp.float32)
    for t in range(s):                            # static unroll; h/c live in vregs
        g4 = gates_x[:, t, :] + jnp.dot(hS, whh, preferred_element_type=jnp.float32)
        sg = jax.nn.sigmoid(g4)                   # one full-width sigmoid -> i,f,o slices
        gg = jnp.tanh(g4[:, 2 * M:3 * M])
        cS = sg[:, M:2 * M] * cS + sg[:, 0:M] * gg
        hS = sg[:, 3 * M:4 * M] * jnp.tanh(cS)

    # ---- dual memory: gate net + compress ----
    lm = jnp.broadcast_to(V('long_mem_total'), (b, M))
    comb = jnp.concatenate([hS, lm], axis=-1)     # [B, 2M]
    g1 = jnp.maximum(ln(lin(comb, 'gw1', 'gb1'), 'gg1', 'gbe1'), 0.0)
    gates = jax.nn.sigmoid(ln(lin(g1, 'gw2', 'gb2'), 'gg2', 'gbe2'))
    gated = jnp.concatenate([hS * gates[:, :M], lm * gates[:, M:]], axis=-1)
    mem = jnp.maximum(ln(lin(gated, 'cw', 'cb'), 'cg', 'cbe'), 0.0)

    # ---- recursive reasoner ----
    rscale = V('rscale')                          # [1, 1]
    xr = mem
    for _ in range(RS):
        d = jnp.maximum(ln(lin(xr, 'rw1', 'rb1'), 'rg1', 'rbe1'), 0.0)
        d = ln(lin(d, 'rw2', 'rb2'), 'rg2', 'rbe2')
        xr = xr + rscale * d

    # ---- output net + fused policy/value heads ----
    fo = jnp.maximum(ln(lin(xr, 'ow', 'ob'), 'og', 'obe'), 0.0)
    pv = lin(fo, 'pw_vw1', 'pb_vb1')              # [B, A+D]  (policy | value layer 1)
    pol = pv[:, :A]
    vv = jnp.maximum(pv[:, A:], 0.0)
    val = lin(vv, 'vw2', 'vb2')                   # [B, 2]

    # ---- single lane-dense packed output: [pol | val | pad | h | c | pad] ----
    pad1 = jnp.zeros((b, 32 - A - 2), jnp.float32)
    pad2 = jnp.zeros((b, 32), jnp.float32)
    out_ref[...] = jnp.concatenate([pol, val, pad1, hS, cS, pad2], axis=-1)


# ---------------------------- wrapper ----------------------------
def forward(slab, price_input):
    b, s, f = price_input.shape
    out = pl.pallas_call(
        brain_kernel,
        out_shape=jax.ShapeDtypeStruct((b, 128), jnp.float32),
    )(price_input.reshape(b * s, f), slab)
    pol = out[:, OUT_POL:OUT_POL + A]
    val = out[:, OUT_VAL:OUT_VAL + 2]
    hN = out[:, OUT_H:OUT_H + M]
    cN = out[:, OUT_C:OUT_C + M]
    return {'policy_out': pol, 'value_out': val,
            'hidden': (hN[None], cN[None])}       # [1, B, M] like PyTorch


# ---------------------------- host-side parameter packing ----------------------------
def pack_params(p):
    inv_scale = 1.0 / math.sqrt(HD)
    mats = {
        'enc_w1': p['enc_w1'].T,
        'enc_w2': p['enc_w2'].T,
        'wqkv': jnp.concatenate([p['wq'].T * inv_scale, p['wk'].T, p['wv'].T], axis=1),
        'wo': p['wo'].T,
        'lstm_wih': p['lstm_wih'].T,
        'lstm_whh': p['lstm_whh'].T,
        'gw1': p['gw1'].T, 'gw2': p['gw2'].T, 'cw': p['cw'].T,
        'rw1': p['rw1'].T, 'rw2': p['rw2'].T, 'ow': p['ow'].T,
        'pw_vw1': jnp.concatenate([p['pw'].T, p['vw1'].T], axis=1),
        'vw2': p['vw2'].T,
        'rot': jnp.concatenate([p['rot'], p['rot']], axis=-1),   # [S, HD] -> [S, D]
        'cmask': jnp.where(jnp.arange(S)[None, :] > jnp.arange(S)[:, None],
                           -1e30, 0.0).astype(jnp.float32),
    }
    vecs = dict(p)
    vecs['long_mem_total'] = p['long_mem'] + p['long_mem_prior']
    vecs['pb_vb1'] = jnp.concatenate([p['pb'], p['vb1']], axis=-1)

    slab = jnp.zeros((P_ROWS, 128), jnp.float32)
    for name, rows, cols in _W_SHAPES:
        off = W_LAYOUT[name][0]
        slab = slab.at[off:off + rows, :cols].set(mats[name].astype(jnp.float32))
    for name, cols in _V_SHAPES:
        row = V_LAYOUT[name][0]
        slab = slab.at[row, :cols].set(vecs[name].reshape(-1).astype(jnp.float32))
    return slab


# ---------------------------- deterministic parameter init ----------------------------
def init_params(key):
    ks = iter(jax.random.split(key, 32))

    def W_(shape, scale=None):
        if scale is None:
            scale = 1.0 / math.sqrt(shape[-1])
        return jax.random.normal(next(ks), shape, jnp.float32) * scale

    p = {}
    # price encoder
    p['enc_w1'] = W_((D, F_DIM)); p['enc_b1'] = jnp.zeros((1, D))
    p['enc_g1'] = jnp.ones((1, D)); p['enc_be1'] = jnp.zeros((1, D))
    p['enc_w2'] = W_((D, D)); p['enc_b2'] = jnp.zeros((1, D))
    p['enc_g2'] = jnp.ones((1, D)); p['enc_be2'] = jnp.zeros((1, D))
    # TPA
    p['tpa_ln_g'] = jnp.ones((1, D)); p['tpa_ln_b'] = jnp.zeros((1, D))
    p['wq'] = W_((D, D)); p['wk'] = W_((D, D)); p['wv'] = W_((D, D))
    p['wo'] = W_((D, D)); p['bo'] = jnp.zeros((1, D))
    # rotary buffer (matches RotaryPositionalEmbedding)
    inv_freq = 1.0 / (10000.0 ** (jnp.arange(0, HD, 2, dtype=jnp.float32) / HD))
    pos = jnp.arange(S, dtype=jnp.float32)
    sincos = pos[:, None] * inv_freq[None, :]
    p['rot'] = jnp.concatenate([jnp.sin(sincos), jnp.cos(sincos)], axis=-1)  # [S, HD]
    # LSTM (gate order i, f, g, o)
    p['lstm_wih'] = W_((4 * M, D)); p['lstm_whh'] = W_((4 * M, M))
    p['lstm_b'] = W_((1, 4 * M), 0.05) + W_((1, 4 * M), 0.05)  # b_ih + b_hh
    # dual memory
    p['long_mem'] = W_((1, M), 0.02); p['long_mem_prior'] = W_((1, M), 0.02)
    p['gw1'] = W_((2 * M, 2 * M)); p['gb1'] = jnp.zeros((1, 2 * M))
    p['gg1'] = jnp.ones((1, 2 * M)); p['gbe1'] = jnp.zeros((1, 2 * M))
    p['gw2'] = W_((2 * M, 2 * M)); p['gb2'] = jnp.zeros((1, 2 * M))
    p['gg2'] = jnp.ones((1, 2 * M)); p['gbe2'] = jnp.zeros((1, 2 * M))
    p['cw'] = W_((M, 2 * M)); p['cb'] = jnp.zeros((1, M))
    p['cg'] = jnp.ones((1, M)); p['cbe'] = jnp.zeros((1, M))
    # reasoner
    p['rw1'] = W_((2 * M, M)); p['rb1'] = jnp.zeros((1, 2 * M))
    p['rg1'] = jnp.ones((1, 2 * M)); p['rbe1'] = jnp.zeros((1, 2 * M))
    p['rw2'] = W_((M, 2 * M)); p['rb2'] = jnp.zeros((1, M))
    p['rg2'] = jnp.ones((1, M)); p['rbe2'] = jnp.zeros((1, M))
    p['rscale'] = jnp.ones((1, 1))
    # output net + heads
    p['ow'] = W_((D, M)); p['ob'] = jnp.zeros((1, D))
    p['og'] = jnp.ones((1, D)); p['obe'] = jnp.zeros((1, D))
    p['pw'] = W_((A, D)); p['pb'] = jnp.zeros((1, A))
    p['vw1'] = W_((D, D)); p['vb1'] = jnp.zeros((1, D))
    p['vw2'] = W_((2, D)); p['vb2'] = jnp.zeros((1, 2))
    return p


# ---------------------------- plain-JAX reference (for verification) ----------------------------
def _ln_ref(x, g, b, eps=EPS):
    mu = x.mean(-1, keepdims=True)
    var = ((x - mu) ** 2).mean(-1, keepdims=True)
    return (x - mu) / jnp.sqrt(var + eps) * g + b


def forward_ref(p, price):
    b, s, f = price.shape
    x = price.reshape(b * s, f)
    h = _ln_ref(x @ p['enc_w1'].T + p['enc_b1'], p['enc_g1'], p['enc_be1'])
    h = jnp.maximum(h, 0.0)
    x = _ln_ref(h @ p['enc_w2'].T + p['enc_b2'], p['enc_g2'], p['enc_be2']).reshape(b, s, D)

    x_ln = _ln_ref(x, p['tpa_ln_g'], p['tpa_ln_b'])
    def split(t): return t.reshape(b, s, NH, HD).transpose(0, 2, 1, 3)
    q, k, v = split(x_ln @ p['wq'].T), split(x_ln @ p['wk'].T), split(x_ln @ p['wv'].T)
    rot = p['rot'][None, None]
    q, k = q * rot, k * rot
    scores = jnp.einsum('bhqd,bhkd->bhqk', q, k) / math.sqrt(HD)
    row = jnp.arange(s)[:, None]; col = jnp.arange(s)[None, :]
    scores = jnp.where(col > row, -jnp.inf, scores)
    attn = jax.nn.softmax(scores, axis=-1)
    out = jnp.einsum('bhqk,bhkd->bhqd', attn, v).transpose(0, 2, 1, 3).reshape(b, s, D)
    x = x + out @ p['wo'].T + p['bo']

    def step(carry, xt):
        hh, cc = carry
        gates = xt @ p['lstm_wih'].T + hh @ p['lstm_whh'].T + p['lstm_b'][0]
        i = jax.nn.sigmoid(gates[:, :M]); fg = jax.nn.sigmoid(gates[:, M:2 * M])
        g = jnp.tanh(gates[:, 2 * M:3 * M]); o = jax.nn.sigmoid(gates[:, 3 * M:])
        cc = fg * cc + i * g
        return (o * jnp.tanh(cc), cc), None
    (hN, cN), _ = lax.scan(step, (jnp.zeros((b, M)), jnp.zeros((b, M))),
                           jnp.transpose(x, (1, 0, 2)))

    sm = hN
    lm = jnp.broadcast_to(p['long_mem'] + p['long_mem_prior'], (b, M))
    g = jnp.maximum(_ln_ref(jnp.concatenate([sm, lm], -1) @ p['gw1'].T + p['gb1'],
                            p['gg1'], p['gbe1']), 0.0)
    gates = jax.nn.sigmoid(_ln_ref(g @ p['gw2'].T + p['gb2'], p['gg2'], p['gbe2']))
    gated = jnp.concatenate([sm * gates[:, :M], lm * gates[:, M:]], -1)
    mem = jnp.maximum(_ln_ref(gated @ p['cw'].T + p['cb'], p['cg'], p['cbe']), 0.0)

    xr = mem
    for _ in range(RS):
        d = jnp.maximum(_ln_ref(xr @ p['rw1'].T + p['rb1'], p['rg1'], p['rbe1']), 0.0)
        d = _ln_ref(d @ p['rw2'].T + p['rb2'], p['rg2'], p['rbe2'])
        xr = xr + p['rscale'] * d

    fo = jnp.maximum(_ln_ref(xr @ p['ow'].T + p['ob'], p['og'], p['obe']), 0.0)
    pol = fo @ p['pw'].T + p['pb']
    val = jnp.maximum(fo @ p['vw1'].T + p['vb1'], 0.0) @ p['vw2'].T + p['vb2']
    return {'policy_out': pol, 'value_out': val, 'hidden': (hN[None], cN[None])}


# ---------------------------- main ----------------------------
if __name__ == "__main__":
    key = jax.random.PRNGKey(0)
    pkey, xkey = jax.random.split(key)
    params = init_params(pkey)
    slab = pack_params(params)                       # one-time host-side packing
    price = jax.random.normal(xkey, (B, S, F_DIM), jnp.float32)

    out = jax.jit(forward)(slab, price)
    jax.block_until_ready(out)

    ref = forward_ref(params, price)
    assert jnp.allclose(out['policy_out'], ref['policy_out'], atol=2e-3, rtol=2e-3)
    assert jnp.allclose(out['value_out'], ref['value_out'], atol=2e-3, rtol=2e-3)
    assert jnp.allclose(out['hidden'][0], ref['hidden'][0], atol=2e-3, rtol=2e-3)
    assert jnp.allclose(out['hidden'][1], ref['hidden'][1], atol=2e-3, rtol=2e-3)

    print("KERNEL_OK")
</pallas_src>

<mosaic_0001>
module attributes {stable_mosaic.version = 11 : i64} {
  func.func @brain_kernel(%arg0: memref<16x6xf32, #tpu.memory_space<vmem>>, %arg1: memref<600x128xf32, #tpu.memory_space<vmem>>, %arg2: memref<2x128xf32, #tpu.memory_space<vmem>>) attributes {dimension_semantics = [], scalar_prefetch = 0 : i64, scratch_operands = 0 : i64, tpu.core_type = #tpu.core_type<tc>} {
    %c0 = arith.constant 0 : index
    %c0_0 = arith.constant 0 : index
    %0 = vector.load %arg0[%c0, %c0_0] : memref<16x6xf32, #tpu.memory_space<vmem>>, vector<16x6xf32>
    %c0_1 = arith.constant 0 : index
    %c0_2 = arith.constant 0 : index
    %1 = vector.load %arg1[%c0_1, %c0_2] : memref<600x128xf32, #tpu.memory_space<vmem>>, vector<6x32xf32>
    %cst = arith.constant dense<0.000000e+00> : vector<16x32xf32>
    %2 = tpu.matmul %0, %1, %cst {dimension_numbers = #tpu.dot_dimension_numbers<[1], [0], [0], [1], [0, 0, 1, 1], [], []>} : vector<16x6xf32>, vector<6x32xf32>, vector<16x32xf32> -> vector<16x32xf32>
    %c568 = arith.constant 568 : index
    %c0_3 = arith.constant 0 : index
    %3 = vector.load %arg1[%c568, %c0_3] : memref<600x128xf32, #tpu.memory_space<vmem>>, vector<1x32xf32>
    %4 = vector.broadcast %3 : vector<1x32xf32> to vector<16x32xf32>
    %5 = arith.addf %2, %4 : vector<16x32xf32>
    %cst_4 = arith.constant dense<0.000000e+00> : vector<16xf32>
    %6 = vector.multi_reduction <add>, %5, %cst_4 [1] : vector<16x32xf32> to vector<16xf32>
    %7 = vector.shape_cast %6 : vector<16xf32> to vector<16x1xf32>
    %cst_5 = arith.constant 3.200000e+01 : f32
    %8 = vector.broadcast %cst_5 : f32 to vector<16x1xf32>
    %9 = arith.divf %7, %8 : vector<16x1xf32>
    %10 = arith.mulf %5, %5 : vector<16x32xf32>
    %cst_6 = arith.constant dense<0.000000e+00> : vector<16xf32>
    %11 = vector.multi_reduction <add>, %10, %cst_6 [1] : vector<16x32xf32> to vector<16xf32>
    %12 = vector.shape_cast %11 : vector<16xf32> to vector<16x1xf32>
    %cst_7 = arith.constant 3.200000e+01 : f32
    %13 = vector.broadcast %cst_7 : f32 to vector<16x1xf32>
    %14 = arith.divf %12, %13 : vector<16x1xf32>
    %15 = arith.mulf %9, %9 : vector<16x1xf32>
    %16 = arith.subf %14, %15 : vector<16x1xf32>
    %17 = vector.broadcast %9 : vector<16x1xf32> to vector<16x32xf32>
    %18 = arith.subf %5, %17 : vector<16x32xf32>
    %cst_8 = arith.constant 9.99999974E-6 : f32
    %19 = vector.broadcast %cst_8 : f32 to vector<16x1xf32>
    %20 = arith.addf %16, %19 : vector<16x1xf32>
    %21 = math.rsqrt %20 : vector<16x1xf32>
    %22 = vector.broadcast %21 : vector<16x1xf32> to vector<16x32xf32>
    %23 = arith.mulf %18, %22 : vector<16x32xf32>
    %c569 = arith.constant 569 : index
    %c0_9 = arith.constant 0 : index
    %24 = vector.load %arg1[%c569, %c0_9] : memref<600x128xf32, #tpu.memory_space<vmem>>, vector<1x32xf32>
    %25 = vector.broadcast %24 : vector<1x32xf32> to vector<16x32xf32>
    %26 = arith.mulf %23, %25 : vector<16x32xf32>
    %c570 = arith.constant 570 : index
    %c0_10 = arith.constant 0 : index
    %27 = vector.load %arg1[%c570, %c0_10] : memref<600x128xf32, #tpu.memory_space<vmem>>, vector<1x32xf32>
    %28 = vector.broadcast %27 : vector<1x32xf32> to vector<16x32xf32>
    %29 = arith.addf %26, %28 : vector<16x32xf32>
    %cst_11 = arith.constant 0.000000e+00 : f32
    %30 = vector.broadcast %cst_11 : f32 to vector<16x32xf32>
    %31 = arith.maximumf %29, %30 : vector<16x32xf32>
    %c8 = arith.constant 8 : index
    %c0_12 = arith.constant 0 : index
    %32 = vector.load %arg1[%c8, %c0_12] : memref<600x128xf32, #tpu.memory_space<vmem>>, vector<32x32xf32>
    %cst_13 = arith.constant dense<0.000000e+00> : vector<16x32xf32>
    %33 = tpu.matmul %31, %32, %cst_13 {dimension_numbers = #tpu.dot_dimension_numbers<[1], [0], [0], [1], [0, 0, 1, 1], [], []>} : vector<16x32xf32>, vector<32x32xf32>, vector<16x32xf32> -> vector<16x32xf32>
    %c571 = arith.constant 571 : index
    %c0_14 = arith.constant 0 : index
    %34 = vector.load %arg1[%c571, %c0_14] : memref<600x128xf32, #tpu.memory_space<vmem>>, vector<1x32xf32>
    %35 = vector.broadcast %34 : vector<1x32xf32> to vector<16x32xf32>
    %36 = arith.addf %33, %35 : vector<16x32xf32>
    %cst_15 = arith.constant dense<0.000000e+00> : vector<16xf32>
    %37 = vector.multi_reduction <add>, %36, %cst_15 [1] : vector<16x32xf32> to vector<16xf32>
    %38 = vector.shape_cast %37 : vector<16xf32> to vector<16x1xf32>
    %cst_16 = arith.constant 3.200000e+01 : f32
    %39 = vector.broadcast %cst_16 : f32 to vector<16x1xf32>
    %40 = arith.divf %38, %39 : vector<16x1xf32>
    %41 = arith.mulf %36, %36 : vector<16x32xf32>
    %cst_17 = arith.constant dense<0.000000e+00> : vector<16xf32>
    %42 = vector.multi_reduction <add>, %41, %cst_17 [1] : vector<16x32xf32> to vector<16xf32>
    %43 = vector.shape_cast %42 : vector<16xf32> to vector<16x1xf32>
    %cst_18 = arith.constant 3.200000e+01 : f32
    %44 = vector.broadcast %cst_18 : f32 to vector<16x1xf32>
    %45 = arith.divf %43, %44 : vector<16x1xf32>
    %46 = arith.mulf %40, %40 : vector<16x1xf32>
    %47 = arith.subf %45, %46 : vector<16x1xf32>
    %48 = vector.broadcast %40 : vector<16x1xf32> to vector<16x32xf32>
    %49 = arith.subf %36, %48 : vector<16x32xf32>
    %cst_19 = arith.constant 9.99999974E-6 : f32
    %50 = vector.broadcast %cst_19 : f32 to vector<16x1xf32>
    %51 = arith.addf %47, %50 : vector<16x1xf32>
    %52 = math.rsqrt %51 : vector<16x1xf32>
    %53 = vector.broadcast %52 : vector<16x1xf32> to vector<16x32xf32>
    %54 = arith.mulf %49, %53 : vector<16x32xf32>
    %c572 = arith.constant 572 : index
    %c0_20 = arith.constant 0 : index
    %55 = vector.load %arg1[%c572, %c0_20] : memref<600x128xf32, #tpu.memory_space<vmem>>, vector<1x32xf32>
    %56 = vector.broadcast %55 : vector<1x32xf32> to vector<16x32xf32>
    %57 = arith.mulf %54, %56 : vector<16x32xf32>
    %c573 = arith.constant 573 : index
    %c0_21 = arith.constant 0 : index
    %58 = vector.load %arg1[%c573, %c0_21] : memref<600x128xf32, #tpu.memory_space<vmem>>, vector<1x32xf32>
    %59 = vector.broadcast %58 : vector<1x32xf32> to vector<16x32xf32>
    %60 = arith.addf %57, %59 : vector<16x32xf32>
    %cst_22 = arith.constant dense<0.000000e+00> : vector<16xf32>
    %61 = vector.multi_reduction <add>, %60, %cst_22 [1] : vector<16x32xf32> to vector<16xf32>
    %62 = vector.shape_cast %61 : vector<16xf32> to vector<16x1xf32>
    %cst_23 = arith.constant 3.200000e+01 : f32
    %63 = vector.broadcast %cst_23 : f32 to vector<16x1xf32>
    %64 = arith.divf %62, %63 : vector<16x1xf32>
    %65 = arith.mulf %60, %60 : vector<16x32xf32>
    %cst_24 = arith.constant dense<0.000000e+00> : vector<16xf32>
    %66 = vector.multi_reduction <add>, %65, %cst_24 [1] : vector<16x32xf32> to vector<16xf32>
    %67 = vector.shape_cast %66 : vector<16xf32> to vector<16x1xf32>
    %cst_25 = arith.constant 3.200000e+01 : f32
    %68 = vector.broadcast %cst_25 : f32 to vector<16x1xf32>
    %69 = arith.divf %67, %68 : vector<16x1xf32>
    %70 = arith.mulf %64, %64 : vector<16x1xf32>
    %71 = arith.subf %69, %70 : vector<16x1xf32>
    %72 = vector.broadcast %64 : vector<16x1xf32> to vector<16x32xf32>
    %73 = arith.subf %60, %72 : vector<16x32xf32>
    %cst_26 = arith.constant 9.99999974E-6 : f32
    %74 = vector.broadcast %cst_26 : f32 to vector<16x1xf32>
    %75 = arith.addf %71, %74 : vector<16x1xf32>
    %76 = math.rsqrt %75 : vector<16x1xf32>
    %77 = vector.broadcast %76 : vector<16x1xf32> to vector<16x32xf32>
    %78 = arith.mulf %73, %77 : vector<16x32xf32>
    %c574 = arith.constant 574 : index
    %c0_27 = arith.constant 0 : index
    %79 = vector.load %arg1[%c574, %c0_27] : memref<600x128xf32, #tpu.memory_space<vmem>>, vector<1x32xf32>
    %80 = vector.broadcast %79 : vector<1x32xf32> to vector<16x32xf32>
    %81 = arith.mulf %78, %80 : vector<16x32xf32>
    %c575 = arith.constant 575 : index
    %c0_28 = arith.constant 0 : index
    %82 = vector.load %arg1[%c575, %c0_28] : memref<600x128xf32, #tpu.memory_space<vmem>>, vector<1x32xf32>
    %83 = vector.broadcast %82 : vector<1x32xf32> to vector<16x32xf32>
    %84 = arith.addf %81, %83 : vector<16x32xf32>
    %c40 = arith.constant 40 : index
    %c0_29 = arith.constant 0 : index
    %85 = vector.load %arg1[%c40, %c0_29] : memref<600x128xf32, #tpu.memory_space<vmem>>, vector<32x96xf32>
    %cst_30 = arith.constant dense<0.000000e+00> : vector<16x96xf32>
    %86 = tpu.matmul %84, %85, %cst_30 {dimension_numbers = #tpu.dot_dimension_numbers<[1], [0], [0], [1], [0, 0, 1, 1], [], []>} : vector<16x32xf32>, vector<32x96xf32>, vector<16x96xf32> -> vector<16x96xf32>
    %87 = vector.shape_cast %86 : vector<16x96xf32> to vector<2x8x96xf32>
    %c552 = arith.constant 552 : index
    %c0_31 = arith.constant 0 : index
    %88 = vector.load %arg1[%c552, %c0_31] : memref<600x128xf32, #tpu.memory_space<vmem>>, vector<8x32xf32>
    %89 = vector.shape_cast %88 : vector<8x32xf32> to vector<1x8x32xf32>
    %90 = vector.extract_strided_slice %87 {offsets = [0, 0, 0], sizes = [2, 8, 32], strides = [1, 1, 1]} : vector<2x8x96xf32> to vector<2x8x32xf32>
    %91 = vector.broadcast %89 : vector<1x8x32xf32> to vector<2x8x32xf32>
    %92 = arith.mulf %90, %91 : vector<2x8x32xf32>
    %93 = vector.extract_strided_slice %87 {offsets = [0, 0, 32], sizes = [2, 8, 32], strides = [1, 1, 1]} : vector<2x8x96xf32> to vector<2x8x32xf32>
    %94 = vector.broadcast %89 : vector<1x8x32xf32> to vector<2x8x32xf32>
    %95 = arith.mulf %93, %94 : vector<2x8x32xf32>
    %96 = vector.extract_strided_slice %87 {offsets = [0, 0, 64], sizes = [2, 8, 32], strides = [1, 1, 1]} : vector<2x8x96xf32> to vector<2x8x32xf32>
    %97 = vector.extract_strided_slice %92 {offsets = [0, 0, 0], sizes = [2, 8, 16], strides = [1, 1, 1]} : vector<2x8x32xf32> to vector<2x8x16xf32>
    %98 = vector.extract_strided_slice %92 {offsets = [0, 0, 16], sizes = [2, 8, 16], strides = [1, 1, 1]} : vector<2x8x32xf32> to vector<2x8x16xf32>
    %99 = tpu.concatenate %97, %98 in 0 : vector<2x8x16xf32>, vector<2x8x16xf32> -> vector<4x8x16xf32>
    %100 = vector.extract_strided_slice %95 {offsets = [0, 0, 0], sizes = [2, 8, 16], strides = [1, 1, 1]} : vector<2x8x32xf32> to vector<2x8x16xf32>
    %101 = vector.extract_strided_slice %95 {offsets = [0, 0, 16], sizes = [2, 8, 16], strides = [1, 1, 1]} : vector<2x8x32xf32> to vector<2x8x16xf32>
    %102 = tpu.concatenate %100, %101 in 0 : vector<2x8x16xf32>, vector<2x8x16xf32> -> vector<4x8x16xf32>
    %103 = vector.extract_strided_slice %96 {offsets = [0, 0, 0], sizes = [2, 8, 16], strides = [1, 1, 1]} : vector<2x8x32xf32> to vector<2x8x16xf32>
    %104 = vector.extract_strided_slice %96 {offsets = [0, 0, 16], sizes = [2, 8, 16], strides = [1, 1, 1]} : vector<2x8x32xf32> to vector<2x8x16xf32>
    %105 = tpu.concatenate %103, %104 in 0 : vector<2x8x16xf32>, vector<2x8x16xf32> -> vector<4x8x16xf32>
    %c560 = arith.constant 560 : index
    %c0_32 = arith.constant 0 : index
    %106 = vector.load %arg1[%c560, %c0_32] : memref<600x128xf32, #tpu.memory_space<vmem>>, vector<8x8xf32>
    %107 = vector.shape_cast %106 : vector<8x8xf32> to vector<1x8x8xf32>
    "tpu.trace_start"() <{level = 10 : i32, message = "nqd,nkd->nqk"}> : () -> ()
    %cst_33 = arith.constant dense<0.000000e+00> : vector<4x8x8xf32>
    %108 = tpu.matmul %99, %102, %cst_33 {dimension_numbers = #tpu.dot_dimension_numbers<[2], [2], [1], [1], [0, 0, 0, 1, 1, 1], [0], [0]>} : vector<4x8x16xf32>, vector<4x8x16xf32>, vector<4x8x8xf32> -> vector<4x8x8xf32>
    "tpu.trace_stop"() : () -> ()
    %109 = vector.broadcast %107 : vector<1x8x8xf32> to vector<4x8x8xf32>
    %110 = arith.addf %108, %109 : vector<4x8x8xf32>
    %cst_34 = arith.constant dense<0xFF800000> : vector<4x8xf32>
    %111 = vector.multi_reduction <maximumf>, %110, %cst_34 [2] : vector<4x8x8xf32> to vector<4x8xf32>
    %112 = vector.shape_cast %111 : vector<4x8xf32> to vector<4x8x1xf32>
    %113 = vector.broadcast %112 : vector<4x8x1xf32> to vector<4x8x8xf32>
    %114 = arith.subf %110, %113 : vector<4x8x8xf32>
    %115 = math.exp %114 : vector<4x8x8xf32>
    %cst_35 = arith.constant dense<0.000000e+00> : vector<4x8xf32>
    %116 = vector.multi_reduction <add>, %115, %cst_35 [2] : vector<4x8x8xf32> to vector<4x8xf32>
    %117 = vector.shape_cast %116 : vector<4x8xf32> to vector<4x8x1xf32>
    %118 = tpu.reciprocal %117 {approx = true} : vector<4x8x1xf32> -> vector<4x8x1xf32>
    %119 = vector.broadcast %118 : vector<4x8x1xf32> to vector<4x8x8xf32>
    %120 = arith.mulf %115, %119 : vector<4x8x8xf32>
    "tpu.trace_start"() <{level = 10 : i32, message = "nqk,nkd->nqd"}> : () -> ()
    %cst_36 = arith.constant dense<0.000000e+00> : vector<4x8x16xf32>
    %121 = tpu.matmul %120, %105, %cst_36 {dimension_numbers = #tpu.dot_dimension_numbers<[2], [1], [1], [2], [0, 0, 0, 1, 1, 2], [0], [0]>} : vector<4x8x8xf32>, vector<4x8x16xf32>, vector<4x8x16xf32> -> vector<4x8x16xf32>
    "tpu.trace_stop"() : () -> ()
    %122 = vector.extract_strided_slice %121 {offsets = [0, 0, 0], sizes = [2, 8, 16], strides = [1, 1, 1]} : vector<4x8x16xf32> to vector<2x8x16xf32>
    %123 = vector.extract_strided_slice %121 {offsets = [2, 0, 0], sizes = [2, 8, 16], strides = [1, 1, 1]} : vector<4x8x16xf32> to vector<2x8x16xf32>
    %124 = tpu.concatenate %122, %123 in 2 : vector<2x8x16xf32>, vector<2x8x16xf32> -> vector<2x8x32xf32>
    %125 = vector.shape_cast %124 : vector<2x8x32xf32> to vector<16x32xf32>
    %c72 = arith.constant 72 : index
    %c0_37 = arith.constant 0 : index
    %126 = vector.load %arg1[%c72, %c0_37] : memref<600x128xf32, #tpu.memory_space<vmem>>, vector<32x32xf32>
    %cst_38 = arith.constant dense<0.000000e+00> : vector<16x32xf32>
    %127 = tpu.matmul %125, %126, %cst_38 {dimension_numbers = #tpu.dot_dimension_numbers<[1], [0], [0], [1], [0, 0, 1, 1], [], []>} : vector<16x32xf32>, vector<32x32xf32>, vector<16x32xf32> -> vector<16x32xf32>
    %c576 = arith.constant 576 : index
    %c0_39 = arith.constant 0 : index
    %128 = vector.load %arg1[%c576, %c0_39] : memref<600x128xf32, #tpu.memory_space<vmem>>, vector<1x32xf32>
    %129 = vector.broadcast %128 : vector<1x32xf32> to vector<16x32xf32>
    %130 = arith.addf %127, %129 : vector<16x32xf32>
    %131 = arith.addf %60, %130 : vector<16x32xf32>
    %c104 = arith.constant 104 : index
    %c0_40 = arith.constant 0 : index
    %132 = vector.load %arg1[%c104, %c0_40] : memref<600x128xf32, #tpu.memory_space<vmem>>, vector<32x128xf32>
    %cst_41 = arith.constant dense<0.000000e+00> : vector<16x128xf32>
    %133 = tpu.matmul %131, %132, %cst_41 {dimension_numbers = #tpu.dot_dimension_numbers<[1], [0], [0], [1], [0, 0, 1, 1], [], []>} : vector<16x32xf32>, vector<32x128xf32>, vector<16x128xf32> -> vector<16x128xf32>
    %c577 = arith.constant 577 : index
    %c0_42 = arith.constant 0 : index
    %134 = vector.load %arg1[%c577, %c0_42] : memref<600x128xf32, #tpu.memory_space<vmem>>, vector<1x128xf32>
    %135 = vector.broadcast %134 : vector<1x128xf32> to vector<16x128xf32>
    %136 = arith.addf %133, %135 : vector<16x128xf32>
    %137 = vector.shape_cast %136 : vector<16x128xf32> to vector<2x8x128xf32>
    %c136 = arith.constant 136 : index
    %c0_43 = arith.constant 0 : index
    %138 = vector.load %arg1[%c136, %c0_43] : memref<600x128xf32, #tpu.memory_space<vmem>>, vector<32x128xf32>
    %cst_44 = arith.constant 0.000000e+00 : f32
    %139 = vector.broadcast %cst_44 : f32 to vector<2x32xf32>
    %cst_45 = arith.constant 0.000000e+00 : f32
    %140 = vector.broadcast %cst_45 : f32 to vector<2x32xf32>
    %141 = vector.extract_strided_slice %137 {offsets = [0, 0, 0], sizes = [2, 1, 128], strides = [1, 1, 1]} : vector<2x8x128xf32> to vector<2x1x128xf32>
    %142 = vector.shape_cast %141 : vector<2x1x128xf32> to vector<2x128xf32>
    %cst_46 = arith.constant dense<0.000000e+00> : vector<2x128xf32>
    %143 = tpu.matmul %139, %138, %cst_46 {dimension_numbers = #tpu.dot_dimension_numbers<[1], [0], [0], [1], [0, 0, 1, 1], [], []>} : vector<2x32xf32>, vector<32x128xf32>, vector<2x128xf32> -> vector<2x128xf32>
    %144 = arith.addf %142, %143 : vector<2x128xf32>
    %145 = arith.negf %144 : vector<2x128xf32>
    %146 = math.exp %145 : vector<2x128xf32>
    %cst_47 = arith.constant 1.000000e+00 : f32
    %147 = vector.broadcast %cst_47 : f32 to vector<2x128xf32>
    %148 = arith.addf %147, %146 : vector<2x128xf32>
    %149 = arith.divf %147, %148 : vector<2x128xf32>
    %150 = vector.extract_strided_slice %144 {offsets = [0, 64], sizes = [2, 32], strides = [1, 1]} : vector<2x128xf32> to vector<2x32xf32>
    %151 = math.tanh %150 : vector<2x32xf32>
    %152 = vector.extract_strided_slice %149 {offsets = [0, 32], sizes = [2, 32], strides = [1, 1]} : vector<2x128xf32> to vector<2x32xf32>
    %153 = arith.mulf %152, %140 : vector<2x32xf32>
    %154 = vector.extract_strided_slice %149 {offsets = [0, 0], sizes = [2, 32], strides = [1, 1]} : vector<2x128xf32> to vector<2x32xf32>
    %155 = arith.mulf %154, %151 : vector<2x32xf32>
    %156 = arith.addf %153, %155 : vector<2x32xf32>
    %157 = vector.extract_strided_slice %149 {offsets = [0, 96], sizes = [2, 32], strides = [1, 1]} : vector<2x128xf32> to vector<2x32xf32>
    %158 = math.tanh %156 : vector<2x32xf32>
    %159 = arith.mulf %157, %158 : vector<2x32xf32>
    %160 = vector.extract_strided_slice %137 {offsets = [0, 1, 0], sizes = [2, 1, 128], strides = [1, 1, 1]} : vector<2x8x128xf32> to vector<2x1x128xf32>
    %161 = vector.shape_cast %160 : vector<2x1x128xf32> to vector<2x128xf32>
    %cst_48 = arith.constant dense<0.000000e+00> : vector<2x128xf32>
    %162 = tpu.matmul %159, %138, %cst_48 {dimension_numbers = #tpu.dot_dimension_numbers<[1], [0], [0], [1], [0, 0, 1, 1], [], []>} : vector<2x32xf32>, vector<32x128xf32>, vector<2x128xf32> -> vector<2x128xf32>
    %163 = arith.addf %161, %162 : vector<2x128xf32>
    %164 = arith.negf %163 : vector<2x128xf32>
    %165 = math.exp %164 : vector<2x128xf32>
    %cst_49 = arith.constant 1.000000e+00 : f32
    %166 = vector.broadcast %cst_49 : f32 to vector<2x128xf32>
    %167 = arith.addf %166, %165 : vector<2x128xf32>
    %168 = arith.divf %166, %167 : vector<2x128xf32>
    %169 = vector.extract_strided_slice %163 {offsets = [0, 64], sizes = [2, 32], strides = [1, 1]} : vector<2x128xf32> to vector<2x32xf32>
    %170 = math.tanh %169 : vector<2x32xf32>
    %171 = vector.extract_strided_slice %168 {offsets = [0, 32], sizes = [2, 32], strides = [1, 1]} : vector<2x128xf32> to vector<2x32xf32>
    %172 = arith.mulf %171, %156 : vector<2x32xf32>
    %173 = vector.extract_strided_slice %168 {offsets = [0, 0], sizes = [2, 32], strides = [1, 1]} : vector<2x128xf32> to vector<2x32xf32>
    %174 = arith.mulf %173, %170 : vector<2x32xf32>
    %175 = arith.addf %172, %174 : vector<2x32xf32>
    %176 = vector.extract_strided_slice %168 {offsets = [0, 96], sizes = [2, 32], strides = [1, 1]} : vector<2x128xf32> to vector<2x32xf32>
    %177 = math.tanh %175 : vector<2x32xf32>
    %178 = arith.mulf %176, %177 : vector<2x32xf32>
    %179 = vector.extract_strided_slice %137 {offsets = [0, 2, 0], sizes = [2, 1, 128], strides = [1, 1, 1]} : vector<2x8x128xf32> to vector<2x1x128xf32>
    %180 = vector.shape_cast %179 : vector<2x1x128xf32> to vector<2x128xf32>
    %cst_50 = arith.constant dense<0.000000e+00> : vector<2x128xf32>
    %181 = tpu.matmul %178, %138, %cst_50 {dimension_numbers = #tpu.dot_dimension_numbers<[1], [0], [0], [1], [0, 0, 1, 1], [], []>} : vector<2x32xf32>, vector<32x128xf32>, vector<2x128xf32> -> vector<2x128xf32>
    %182 = arith.addf %180, %181 : vector<2x128xf32>
    %183 = arith.negf %182 : vector<2x128xf32>
    %184 = math.exp %183 : vector<2x128xf32>
    %cst_51 = arith.constant 1.000000e+00 : f32
    %185 = vector.broadcast %cst_51 : f32 to vector<2x128xf32>
    %186 = arith.addf %185, %184 : vector<2x128xf32>
    %187 = arith.divf %185, %186 : vector<2x128xf32>
    %188 = vector.extract_strided_slice %182 {offsets = [0, 64], sizes = [2, 32], strides = [1, 1]} : vector<2x128xf32> to vector<2x32xf32>
    %189 = math.tanh %188 : vector<2x32xf32>
    %190 = vector.extract_strided_slice %187 {offsets = [0, 32], sizes = [2, 32], strides = [1, 1]} : vector<2x128xf32> to vector<2x32xf32>
    %191 = arith.mulf %190, %175 : vector<2x32xf32>
    %192 = vector.extract_strided_slice %187 {offsets = [0, 0], sizes = [2, 32], strides = [1, 1]} : vector<2x128xf32> to vector<2x32xf32>
    %193 = arith.mulf %192, %189 : vector<2x32xf32>
    %194 = arith.addf %191, %193 : vector<2x32xf32>
    %195 = vector.extract_strided_slice %187 {offsets = [0, 96], sizes = [2, 32], strides = [1, 1]} : vector<2x128xf32> to vector<2x32xf32>
    %196 = math.tanh %194 : vector<2x32xf32>
    %197 = arith.mulf %195, %196 : vector<2x32xf32>
    %198 = vector.extract_strided_slice %137 {offsets = [0, 3, 0], sizes = [2, 1, 128], strides = [1, 1, 1]} : vector<2x8x128xf32> to vector<2x1x128xf32>
    %199 = vector.shape_cast %198 : vector<2x1x128xf32> to vector<2x128xf32>
    %cst_52 = arith.constant dense<0.000000e+00> : vector<2x128xf32>
    %200 = tpu.matmul %197, %138, %cst_52 {dimension_numbers = #tpu.dot_dimension_numbers<[1], [0], [0], [1], [0, 0, 1, 1], [], []>} : vector<2x32xf32>, vector<32x128xf32>, vector<2x128xf32> -> vector<2x128xf32>
    %201 = arith.addf %199, %200 : vector<2x128xf32>
    %202 = arith.negf %201 : vector<2x128xf32>
    %203 = math.exp %202 : vector<2x128xf32>
    %cst_53 = arith.constant 1.000000e+00 : f32
    %204 = vector.broadcast %cst_53 : f32 to vector<2x128xf32>
    %205 = arith.addf %204, %203 : vector<2x128xf32>
    %206 = arith.divf %204, %205 : vector<2x128xf32>
    %207 = vector.extract_strided_slice %201 {offsets = [0, 64], sizes = [2, 32], strides = [1, 1]} : vector<2x128xf32> to vector<2x32xf32>
    %208 = math.tanh %207 : vector<2x32xf32>
    %209 = vector.extract_strided_slice %206 {offsets = [0, 32], sizes = [2, 32], strides = [1, 1]} : vector<2x128xf32> to vector<2x32xf32>
    %210 = arith.mulf %209, %194 : vector<2x32xf32>
    %211 = vector.extract_strided_slice %206 {offsets = [0, 0], sizes = [2, 32], strides = [1, 1]} : vector<2x128xf32> to vector<2x32xf32>
    %212 = arith.mulf %211, %208 : vector<2x32xf32>
    %213 = arith.addf %210, %212 : vector<2x32xf32>
    %214 = vector.extract_strided_slice %206 {offsets = [0, 96], sizes = [2, 32], strides = [1, 1]} : vector<2x128xf32> to vector<2x32xf32>
    %215 = math.tanh %213 : vector<2x32xf32>
    %216 = arith.mulf %214, %215 : vector<2x32xf32>
    %217 = vector.extract_strided_slice %137 {offsets = [0, 4, 0], sizes = [2, 1, 128], strides = [1, 1, 1]} : vector<2x8x128xf32> to vector<2x1x128xf32>
    %218 = vector.shape_cast %217 : vector<2x1x128xf32> to vector<2x128xf32>
    %cst_54 = arith.constant dense<0.000000e+00> : vector<2x128xf32>
    %219 = tpu.matmul %216, %138, %cst_54 {dimension_numbers = #tpu.dot_dimension_numbers<[1], [0], [0], [1], [0, 0, 1, 1], [], []>} : vector<2x32xf32>, vector<32x128xf32>, vector<2x128xf32> -> vector<2x128xf32>
    %220 = arith.addf %218, %219 : vector<2x128xf32>
    %221 = arith.negf %220 : vector<2x128xf32>
    %222 = math.exp %221 : vector<2x128xf32>
    %cst_55 = arith.constant 1.000000e+00 : f32
    %223 = vector.broadcast %cst_55 : f32 to vector<2x128xf32>
    %224 = arith.addf %223, %222 : vector<2x128xf32>
    %225 = arith.divf %223, %224 : vector<2x128xf32>
    %226 = vector.extract_strided_slice %220 {offsets = [0, 64], sizes = [2, 32], strides = [1, 1]} : vector<2x128xf32> to vector<2x32xf32>
    %227 = math.tanh %226 : vector<2x32xf32>
    %228 = vector.extract_strided_slice %225 {offsets = [0, 32], sizes = [2, 32], strides = [1, 1]} : vector<2x128xf32> to vector<2x32xf32>
    %229 = arith.mulf %228, %213 : vector<2x32xf32>
    %230 = vector.extract_strided_slice %225 {offsets = [0, 0], sizes = [2, 32], strides = [1, 1]} : vector<2x128xf32> to vector<2x32xf32>
    %231 = arith.mulf %230, %227 : vector<2x32xf32>
    %232 = arith.addf %229, %231 : vector<2x32xf32>
    %233 = vector.extract_strided_slice %225 {offsets = [0, 96], sizes = [2, 32], strides = [1, 1]} : vector<2x128xf32> to vector<2x32xf32>
    %234 = math.tanh %232 : vector<2x32xf32>
    %235 = arith.mulf %233, %234 : vector<2x32xf32>
    %236 = vector.extract_strided_slice %137 {offsets = [0, 5, 0], sizes = [2, 1, 128], strides = [1, 1, 1]} : vector<2x8x128xf32> to vector<2x1x128xf32>
    %237 = vector.shape_cast %236 : vector<2x1x128xf32> to vector<2x128xf32>
    %cst_56 = arith.constant dense<0.000000e+00> : vector<2x128xf32>
    %238 = tpu.matmul %235, %138, %cst_56 {dimension_numbers = #tpu.dot_dimension_numbers<[1], [0], [0], [1], [0, 0, 1, 1], [], []>} : vector<2x32xf32>, vector<32x128xf32>, vector<2x128xf32> -> vector<2x128xf32>
    %239 = arith.addf %237, %238 : vector<2x128xf32>
    %240 = arith.negf %239 : vector<2x128xf32>
    %241 = math.exp %240 : vector<2x128xf32>
    %cst_57 = arith.constant 1.000000e+00 : f32
    %242 = vector.broadcast %cst_57 : f32 to vector<2x128xf32>
    %243 = arith.addf %242, %241 : vector<2x128xf32>
    %244 = arith.divf %242, %243 : vector<2x128xf32>
    %245 = vector.extract_strided_slice %239 {offsets = [0, 64], sizes = [2, 32], strides = [1, 1]} : vector<2x128xf32> to vector<2x32xf32>
    %246 = math.tanh %245 : vector<2x32xf32>
    %247 = vector.extract_strided_slice %244 {offsets = [0, 32], sizes = [2, 32], strides = [1, 1]} : vector<2x128xf32> to vector<2x32xf32>
    %248 = arith.mulf %247, %232 : vector<2x32xf32>
    %249 = vector.extract_strided_slice %244 {offsets = [0, 0], sizes = [2, 32], strides = [1, 1]} : vector<2x128xf32> to vector<2x32xf32>
    %250 = arith.mulf %249, %246 : vector<2x32xf32>
    %251 = arith.addf %248, %250 : vector<2x32xf32>
    %252 = vector.extract_strided_slice %244 {offsets = [0, 96], sizes = [2, 32], strides = [1, 1]} : vector<2x128xf32> to vector<2x32xf32>
    %253 = math.tanh %251 : vector<2x32xf32>
    %254 = arith.mulf %252, %253 : vector<2x32xf32>
    %255 = vector.extract_strided_slice %137 {offsets = [0, 6, 0], sizes = [2, 1, 128], strides = [1, 1, 1]} : vector<2x8x128xf32> to vector<2x1x128xf32>
    %256 = vector.shape_cast %255 : vector<2x1x128xf32> to vector<2x128xf32>
    %cst_58 = arith.constant dense<0.000000e+00> : vector<2x128xf32>
    %257 = tpu.matmul %254, %138, %cst_58 {dimension_numbers = #tpu.dot_dimension_numbers<[1], [0], [0], [1], [0, 0, 1, 1], [], []>} : vector<2x32xf32>, vector<32x128xf32>, vector<2x128xf32> -> vector<2x128xf32>
    %258 = arith.addf %256, %257 : vector<2x128xf32>
    %259 = arith.negf %258 : vector<2x128xf32>
    %260 = math.exp %259 : vector<2x128xf32>
    %cst_59 = arith.constant 1.000000e+00 : f32
    %261 = vector.broadcast %cst_59 : f32 to vector<2x128xf32>
    %262 = arith.addf %261, %260 : vector<2x128xf32>
    %263 = arith.divf %261, %262 : vector<2x128xf32>
    %264 = vector.extract_strided_slice %258 {offsets = [0, 64], sizes = [2, 32], strides = [1, 1]} : vector<2x128xf32> to vector<2x32xf32>
    %265 = math.tanh %264 : vector<2x32xf32>
    %266 = vector.extract_strided_slice %263 {offsets = [0, 32], sizes = [2, 32], strides = [1, 1]} : vector<2x128xf32> to vector<2x32xf32>
    %267 = arith.mulf %266, %251 : vector<2x32xf32>
    %268 = vector.extract_strided_slice %263 {offsets = [0, 0], sizes = [2, 32], strides = [1, 1]} : vector<2x128xf32> to vector<2x32xf32>
    %269 = arith.mulf %268, %265 : vector<2x32xf32>
    %270 = arith.addf %267, %269 : vector<2x32xf32>
    %271 = vector.extract_strided_slice %263 {offsets = [0, 96], sizes = [2, 32], strides = [1, 1]} : vector<2x128xf32> to vector<2x32xf32>
    %272 = math.tanh %270 : vector<2x32xf32>
    %273 = arith.mulf %271, %272 : vector<2x32xf32>
    %274 = vector.extract_strided_slice %137 {offsets = [0, 7, 0], sizes = [2, 1, 128], strides = [1, 1, 1]} : vector<2x8x128xf32> to vector<2x1x128xf32>
    %275 = vector.shape_cast %274 : vector<2x1x128xf32> to vector<2x128xf32>
    %cst_60 = arith.constant dense<0.000000e+00> : vector<2x128xf32>
    %276 = tpu.matmul %273, %138, %cst_60 {dimension_numbers = #tpu.dot_dimension_numbers<[1], [0], [0], [1], [0, 0, 1, 1], [], []>} : vector<2x32xf32>, vector<32x128xf32>, vector<2x128xf32> -> vector<2x128xf32>
    %277 = arith.addf %275, %276 : vector<2x128xf32>
    %278 = arith.negf %277 : vector<2x128xf32>
    %279 = math.exp %278 : vector<2x128xf32>
    %cst_61 = arith.constant 1.000000e+00 : f32
    %280 = vector.broadcast %cst_61 : f32 to vector<2x128xf32>
    %281 = arith.addf %280, %279 : vector<2x128xf32>
    %282 = arith.divf %280, %281 : vector<2x128xf32>
    %283 = vector.extract_strided_slice %277 {offsets = [0, 64], sizes = [2, 32], strides = [1, 1]} : vector<2x128xf32> to vector<2x32xf32>
    %284 = math.tanh %283 : vector<2x32xf32>
    %285 = vector.extract_strided_slice %282 {offsets = [0, 32], sizes = [2, 32], strides = [1, 1]} : vector<2x128xf32> to vector<2x32xf32>
    %286 = arith.mulf %285, %270 : vector<2x32xf32>
    %287 = vector.extract_strided_slice %282 {offsets = [0, 0], sizes = [2, 32], strides = [1, 1]} : vector<2x128xf32> to vector<2x32xf32>
    %288 = arith.mulf %287, %284 : vector<2x32xf32>
    %289 = arith.addf %286, %288 : vector<2x32xf32>
    %290 = vector.extract_strided_slice %282 {offsets = [0, 96], sizes = [2, 32], strides = [1, 1]} : vector<2x128xf32> to vector<2x32xf32>
    %291 = math.tanh %289 : vector<2x32xf32>
    %292 = arith.mulf %290, %291 : vector<2x32xf32>
    %c578 = arith.constant 578 : index
    %c0_62 = arith.constant 0 : index
    %293 = vector.load %arg1[%c578, %c0_62] : memref<600x128xf32, #tpu.memory_space<vmem>>, vector<1x32xf32>
    %294 = vector.shape_cast %293 : vector<1x32xf32> to vector<1x32xf32>
    %295 = vector.broadcast %294 : vector<1x32xf32> to vector<2x32xf32>
    %296 = tpu.concatenate %292, %295 in 1 : vector<2x32xf32>, vector<2x32xf32> -> vector<2x64xf32>
    %c168 = arith.constant 168 : index
    %c0_63 = arith.constant 0 : index
    %297 = vector.load %arg1[%c168, %c0_63] : memref<600x128xf32, #tpu.memory_space<vmem>>, vector<64x64xf32>
    %cst_64 = arith.constant dense<0.000000e+00> : vector<2x64xf32>
    %298 = tpu.matmul %296, %297, %cst_64 {dimension_numbers = #tpu.dot_dimension_numbers<[1], [0], [0], [1], [0, 0, 1, 1], [], []>} : vector<2x64xf32>, vector<64x64xf32>, vector<2x64xf32> -> vector<2x64xf32>
    %c579 = arith.constant 579 : index
    %c0_65 = arith.constant 0 : index
    %299 = vector.load %arg1[%c579, %c0_65] : memref<600x128xf32, #tpu.memory_space<vmem>>, vector<1x64xf32>
    %300 = vector.broadcast %299 : vector<1x64xf32> to vector<2x64xf32>
    %301 = arith.addf %298, %300 : vector<2x64xf32>
    %cst_66 = arith.constant dense<0.000000e+00> : vector<2xf32>
    %302 = vector.multi_reduction <add>, %301, %cst_66 [1] : vector<2x64xf32> to vector<2xf32>
    %303 = vector.shape_cast %302 : vector<2xf32> to vector<2x1xf32>
    %cst_67 = arith.constant 6.400000e+01 : f32
    %304 = vector.broadcast %cst_67 : f32 to vector<2x1xf32>
    %305 = arith.divf %303, %304 : vector<2x1xf32>
    %306 = arith.mulf %301, %301 : vector<2x64xf32>
    %cst_68 = arith.constant dense<0.000000e+00> : vector<2xf32>
    %307 = vector.multi_reduction <add>, %306, %cst_68 [1] : vector<2x64xf32> to vector<2xf32>
    %308 = vector.shape_cast %307 : vector<2xf32> to vector<2x1xf32>
    %cst_69 = arith.constant 6.400000e+01 : f32
    %309 = vector.broadcast %cst_69 : f32 to vector<2x1xf32>
    %310 = arith.divf %308, %309 : vector<2x1xf32>
    %311 = arith.mulf %305, %305 : vector<2x1xf32>
    %312 = arith.subf %310, %311 : vector<2x1xf32>
    %313 = vector.broadcast %305 : vector<2x1xf32> to vector<2x64xf32>
    %314 = arith.subf %301, %313 : vector<2x64xf32>
    %cst_70 = arith.constant 9.99999974E-6 : f32
    %315 = vector.broadcast %cst_70 : f32 to vector<2x1xf32>
    %316 = arith.addf %312, %315 : vector<2x1xf32>
    %317 = math.rsqrt %316 : vector<2x1xf32>
    %318 = vector.broadcast %317 : vector<2x1xf32> to vector<2x64xf32>
    %319 = arith.mulf %314, %318 : vector<2x64xf32>
    %c580 = arith.constant 580 : index
    %c0_71 = arith.constant 0 : index
    %320 = vector.load %arg1[%c580, %c0_71] : memref<600x128xf32, #tpu.memory_space<vmem>>, vector<1x64xf32>
    %321 = vector.broadcast %320 : vector<1x64xf32> to vector<2x64xf32>
    %322 = arith.mulf %319, %321 : vector<2x64xf32>
    %c581 = arith.constant 581 : index
    %c0_72 = arith.constant 0 : index
    %323 = vector.load %arg1[%c581, %c0_72] : memref<600x128xf32, #tpu.memory_space<vmem>>, vector<1x64xf32>
    %324 = vector.broadcast %323 : vector<1x64xf32> to vector<2x64xf32>
    %325 = arith.addf %322, %324 : vector<2x64xf32>
    %cst_73 = arith.constant 0.000000e+00 : f32
    %326 = vector.broadcast %cst_73 : f32 to vector<2x64xf32>
    %327 = arith.maximumf %325, %326 : vector<2x64xf32>
    %c232 = arith.constant 232 : index
    %c0_74 = arith.constant 0 : index
    %328 = vector.load %arg1[%c232, %c0_74] : memref<600x128xf32, #tpu.memory_space<vmem>>, vector<64x64xf32>
    %cst_75 = arith.constant dense<0.000000e+00> : vector<2x64xf32>
    %329 = tpu.matmul %327, %328, %cst_75 {dimension_numbers = #tpu.dot_dimension_numbers<[1], [0], [0], [1], [0, 0, 1, 1], [], []>} : vector<2x64xf32>, vector<64x64xf32>, vector<2x64xf32> -> vector<2x64xf32>
    %c582 = arith.constant 582 : index
    %c0_76 = arith.constant 0 : index
    %330 = vector.load %arg1[%c582, %c0_76] : memref<600x128xf32, #tpu.memory_space<vmem>>, vector<1x64xf32>
    %331 = vector.broadcast %330 : vector<1x64xf32> to vector<2x64xf32>
    %332 = arith.addf %329, %331 : vector<2x64xf32>
    %cst_77 = arith.constant dense<0.000000e+00> : vector<2xf32>
    %333 = vector.multi_reduction <add>, %332, %cst_77 [1] : vector<2x64xf32> to vector<2xf32>
    %334 = vector.shape_cast %333 : vector<2xf32> to vector<2x1xf32>
    %cst_78 = arith.constant 6.400000e+01 : f32
    %335 = vector.broadcast %cst_78 : f32 to vector<2x1xf32>
    %336 = arith.divf %334, %335 : vector<2x1xf32>
    %337 = arith.mulf %332, %332 : vector<2x64xf32>
    %cst_79 = arith.constant dense<0.000000e+00> : vector<2xf32>
    %338 = vector.multi_reduction <add>, %337, %cst_79 [1] : vector<2x64xf32> to vector<2xf32>
    %339 = vector.shape_cast %338 : vector<2xf32> to vector<2x1xf32>
    %cst_80 = arith.constant 6.400000e+01 : f32
    %340 = vector.broadcast %cst_80 : f32 to vector<2x1xf32>
    %341 = arith.divf %339, %340 : vector<2x1xf32>
    %342 = arith.mulf %336, %336 : vector<2x1xf32>
    %343 = arith.subf %341, %342 : vector<2x1xf32>
    %344 = vector.broadcast %336 : vector<2x1xf32> to vector<2x64xf32>
    %345 = arith.subf %332, %344 : vector<2x64xf32>
    %cst_81 = arith.constant 9.99999974E-6 : f32
    %346 = vector.broadcast %cst_81 : f32 to vector<2x1xf32>
    %347 = arith.addf %343, %346 : vector<2x1xf32>
    %348 = math.rsqrt %347 : vector<2x1xf32>
    %349 = vector.broadcast %348 : vector<2x1xf32> to vector<2x64xf32>
    %350 = arith.mulf %345, %349 : vector<2x64xf32>
    %c583 = arith.constant 583 : index
    %c0_82 = arith.constant 0 : index
    %351 = vector.load %arg1[%c583, %c0_82] : memref<600x128xf32, #tpu.memory_space<vmem>>, vector<1x64xf32>
    %352 = vector.broadcast %351 : vector<1x64xf32> to vector<2x64xf32>
    %353 = arith.mulf %350, %352 : vector<2x64xf32>
    %c584 = arith.constant 584 : index
    %c0_83 = arith.constant 0 : index
    %354 = vector.load %arg1[%c584, %c0_83] : memref<600x128xf32, #tpu.memory_space<vmem>>, vector<1x64xf32>
    %355 = vector.broadcast %354 : vector<1x64xf32> to vector<2x64xf32>
    %356 = arith.addf %353, %355 : vector<2x64xf32>
    %357 = arith.negf %356 : vector<2x64xf32>
    %358 = math.exp %357 : vector<2x64xf32>
    %cst_84 = arith.constant 1.000000e+00 : f32
    %359 = vector.broadcast %cst_84 : f32 to vector<2x64xf32>
    %360 = arith.addf %359, %358 : vector<2x64xf32>
    %361 = arith.divf %359, %360 : vector<2x64xf32>
    %362 = vector.extract_strided_slice %361 {offsets = [0, 0], sizes = [2, 32], strides = [1, 1]} : vector<2x64xf32> to vector<2x32xf32>
    %363 = arith.mulf %292, %362 : vector<2x32xf32>
    %364 = vector.extract_strided_slice %361 {offsets = [0, 32], sizes = [2, 32], strides = [1, 1]} : vector<2x64xf32> to vector<2x32xf32>
    %365 = arith.mulf %295, %364 : vector<2x32xf32>
    %366 = tpu.concatenate %363, %365 in 1 : vector<2x32xf32>, vector<2x32xf32> -> vector<2x64xf32>
    %c296 = arith.constant 296 : index
    %c0_85 = arith.constant 0 : index
    %367 = vector.load %arg1[%c296, %c0_85] : memref<600x128xf32, #tpu.memory_space<vmem>>, vector<64x32xf32>
    %cst_86 = arith.constant dense<0.000000e+00> : vector<2x32xf32>
    %368 = tpu.matmul %366, %367, %cst_86 {dimension_numbers = #tpu.dot_dimension_numbers<[1], [0], [0], [1], [0, 0, 1, 1], [], []>} : vector<2x64xf32>, vector<64x32xf32>, vector<2x32xf32> -> vector<2x32xf32>
    %c585 = arith.constant 585 : index
    %c0_87 = arith.constant 0 : index
    %369 = vector.load %arg1[%c585, %c0_87] : memref<600x128xf32, #tpu.memory_space<vmem>>, vector<1x32xf32>
    %370 = vector.broadcast %369 : vector<1x32xf32> to vector<2x32xf32>
    %371 = arith.addf %368, %370 : vector<2x32xf32>
    %cst_88 = arith.constant dense<0.000000e+00> : vector<2xf32>
    %372 = vector.multi_reduction <add>, %371, %cst_88 [1] : vector<2x32xf32> to vector<2xf32>
    %373 = vector.shape_cast %372 : vector<2xf32> to vector<2x1xf32>
    %cst_89 = arith.constant 3.200000e+01 : f32
    %374 = vector.broadcast %cst_89 : f32 to vector<2x1xf32>
    %375 = arith.divf %373, %374 : vector<2x1xf32>
    %376 = arith.mulf %371, %371 : vector<2x32xf32>
    %cst_90 = arith.constant dense<0.000000e+00> : vector<2xf32>
    %377 = vector.multi_reduction <add>, %376, %cst_90 [1] : vector<2x32xf32> to vector<2xf32>
    %378 = vector.shape_cast %377 : vector<2xf32> to vector<2x1xf32>
    %cst_91 = arith.constant 3.200000e+01 : f32
    %379 = vector.broadcast %cst_91 : f32 to vector<2x1xf32>
    %380 = arith.divf %378, %379 : vector<2x1xf32>
    %381 = arith.mulf %375, %375 : vector<2x1xf32>
    %382 = arith.subf %380, %381 : vector<2x1xf32>
    %383 = vector.broadcast %375 : vector<2x1xf32> to vector<2x32xf32>
    %384 = arith.subf %371, %383 : vector<2x32xf32>
    %cst_92 = arith.constant 9.99999974E-6 : f32
    %385 = vector.broadcast %cst_92 : f32 to vector<2x1xf32>
    %386 = arith.addf %382, %385 : vector<2x1xf32>
    %387 = math.rsqrt %386 : vector<2x1xf32>
    %388 = vector.broadcast %387 : vector<2x1xf32> to vector<2x32xf32>
    %389 = arith.mulf %384, %388 : vector<2x32xf32>
    %c586 = arith.constant 586 : index
    %c0_93 = arith.constant 0 : index
    %390 = vector.load %arg1[%c586, %c0_93] : memref<600x128xf32, #tpu.memory_space<vmem>>, vector<1x32xf32>
    %391 = vector.broadcast %390 : vector<1x32xf32> to vector<2x32xf32>
    %392 = arith.mulf %389, %391 : vector<2x32xf32>
    %c587 = arith.constant 587 : index
    %c0_94 = arith.constant 0 : index
    %393 = vector.load %arg1[%c587, %c0_94] : memref<600x128xf32, #tpu.memory_space<vmem>>, vector<1x32xf32>
    %394 = vector.broadcast %393 : vector<1x32xf32> to vector<2x32xf32>
    %395 = arith.addf %392, %394 : vector<2x32xf32>
    %cst_95 = arith.constant 0.000000e+00 : f32
    %396 = vector.broadcast %cst_95 : f32 to vector<2x32xf32>
    %397 = arith.maximumf %395, %396 : vector<2x32xf32>
    %c594 = arith.constant 594 : index
    %c0_96 = arith.constant 0 : index
    %398 = vector.load %arg1[%c594, %c0_96] : memref<600x128xf32, #tpu.memory_space<vmem>>, vector<1x1xf32>
    %c360 = arith.constant 360 : index
    %c0_97 = arith.constant 0 : index
    %399 = vector.load %arg1[%c360, %c0_97] : memref<600x128xf32, #tpu.memory_space<vmem>>, vector<32x64xf32>
    %cst_98 = arith.constant dense<0.000000e+00> : vector<2x64xf32>
    %400 = tpu.matmul %397, %399, %cst_98 {dimension_numbers = #tpu.dot_dimension_numbers<[1], [0], [0], [1], [0, 0, 1, 1], [], []>} : vector<2x32xf32>, vector<32x64xf32>, vector<2x64xf32> -> vector<2x64xf32>
    %c588 = arith.constant 588 : index
    %c0_99 = arith.constant 0 : index
    %401 = vector.load %arg1[%c588, %c0_99] : memref<600x128xf32, #tpu.memory_space<vmem>>, vector<1x64xf32>
    %402 = vector.broadcast %401 : vector<1x64xf32> to vector<2x64xf32>
    %403 = arith.addf %400, %402 : vector<2x64xf32>
    %cst_100 = arith.constant dense<0.000000e+00> : vector<2xf32>
    %404 = vector.multi_reduction <add>, %403, %cst_100 [1] : vector<2x64xf32> to vector<2xf32>
    %405 = vector.shape_cast %404 : vector<2xf32> to vector<2x1xf32>
    %cst_101 = arith.constant 6.400000e+01 : f32
    %406 = vector.broadcast %cst_101 : f32 to vector<2x1xf32>
    %407 = arith.divf %405, %406 : vector<2x1xf32>
    %408 = arith.mulf %403, %403 : vector<2x64xf32>
    %cst_102 = arith.constant dense<0.000000e+00> : vector<2xf32>
    %409 = vector.multi_reduction <add>, %408, %cst_102 [1] : vector<2x64xf32> to vector<2xf32>
    %410 = vector.shape_cast %409 : vector<2xf32> to vector<2x1xf32>
    %cst_103 = arith.constant 6.400000e+01 : f32
    %411 = vector.broadcast %cst_103 : f32 to vector<2x1xf32>
    %412 = arith.divf %410, %411 : vector<2x1xf32>
    %413 = arith.mulf %407, %407 : vector<2x1xf32>
    %414 = arith.subf %412, %413 : vector<2x1xf32>
    %415 = vector.broadcast %407 : vector<2x1xf32> to vector<2x64xf32>
    %416 = arith.subf %403, %415 : vector<2x64xf32>
    %cst_104 = arith.constant 9.99999974E-6 : f32
    %417 = vector.broadcast %cst_104 : f32 to vector<2x1xf32>
    %418 = arith.addf %414, %417 : vector<2x1xf32>
    %419 = math.rsqrt %418 : vector<2x1xf32>
    %420 = vector.broadcast %419 : vector<2x1xf32> to vector<2x64xf32>
    %421 = arith.mulf %416, %420 : vector<2x64xf32>
    %c589 = arith.constant 589 : index
    %c0_105 = arith.constant 0 : index
    %422 = vector.load %arg1[%c589, %c0_105] : memref<600x128xf32, #tpu.memory_space<vmem>>, vector<1x64xf32>
    %423 = vector.broadcast %422 : vector<1x64xf32> to vector<2x64xf32>
    %424 = arith.mulf %421, %423 : vector<2x64xf32>
    %c590 = arith.constant 590 : index
    %c0_106 = arith.constant 0 : index
    %425 = vector.load %arg1[%c590, %c0_106] : memref<600x128xf32, #tpu.memory_space<vmem>>, vector<1x64xf32>
    %426 = vector.broadcast %425 : vector<1x64xf32> to vector<2x64xf32>
    %427 = arith.addf %424, %426 : vector<2x64xf32>
    %cst_107 = arith.constant 0.000000e+00 : f32
    %428 = vector.broadcast %cst_107 : f32 to vector<2x64xf32>
    %429 = arith.maximumf %427, %428 : vector<2x64xf32>
    %c392 = arith.constant 392 : index
    %c0_108 = arith.constant 0 : index
    %430 = vector.load %arg1[%c392, %c0_108] : memref<600x128xf32, #tpu.memory_space<vmem>>, vector<64x32xf32>
    %cst_109 = arith.constant dense<0.000000e+00> : vector<2x32xf32>
    %431 = tpu.matmul %429, %430, %cst_109 {dimension_numbers = #tpu.dot_dimension_numbers<[1], [0], [0], [1], [0, 0, 1, 1], [], []>} : vector<2x64xf32>, vector<64x32xf32>, vector<2x32xf32> -> vector<2x32xf32>
    %c591 = arith.constant 591 : index
    %c0_110 = arith.constant 0 : index
    %432 = vector.load %arg1[%c591, %c0_110] : memref<600x128xf32, #tpu.memory_space<vmem>>, vector<1x32xf32>
    %433 = vector.broadcast %432 : vector<1x32xf32> to vector<2x32xf32>
    %434 = arith.addf %431, %433 : vector<2x32xf32>
    %cst_111 = arith.constant dense<0.000000e+00> : vector<2xf32>
    %435 = vector.multi_reduction <add>, %434, %cst_111 [1] : vector<2x32xf32> to vector<2xf32>
    %436 = vector.shape_cast %435 : vector<2xf32> to vector<2x1xf32>
    %cst_112 = arith.constant 3.200000e+01 : f32
    %437 = vector.broadcast %cst_112 : f32 to vector<2x1xf32>
    %438 = arith.divf %436, %437 : vector<2x1xf32>
    %439 = arith.mulf %434, %434 : vector<2x32xf32>
    %cst_113 = arith.constant dense<0.000000e+00> : vector<2xf32>
    %440 = vector.multi_reduction <add>, %439, %cst_113 [1] : vector<2x32xf32> to vector<2xf32>
    %441 = vector.shape_cast %440 : vector<2xf32> to vector<2x1xf32>
    %cst_114 = arith.constant 3.200000e+01 : f32
    %442 = vector.broadcast %cst_114 : f32 to vector<2x1xf32>
    %443 = arith.divf %441, %442 : vector<2x1xf32>
    %444 = arith.mulf %438, %438 : vector<2x1xf32>
    %445 = arith.subf %443, %444 : vector<2x1xf32>
    %446 = vector.broadcast %438 : vector<2x1xf32> to vector<2x32xf32>
    %447 = arith.subf %434, %446 : vector<2x32xf32>
    %cst_115 = arith.constant 9.99999974E-6 : f32
    %448 = vector.broadcast %cst_115 : f32 to vector<2x1xf32>
    %449 = arith.addf %445, %448 : vector<2x1xf32>
    %450 = math.rsqrt %449 : vector<2x1xf32>
    %451 = vector.broadcast %450 : vector<2x1xf32> to vector<2x32xf32>
    %452 = arith.mulf %447, %451 : vector<2x32xf32>
    %c592 = arith.constant 592 : index
    %c0_116 = arith.constant 0 : index
    %453 = vector.load %arg1[%c592, %c0_116] : memref<600x128xf32, #tpu.memory_space<vmem>>, vector<1x32xf32>
    %454 = vector.broadcast %453 : vector<1x32xf32> to vector<2x32xf32>
    %455 = arith.mulf %452, %454 : vector<2x32xf32>
    %c593 = arith.constant 593 : index
    %c0_117 = arith.constant 0 : index
    %456 = vector.load %arg1[%c593, %c0_117] : memref<600x128xf32, #tpu.memory_space<vmem>>, vector<1x32xf32>
    %457 = vector.broadcast %456 : vector<1x32xf32> to vector<2x32xf32>
    %458 = arith.addf %455, %457 : vector<2x32xf32>
    %459 = vector.broadcast %398 : vector<1x1xf32> to vector<2x32xf32>
    %460 = arith.mulf %459, %458 : vector<2x32xf32>
    %461 = arith.addf %397, %460 : vector<2x32xf32>
    %c360_118 = arith.constant 360 : index
    %c0_119 = arith.constant 0 : index
    %462 = vector.load %arg1[%c360_118, %c0_119] : memref<600x128xf32, #tpu.memory_space<vmem>>, vector<32x64xf32>
    %cst_120 = arith.constant dense<0.000000e+00> : vector<2x64xf32>
    %463 = tpu.matmul %461, %462, %cst_120 {dimension_numbers = #tpu.dot_dimension_numbers<[1], [0], [0], [1], [0, 0, 1, 1], [], []>} : vector<2x32xf32>, vector<32x64xf32>, vector<2x64xf32> -> vector<2x64xf32>
    %c588_121 = arith.constant 588 : index
    %c0_122 = arith.constant 0 : index
    %464 = vector.load %arg1[%c588_121, %c0_122] : memref<600x128xf32, #tpu.memory_space<vmem>>, vector<1x64xf32>
    %465 = vector.broadcast %464 : vector<1x64xf32> to vector<2x64xf32>
    %466 = arith.addf %463, %465 : vector<2x64xf32>
    %cst_123 = arith.constant dense<0.000000e+00> : vector<2xf32>
    %467 = vector.multi_reduction <add>, %466, %cst_123 [1] : vector<2x64xf32> to vector<2xf32>
    %468 = vector.shape_cast %467 : vector<2xf32> to vector<2x1xf32>
    %cst_124 = arith.constant 6.400000e+01 : f32
    %469 = vector.broadcast %cst_124 : f32 to vector<2x1xf32>
    %470 = arith.divf %468, %469 : vector<2x1xf32>
    %471 = arith.mulf %466, %466 : vector<2x64xf32>
    %cst_125 = arith.constant dense<0.000000e+00> : vector<2xf32>
    %472 = vector.multi_reduction <add>, %471, %cst_125 [1] : vector<2x64xf32> to vector<2xf32>
    %473 = vector.shape_cast %472 : vector<2xf32> to vector<2x1xf32>
    %cst_126 = arith.constant 6.400000e+01 : f32
    %474 = vector.broadcast %cst_126 : f32 to vector<2x1xf32>
    %475 = arith.divf %473, %474 : vector<2x1xf32>
    %476 = arith.mulf %470, %470 : vector<2x1xf32>
    %477 = arith.subf %475, %476 : vector<2x1xf32>
    %478 = vector.broadcast %470 : vector<2x1xf32> to vector<2x64xf32>
    %479 = arith.subf %466, %478 : vector<2x64xf32>
    %cst_127 = arith.constant 9.99999974E-6 : f32
    %480 = vector.broadcast %cst_127 : f32 to vector<2x1xf32>
    %481 = arith.addf %477, %480 : vector<2x1xf32>
    %482 = math.rsqrt %481 : vector<2x1xf32>
    %483 = vector.broadcast %482 : vector<2x1xf32> to vector<2x64xf32>
    %484 = arith.mulf %479, %483 : vector<2x64xf32>
    %c589_128 = arith.constant 589 : index
    %c0_129 = arith.constant 0 : index
    %485 = vector.load %arg1[%c589_128, %c0_129] : memref<600x128xf32, #tpu.memory_space<vmem>>, vector<1x64xf32>
    %486 = vector.broadcast %485 : vector<1x64xf32> to vector<2x64xf32>
    %487 = arith.mulf %484, %486 : vector<2x64xf32>
    %c590_130 = arith.constant 590 : index
    %c0_131 = arith.constant 0 : index
    %488 = vector.load %arg1[%c590_130, %c0_131] : memref<600x128xf32, #tpu.memory_space<vmem>>, vector<1x64xf32>
    %489 = vector.broadcast %488 : vector<1x64xf32> to vector<2x64xf32>
    %490 = arith.addf %487, %489 : vector<2x64xf32>
    %cst_132 = arith.constant 0.000000e+00 : f32
    %491 = vector.broadcast %cst_132 : f32 to vector<2x64xf32>
    %492 = arith.maximumf %490, %491 : vector<2x64xf32>
    %c392_133 = arith.constant 392 : index
    %c0_134 = arith.constant 0 : index
    %493 = vector.load %arg1[%c392_133, %c0_134] : memref<600x128xf32, #tpu.memory_space<vmem>>, vector<64x32xf32>
    %cst_135 = arith.constant dense<0.000000e+00> : vector<2x32xf32>
    %494 = tpu.matmul %492, %493, %cst_135 {dimension_numbers = #tpu.dot_dimension_numbers<[1], [0], [0], [1], [0, 0, 1, 1], [], []>} : vector<2x64xf32>, vector<64x32xf32>, vector<2x32xf32> -> vector<2x32xf32>
    %c591_136 = arith.constant 591 : index
    %c0_137 = arith.constant 0 : index
    %495 = vector.load %arg1[%c591_136, %c0_137] : memref<600x128xf32, #tpu.memory_space<vmem>>, vector<1x32xf32>
    %496 = vector.broadcast %495 : vector<1x32xf32> to vector<2x32xf32>
    %497 = arith.addf %494, %496 : vector<2x32xf32>
    %cst_138 = arith.constant dense<0.000000e+00> : vector<2xf32>
    %498 = vector.multi_reduction <add>, %497, %cst_138 [1] : vector<2x32xf32> to vector<2xf32>
    %499 = vector.shape_cast %498 : vector<2xf32> to vector<2x1xf32>
    %cst_139 = arith.constant 3.200000e+01 : f32
    %500 = vector.broadcast %cst_139 : f32 to vector<2x1xf32>
    %501 = arith.divf %499, %500 : vector<2x1xf32>
    %502 = arith.mulf %497, %497 : vector<2x32xf32>
    %cst_140 = arith.constant dense<0.000000e+00> : vector<2xf32>
    %503 = vector.multi_reduction <add>, %502, %cst_140 [1] : vector<2x32xf32> to vector<2xf32>
    %504 = vector.shape_cast %503 : vector<2xf32> to vector<2x1xf32>
    %cst_141 = arith.constant 3.200000e+01 : f32
    %505 = vector.broadcast %cst_141 : f32 to vector<2x1xf32>
    %506 = arith.divf %504, %505 : vector<2x1xf32>
    %507 = arith.mulf %501, %501 : vector<2x1xf32>
    %508 = arith.subf %506, %507 : vector<2x1xf32>
    %509 = vector.broadcast %501 : vector<2x1xf32> to vector<2x32xf32>
    %510 = arith.subf %497, %509 : vector<2x32xf32>
    %cst_142 = arith.constant 9.99999974E-6 : f32
    %511 = vector.broadcast %cst_142 : f32 to vector<2x1xf32>
    %512 = arith.addf %508, %511 : vector<2x1xf32>
    %513 = math.rsqrt %512 : vector<2x1xf32>
    %514 = vector.broadcast %513 : vector<2x1xf32> to vector<2x32xf32>
    %515 = arith.mulf %510, %514 : vector<2x32xf32>
    %c592_143 = arith.constant 592 : index
    %c0_144 = arith.constant 0 : index
    %516 = vector.load %arg1[%c592_143, %c0_144] : memref<600x128xf32, #tpu.memory_space<vmem>>, vector<1x32xf32>
    %517 = vector.broadcast %516 : vector<1x32xf32> to vector<2x32xf32>
    %518 = arith.mulf %515, %517 : vector<2x32xf32>
    %c593_145 = arith.constant 593 : index
    %c0_146 = arith.constant 0 : index
    %519 = vector.load %arg1[%c593_145, %c0_146] : memref<600x128xf32, #tpu.memory_space<vmem>>, vector<1x32xf32>
    %520 = vector.broadcast %519 : vector<1x32xf32> to vector<2x32xf32>
    %521 = arith.addf %518, %520 : vector<2x32xf32>
    %522 = vector.broadcast %398 : vector<1x1xf32> to vector<2x32xf32>
    %523 = arith.mulf %522, %521 : vector<2x32xf32>
    %524 = arith.addf %461, %523 : vector<2x32xf32>
    %c456 = arith.constant 456 : index
    %c0_147 = arith.constant 0 : index
    %525 = vector.load %arg1[%c456, %c0_147] : memref<600x128xf32, #tpu.memory_space<vmem>>, vector<32x32xf32>
    %cst_148 = arith.constant dense<0.000000e+00> : vector<2x32xf32>
    %526 = tpu.matmul %524, %525, %cst_148 {dimension_numbers = #tpu.dot_dimension_numbers<[1], [0], [0], [1], [0, 0, 1, 1], [], []>} : vector<2x32xf32>, vector<32x32xf32>, vector<2x32xf32> -> vector<2x32xf32>
    %c595 = arith.constant 595 : index
    %c0_149 = arith.constant 0 : index
    %527 = vector.load %arg1[%c595, %c0_149] : memref<600x128xf32, #tpu.memory_space<vmem>>, vector<1x32xf32>
    %528 = vector.broadcast %527 : vector<1x32xf32> to vector<2x32xf32>
    %529 = arith.addf %526, %528 : vector<2x32xf32>
    %cst_150 = arith.constant dense<0.000000e+00> : vector<2xf32>
    %530 = vector.multi_reduction <add>, %529, %cst_150 [1] : vector<2x32xf32> to vector<2xf32>
    %531 = vector.shape_cast %530 : vector<2xf32> to vector<2x1xf32>
    %cst_151 = arith.constant 3.200000e+01 : f32
    %532 = vector.broadcast %cst_151 : f32 to vector<2x1xf32>
    %533 = arith.divf %531, %532 : vector<2x1xf32>
    %534 = arith.mulf %529, %529 : vector<2x32xf32>
    %cst_152 = arith.constant dense<0.000000e+00> : vector<2xf32>
    %535 = vector.multi_reduction <add>, %534, %cst_152 [1] : vector<2x32xf32> to vector<2xf32>
    %536 = vector.shape_cast %535 : vector<2xf32> to vector<2x1xf32>
    %cst_153 = arith.constant 3.200000e+01 : f32
    %537 = vector.broadcast %cst_153 : f32 to vector<2x1xf32>
    %538 = arith.divf %536, %537 : vector<2x1xf32>
    %539 = arith.mulf %533, %533 : vector<2x1xf32>
    %540 = arith.subf %538, %539 : vector<2x1xf32>
    %541 = vector.broadcast %533 : vector<2x1xf32> to vector<2x32xf32>
    %542 = arith.subf %529, %541 : vector<2x32xf32>
    %cst_154 = arith.constant 9.99999974E-6 : f32
    %543 = vector.broadcast %cst_154 : f32 to vector<2x1xf32>
    %544 = arith.addf %540, %543 : vector<2x1xf32>
    %545 = math.rsqrt %544 : vector<2x1xf32>
    %546 = vector.broadcast %545 : vector<2x1xf32> to vector<2x32xf32>
    %547 = arith.mulf %542, %546 : vector<2x32xf32>
    %c596 = arith.constant 596 : index
    %c0_155 = arith.constant 0 : index
    %548 = vector.load %arg1[%c596, %c0_155] : memref<600x128xf32, #tpu.memory_space<vmem>>, vector<1x32xf32>
    %549 = vector.broadcast %548 : vector<1x32xf32> to vector<2x32xf32>
    %550 = arith.mulf %547, %549 : vector<2x32xf32>
    %c597 = arith.constant 597 : index
    %c0_156 = arith.constant 0 : index
    %551 = vector.load %arg1[%c597, %c0_156] : memref<600x128xf32, #tpu.memory_space<vmem>>, vector<1x32xf32>
    %552 = vector.broadcast %551 : vector<1x32xf32> to vector<2x32xf32>
    %553 = arith.addf %550, %552 : vector<2x32xf32>
    %cst_157 = arith.constant 0.000000e+00 : f32
    %554 = vector.broadcast %cst_157 : f32 to vector<2x32xf32>
    %555 = arith.maximumf %553, %554 : vector<2x32xf32>
    %c488 = arith.constant 488 : index
    %c0_158 = arith.constant 0 : index
    %556 = vector.load %arg1[%c488, %c0_158] : memref<600x128xf32, #tpu.memory_space<vmem>>, vector<32x36xf32>
    %cst_159 = arith.constant dense<0.000000e+00> : vector<2x36xf32>
    %557 = tpu.matmul %555, %556, %cst_159 {dimension_numbers = #tpu.dot_dimension_numbers<[1], [0], [0], [1], [0, 0, 1, 1], [], []>} : vector<2x32xf32>, vector<32x36xf32>, vector<2x36xf32> -> vector<2x36xf32>
    %c598 = arith.constant 598 : index
    %c0_160 = arith.constant 0 : index
    %558 = vector.load %arg1[%c598, %c0_160] : memref<600x128xf32, #tpu.memory_space<vmem>>, vector<1x36xf32>
    %559 = vector.broadcast %558 : vector<1x36xf32> to vector<2x36xf32>
    %560 = arith.addf %557, %559 : vector<2x36xf32>
    %561 = vector.extract_strided_slice %560 {offsets = [0, 0], sizes = [2, 4], strides = [1, 1]} : vector<2x36xf32> to vector<2x4xf32>
    %562 = vector.extract_strided_slice %560 {offsets = [0, 4], sizes = [2, 32], strides = [1, 1]} : vector<2x36xf32> to vector<2x32xf32>
    %cst_161 = arith.constant 0.000000e+00 : f32
    %563 = vector.broadcast %cst_161 : f32 to vector<2x32xf32>
    %564 = arith.maximumf %562, %563 : vector<2x32xf32>
    %c520 = arith.constant 520 : index
    %c0_162 = arith.constant 0 : index
    %565 = vector.load %arg1[%c520, %c0_162] : memref<600x128xf32, #tpu.memory_space<vmem>>, vector<32x2xf32>
    %cst_163 = arith.constant dense<0.000000e+00> : vector<2x2xf32>
    %566 = tpu.matmul %564, %565, %cst_163 {dimension_numbers = #tpu.dot_dimension_numbers<[1], [0], [0], [1], [0, 0, 1, 1], [], []>} : vector<2x32xf32>, vector<32x2xf32>, vector<2x2xf32> -> vector<2x2xf32>
    %c599 = arith.constant 599 : index
    %c0_164 = arith.constant 0 : index
    %567 = vector.load %arg1[%c599, %c0_164] : memref<600x128xf32, #tpu.memory_space<vmem>>, vector<1x2xf32>
    %568 = vector.broadcast %567 : vector<1x2xf32> to vector<2x2xf32>
    %569 = arith.addf %566, %568 : vector<2x2xf32>
    %cst_165 = arith.constant 0.000000e+00 : f32
    %570 = vector.broadcast %cst_165 : f32 to vector<2x26xf32>
    %cst_166 = arith.constant 0.000000e+00 : f32
    %571 = vector.broadcast %cst_166 : f32 to vector<2x32xf32>
    %572 = tpu.concatenate %561, %569, %570, %292, %289, %571 in 1 : vector<2x4xf32>, vector<2x2xf32>, vector<2x26xf32>, vector<2x32xf32>, vector<2x32xf32>, vector<2x32xf32> -> vector<2x128xf32>
    %c0_167 = arith.constant 0 : index
    %c0_168 = arith.constant 0 : index
    %573 = vector.load %arg2[%c0_167, %c0_168] : memref<2x128xf32, #tpu.memory_space<vmem>>, vector<2x128xf32>
    tpu.vector_store %arg2[%c0_167, %c0_168], %572 {strides = array<i32>} : memref<2x128xf32, #tpu.memory_space<vmem>>, vector<2x128xf32>,
    return
  }
}

</mosaic_0001>

<llo_original>
// kernel: forward.1
$region0: #{forward.1}
  #allocation0 [shape = 'u32[]', space=smem, size = 0x4, offset = 0x4, fixed_abs, tag = 'smem constant byte address 0x4 - core index']
  #allocation1 [shape = 'u32[144,128]{1,0:T(1,128)}', space=vmem, size = 0x12000, scoped, tag = 'internal scratch']
  %s0 = inlined_call_operand.vmem [shape: f32[16,6], index: 0, kind: input, shape index: {}]
  %s1 = inlined_call_operand.hbm [shape: f32[600,128], index: 1, kind: input, shape index: {}]
  %s2 = inlined_call_operand.vmem [shape: f32[2,128], index: 2, kind: output, shape index: {}]
  %s3 = sld [smem:[#allocation0]]
  $region22: #{forward.1} parent=0
    _
  %s5 = ssub.s32 1, %s3
  %s6 = scalar_select 0, %s5, %s3
  $region1: #{forward.1} parent=0
    #allocation2 [shape = 'u8[307200]{0}', space=vmem, size = 0x4b000, scoped, tag = 'input window, operand 1, single buffered']
    #allocation3 [shape = 's32[1]{0}', space=sflag, size = 0x4, scoped, tag = 'scoped memory for forward.1']
    %7 = vsyncpa [#allocation3], 0
    // Predicated region
    $region2: #{forward.1} parent=1 // pred_check
      _
    $region3: #{forward.1} parent=1 // pred_check_branch
      %9 = sbr.rel (0) target = $region5
    $region4: #{forward.1} parent=1 // pred_region
      _
    $region5: #{forward.1} parent=1 // pred_fallthru
      _
    // Predicated region
    $region6: #{forward.1} parent=1 // pred_check
      _
    $region7: #{forward.1} parent=1 // pred_check_branch
      %11 = sbr.rel (0) target = $region9
    $region8: #{forward.1} parent=1 // pred_region
      %s13 = ssub.s32 9600, 9600
      %14 = vsyncadd [#allocation3], %s13
      %s15 = sshll.u32 [#allocation2], 4
      %s16 = int_to_ptr.vmem [resolvable:$true] %s15
      %21 = dma.hbm_to_vmem [thread:$0]  %s1, 9600, %s16, [#allocation3], 128, 128, 8
    $region9: #{forward.1} parent=1 // pred_fallthru
      _
    // Predicated region
    $region10: #{forward.1} parent=1 // pred_check
      _
    $region11: #{forward.1} parent=1 // pred_check_branch
      %23 = sbr.rel (0) target = $region13
    $region12: #{forward.1} parent=1 // pred_region
      %24 = dma.done [#allocation3], 9600
    $region13: #{forward.1} parent=1 // pred_fallthru
      _
    %v25 = vld [vmem:[%s0] sm:$0xff]
    %v26 = vld [vmem:[%s0 + $0x8] sm:$0xff]
    %v27 = vld [vmem:[#allocation2] sm:$0x3f]
    %v28 = vld [vmem:[#allocation2 + $0x238] sm:$0x1]
    %v29 = vlaneseq
    %v30 = vshrl.u32 %v29, 7
    %v31 = vsub.s32 0, %v30
    %v32 = vrot.slane %v28, %v31
    %vm33 = vcmask 48128
    %v35 = vsel %vm33, %v25, 0
    %v38 = vsel %vm33, %v26, 0
    %vm40 = vcmask 1045504
    %v42 = vsel %vm40, %v27, 0
    %44 = vmatprep.subr.mxu0 0.0
    %45 = vmatpush1.msra.mxu0 0.0
    %46 = vmatprep.subr.mxu0 0.0
    %47 = vmatpush1.msra.mxu0 0.0
    %48 = vmatprep.subr.mxu0 0.0
    %49 = vmatpush1.msra.mxu0 0.0
    %50 = vmatprep.subr.mxu0 0.0
    %51 = vmatpush1.msra.mxu0 0.0
    %52 = vmatprep.subr.mxu0 0.0
    %53 = vmatpush1.msra.mxu0 0.0
    %54 = vmatprep.subr.mxu0 0.0
    %55 = vmatpush1.msra.mxu0 0.0
    %56 = vmatprep.subr.mxu0 0.0
    %57 = vmatpush1.msra.mxu0 0.0
    %58 = vmatprep.subr.mxu0 0.0
    %59 = vmatpush1.msra.mxu0 0.0
    %60 = vmatprep.subr.mxu0 0.0
    %61 = vmatpush1.msra.mxu0 0.0
    %62 = vmatprep.subr.mxu0 0.0
    %63 = vmatpush1.msra.mxu0 0.0
    %64 = vmatprep.subr.mxu0 0.0
    %65 = vmatpush1.msra.mxu0 0.0
    %66 = vmatprep.subr.mxu0 0.0
    %67 = vmatpush1.msra.mxu0 0.0
    %68 = vmatprep.subr.mxu0 0.0
    %69 = vmatpush1.msra.mxu0 0.0
    %70 = vmatprep.subr.mxu0 0.0
    %71 = vmatpush1.msra.mxu0 0.0
    %72 = vmatprep.subr.mxu0 0.0
    %73 = vmatpush1.msra.mxu0 0.0
    %74 = vmatprep.subr.mxu0 0.0
    %75 = vmatpush1.msra.mxu0 %v42
    %76 = vmatprep.subr.mxu0 0.0
    %77 = vmatpush2.msra.mxu0 0.0
    %78 = vmatprep.subr.mxu0 0.0
    %79 = vmatpush2.msra.mxu0 0.0
    %80 = vmatprep.subr.mxu0 0.0
    %81 = vmatpush2.msra.mxu0 0.0
    %82 = vmatprep.subr.mxu0 0.0
    %83 = vmatpush2.msra.mxu0 0.0
    %84 = vmatprep.subr.mxu0 0.0
    %85 = vmatpush2.msra.mxu0 0.0
    %86 = vmatprep.subr.mxu0 0.0
    %87 = vmatpush2.msra.mxu0 0.0
    %88 = vmatprep.subr.mxu0 0.0
    %89 = vmatpush2.msra.mxu0 0.0
    %90 = vmatprep.subr.mxu0 0.0
    %91 = vmatpush2.msra.mxu0 0.0
    %92 = vmatprep.subr.mxu0 0.0
    %93 = vmatpush2.msra.mxu0 0.0
    %94 = vmatprep.subr.mxu0 0.0
    %95 = vmatpush2.msra.mxu0 0.0
    %96 = vmatprep.subr.mxu0 0.0
    %97 = vmatpush2.msra.mxu0 0.0
    %98 = vmatprep.subr.mxu0 0.0
    %99 = vmatpush2.msra.mxu0 0.0
    %100 = vmatprep.subr.mxu0 0.0
    %101 = vmatpush2.msra.mxu0 0.0
    %102 = vmatprep.subr.mxu0 0.0
    %103 = vmatpush2.msra.mxu0 0.0
    %104 = vmatprep.subr.mxu0 0.0
    %105 = vmatpush2.msra.mxu0 0.0
    %106 = vmatprep.subr.mxu0 0.0
    %107 = vmatpush2.msra.mxu0 0.0
    %108 = vmatprep.mubr.f32.mxu0 0.0
    %109 = vmatmul.mubr.f32.gmra.mxu0 %v35
    %v110 = vpop.f32.mrf.mxu0
    %v111 = vadd.f32 %v32, %v110
    %v112 = vpop.f32.mrf.mxu0
    %113 = vmatprep.mubr.f32.mxu0 0.0
    %114 = vmatmul.mubr.f32.gmra.mxu0 %v38
    %v115 = vpop.f32.mrf.mxu0
    %v116 = vadd.f32 %v32, %v115
    %v117 = vpop.f32.mrf.mxu0
    %118 = vdwg.mxu0
    %vm119 = vcmask 261120
    %v120 = vsel %vm119, %v111, 0.0
    %121 = vadd.xlane.f32.xlu0 %v120
    %v122 = vpop.xlane.xlu0 %121
    %v123 = vsel %vm119, %v116, 0.0
    %124 = vadd.xlane.f32.xlu0 %v123
    %v125 = vpop.xlane.xlu0 %124
    %v126 = vrcp.pop 32.0
    %v127 = vmul.f32 %v122, %v126
    %v128 = vmul.f32 %v125, %v126
    %v129 = vmul.f32 %v111, %v111
    %v130 = vmul.f32 %v116, %v116
    %v131 = vsel %vm119, %v129, 0.0
    %132 = vadd.xlane.f32.xlu0 %v131
    %v133 = vpop.xlane.xlu0 %132
    %v134 = vsel %vm119, %v130, 0.0
    %135 = vadd.xlane.f32.xlu0 %v134
    %v136 = vpop.xlane.xlu0 %135
    %v137 = vmul.f32 %v133, %v126
    %v138 = vmul.f32 %v136, %v126
    %v139 = vmul.f32 %v127, %v127
    %v140 = vmul.f32 %v128, %v128
    %v141 = vsub.f32 %v137, %v139
    %v142 = vsub.f32 %v138, %v140
    %v143 = vsub.f32 %v111, %v127
    %v144 = vsub.f32 %v116, %v128
    %v145 = vadd.f32 %v141, 1e-05
    %v146 = vadd.f32 %v142, 1e-05
    %v147 = vrsqrt.pop %v145
    %v148 = vrsqrt.pop %v146
    %v149 = vmul.f32 %v143, %v147
    %v150 = vmul.f32 %v144, %v148
    %v151 = vld [vmem:[#allocation2 + $0x239] sm:$0x1]
    %v152 = vlaneseq
    %v153 = vshrl.u32 %v152, 7
    %v154 = vsub.s32 0, %v153
    %v155 = vrot.slane %v151, %v154
    %v156 = vmul.f32 %v149, %v155
    %v157 = vmul.f32 %v150, %v155
    %v158 = vld [vmem:[#allocation2 + $0x23a] sm:$0x1]
    %v159 = vlaneseq
    %v160 = vshrl.u32 %v159, 7
    %v161 = vsub.s32 0, %v160
    %v162 = vrot.slane %v158, %v161
    %v163 = vadd.f32 %v156, %v162
    %v164 = vadd.f32 %v157, %v162
    %v165 = vmax.f32 %v163, 0.0
    %v166 = vmax.f32 %v164, 0.0
    %v167 = vld [vmem:[#allocation2 + $0x8] sm:$0xff]
    %v168 = vld [vmem:[#allocation2 + $0x10] sm:$0xff]
    %v169 = vld [vmem:[#allocation2 + $0x18] sm:$0xff]
    %v170 = vld [vmem:[#allocation2 + $0x20] sm:$0xff]
    %v171 = vld [vmem:[#allocation2 + $0x23b] sm:$0x1]
    %v172 = vlaneseq
    %v173 = vshrl.u32 %v172, 7
    %v174 = vsub.s32 0, %v173
    %v175 = vrot.slane %v171, %v174
    %v177 = vsel %vm119, %v165, 0
    %v180 = vsel %vm119, %v166, 0
    %182 = vmatprep.subr.mxu0 0.0
    %183 = vmatpush1.msra.mxu0 0.0
    %184 = vmatprep.subr.mxu0 0.0
    %185 = vmatpush1.msra.mxu0 0.0
    %186 = vmatprep.subr.mxu0 0.0
    %187 = vmatpush1.msra.mxu0 0.0
    %188 = vmatprep.subr.mxu0 0.0
    %189 = vmatpush1.msra.mxu0 0.0
    %190 = vmatprep.subr.mxu0 0.0
    %191 = vmatpush1.msra.mxu0 0.0
    %192 = vmatprep.subr.mxu0 0.0
    %193 = vmatpush1.msra.mxu0 0.0
    %194 = vmatprep.subr.mxu0 0.0
    %195 = vmatpush1.msra.mxu0 0.0
    %196 = vmatprep.subr.mxu0 0.0
    %197 = vmatpush1.msra.mxu0 0.0
    %198 = vmatprep.subr.mxu0 0.0
    %199 = vmatpush1.msra.mxu0 0.0
    %200 = vmatprep.subr.mxu0 0.0
    %201 = vmatpush1.msra.mxu0 0.0
    %202 = vmatprep.subr.mxu0 0.0
    %203 = vmatpush1.msra.mxu0 0.0
    %204 = vmatprep.subr.mxu0 0.0
    %205 = vmatpush1.msra.mxu0 0.0
    %206 = vmatprep.subr.mxu0 0.0
    %207 = vmatpush1.msra.mxu0 %v170
    %208 = vmatprep.subr.mxu0 0.0
    %209 = vmatpush1.msra.mxu0 %v169
    %210 = vmatprep.subr.mxu0 0.0
    %211 = vmatpush1.msra.mxu0 %v168
    %212 = vmatprep.subr.mxu0 0.0
    %213 = vmatpush1.msra.mxu0 %v167
    %214 = vmatprep.subr.mxu0 0.0
    %215 = vmatpush2.msra.mxu0 0.0
    %216 = vmatprep.subr.mxu0 0.0
    %217 = vmatpush2.msra.mxu0 0.0
    %218 = vmatprep.subr.mxu0 0.0
    %219 = vmatpush2.msra.mxu0 0.0
    %220 = vmatprep.subr.mxu0 0.0
    %221 = vmatpush2.msra.mxu0 0.0
    %222 = vmatprep.subr.mxu0 0.0
    %223 = vmatpush2.msra.mxu0 0.0
    %224 = vmatprep.subr.mxu0 0.0
    %225 = vmatpush2.msra.mxu0 0.0
    %226 = vmatprep.subr.mxu0 0.0
    %227 = vmatpush2.msra.mxu0 0.0
    %228 = vmatprep.subr.mxu0 0.0
    %229 = vmatpush2.msra.mxu0 0.0
    %230 = vmatprep.subr.mxu0 0.0
    %231 = vmatpush2.msra.mxu0 0.0
    %232 = vmatprep.subr.mxu0 0.0
    %233 = vmatpush2.msra.mxu0 0.0
    %234 = vmatprep.subr.mxu0 0.0
    %235 = vmatpush2.msra.mxu0 0.0
    %236 = vmatprep.subr.mxu0 0.0
    %237 = vmatpush2.msra.mxu0 0.0
    %238 = vmatprep.subr.mxu0 0.0
    %239 = vmatpush2.msra.mxu0 0.0
    %240 = vmatprep.subr.mxu0 0.0
    %241 = vmatpush2.msra.mxu0 0.0
    %242 = vmatprep.subr.mxu0 0.0
    %243 = vmatpush2.msra.mxu0 0.0
    %244 = vmatprep.subr.mxu0 0.0
    %245 = vmatpush2.msra.mxu0 0.0
    %246 = vmatprep.mubr.f32.mxu0 0.0
    %247 = vmatmul.mubr.f32.gmra.mxu0 %v177
    %v248 = vpop.f32.mrf.mxu0
    %v249 = vadd.f32 %v175, %v248
    %v250 = vpop.f32.mrf.mxu0
    %251 = vmatprep.mubr.f32.mxu0 0.0
    %252 = vmatmul.mubr.f32.gmra.mxu0 %v180
    %v253 = vpop.f32.mrf.mxu0
    %v254 = vadd.f32 %v175, %v253
    %v255 = vpop.f32.mrf.mxu0
    %256 = vdwg.mxu0
    %v257 = vsel %vm119, %v249, 0.0
    %258 = vadd.xlane.f32.xlu0 %v257
    %v259 = vpop.xlane.xlu0 %258
    %v260 = vsel %vm119, %v254, 0.0
    %261 = vadd.xlane.f32.xlu0 %v260
    %v262 = vpop.xlane.xlu0 %261
    %v263 = vmul.f32 %v259, %v126
    %v264 = vmul.f32 %v262, %v126
    %v265 = vmul.f32 %v249, %v249
    %v266 = vmul.f32 %v254, %v254
    %v267 = vsel %vm119, %v265, 0.0
    %268 = vadd.xlane.f32.xlu0 %v267
    %v269 = vpop.xlane.xlu0 %268
    %v270 = vsel %vm119, %v266, 0.0
    %271 = vadd.xlane.f32.xlu0 %v270
    %v272 = vpop.xlane.xlu0 %271
    %v273 = vmul.f32 %v269, %v126
    %v274 = vmul.f32 %v272, %v126
    %v275 = vmul.f32 %v263, %v263
    %v276 = vmul.f32 %v264, %v264
    %v277 = vsub.f32 %v273, %v275
    %v278 = vsub.f32 %v274, %v276
    %v279 = vsub.f32 %v249, %v263
    %v280 = vsub.f32 %v254, %v264
    %v281 = vadd.f32 %v277, 1e-05
    %v282 = vadd.f32 %v278, 1e-05
    %v283 = vrsqrt.pop %v281
    %v284 = vrsqrt.pop %v282
    %v285 = vmul.f32 %v279, %v283
    %v286 = vmul.f32 %v280, %v284
    %v287 = vld [vmem:[#allocation2 + $0x23c] sm:$0x1]
    %v288 = vlaneseq
    %v289 = vshrl.u32 %v288, 7
    %v290 = vsub.s32 0, %v289
    %v291 = vrot.slane %v287, %v290
    %v292 = vmul.f32 %v285, %v291
    %v293 = vmul.f32 %v286, %v291
    %v294 = vld [vmem:[#allocation2 + $0x23d] sm:$0x1]
    %v295 = vlaneseq
    %v296 = vshrl.u32 %v295, 7
    %v297 = vsub.s32 0, %v296
    %v298 = vrot.slane %v294, %v297
    %v299 = vadd.f32 %v292, %v298
    %v300 = vadd.f32 %v293, %v298
    %v301 = vsel %vm119, %v299, 0.0
    %302 = vadd.xlane.f32.xlu0 %v301
    %v303 = vpop.xlane.xlu0 %302
    %v304 = vsel %vm119, %v300, 0.0
    %305 = vadd.xlane.f32.xlu0 %v304
    %v306 = vpop.xlane.xlu0 %305
    %v307 = vmul.f32 %v303, %v126
    %v308 = vmul.f32 %v306, %v126
    %v309 = vmul.f32 %v299, %v299
    %v310 = vmul.f32 %v300, %v300
    %v311 = vsel %vm119, %v309, 0.0
    %312 = vadd.xlane.f32.xlu0 %v311
    %v313 = vpop.xlane.xlu0 %312
    %v314 = vsel %vm119, %v310, 0.0
    %315 = vadd.xlane.f32.xlu0 %v314
    %v316 = vpop.xlane.xlu0 %315
    %v317 = vmul.f32 %v313, %v126
    %v318 = vmul.f32 %v316, %v126
    %v319 = vmul.f32 %v307, %v307
    %v320 = vmul.f32 %v308, %v308
    %v321 = vsub.f32 %v317, %v319
    %v322 = vsub.f32 %v318, %v320
    %v323 = vsub.f32 %v299, %v307
    %v324 = vsub.f32 %v300, %v308
    %v325 = vadd.f32 %v321, 1e-05
    %v326 = vadd.f32 %v322, 1e-05
    %v327 = vrsqrt.pop %v325
    %v328 = vrsqrt.pop %v326
    %v329 = vmul.f32 %v323, %v327
    %v330 = vmul.f32 %v324, %v328
    %v331 = vld [vmem:[#allocation2 + $0x23e] sm:$0x1]
    %v332 = vlaneseq
    %v333 = vshrl.u32 %v332, 7
    %v334 = vsub.s32 0, %v333
    %v335 = vrot.slane %v331, %v334
    %v336 = vmul.f32 %v329, %v335
    %v337 = vmul.f32 %v330, %v335
    %v338 = vld [vmem:[#allocation2 + $0x23f] sm:$0x1]
    %v339 = vlaneseq
    %v340 = vshrl.u32 %v339, 7
    %v341 = vsub.s32 0, %v340
    %v342 = vrot.slane %v338, %v341
    %v343 = vadd.f32 %v336, %v342
    %v344 = vadd.f32 %v337, %v342
    %v345 = vld [vmem:[#allocation2 + $0x28] sm:$0xff]
    %v346 = vld [vmem:[#allocation2 + $0x30] sm:$0xff]
    %v347 = vld [vmem:[#allocation2 + $0x38] sm:$0xff]
    %v348 = vld [vmem:[#allocation2 + $0x40] sm:$0xff]
    %v350 = vsel %vm119, %v343, 0
    %v353 = vsel %vm119, %v344, 0
    %355 = vmatprep.subr.mxu0 0.0
    %356 = vmatpush1.msra.mxu0 0.0
    %357 = vmatprep.subr.mxu0 0.0
    %358 = vmatpush1.msra.mxu0 0.0
    %359 = vmatprep.subr.mxu0 0.0
    %360 = vmatpush1.msra.mxu0 0.0
    %361 = vmatprep.subr.mxu0 0.0
    %362 = vmatpush1.msra.mxu0 0.0
    %363 = vmatprep.subr.mxu0 0.0
    %364 = vmatpush1.msra.mxu0 0.0
    %365 = vmatprep.subr.mxu0 0.0
    %366 = vmatpush1.msra.mxu0 0.0
    %367 = vmatprep.subr.mxu0 0.0
    %368 = vmatpush1.msra.mxu0 0.0
    %369 = vmatprep.subr.mxu0 0.0
    %370 = vmatpush1.msra.mxu0 0.0
    %371 = vmatprep.subr.mxu0 0.0
    %372 = vmatpush1.msra.mxu0 0.0
    %373 = vmatprep.subr.mxu0 0.0
    %374 = vmatpush1.msra.mxu0 0.0
    %375 = vmatprep.subr.mxu0 0.0
    %376 = vmatpush1.msra.mxu0 0.0
    %377 = vmatprep.subr.mxu0 0.0
    %378 = vmatpush1.msra.mxu0 0.0
    %379 = vmatprep.subr.mxu0 0.0
    %380 = vmatpush1.msra.mxu0 %v348
    %381 = vmatprep.subr.mxu0 0.0
    %382 = vmatpush1.msra.mxu0 %v347
    %383 = vmatprep.subr.mxu0 0.0
    %384 = vmatpush1.msra.mxu0 %v346
    %385 = vmatprep.subr.mxu0 0.0
    %386 = vmatpush1.msra.mxu0 %v345
    %387 = vmatprep.subr.mxu0 0.0
    %388 = vmatpush2.msra.mxu0 0.0
    %389 = vmatprep.subr.mxu0 0.0
    %390 = vmatpush2.msra.mxu0 0.0
    %391 = vmatprep.subr.mxu0 0.0
    %392 = vmatpush2.msra.mxu0 0.0
    %393 = vmatprep.subr.mxu0 0.0
    %394 = vmatpush2.msra.mxu0 0.0
    %395 = vmatprep.subr.mxu0 0.0
    %396 = vmatpush2.msra.mxu0 0.0
    %397 = vmatprep.subr.mxu0 0.0
    %398 = vmatpush2.msra.mxu0 0.0
    %399 = vmatprep.subr.mxu0 0.0
    %400 = vmatpush2.msra.mxu0 0.0
    %401 = vmatprep.subr.mxu0 0.0
    %402 = vmatpush2.msra.mxu0 0.0
    %403 = vmatprep.subr.mxu0 0.0
    %404 = vmatpush2.msra.mxu0 0.0
    %405 = vmatprep.subr.mxu0 0.0
    %406 = vmatpush2.msra.mxu0 0.0
    %407 = vmatprep.subr.mxu0 0.0
    %408 = vmatpush2.msra.mxu0 0.0
    %409 = vmatprep.subr.mxu0 0.0
    %410 = vmatpush2.msra.mxu0 0.0
    %411 = vmatprep.subr.mxu0 0.0
    %412 = vmatpush2.msra.mxu0 0.0
    %413 = vmatprep.subr.mxu0 0.0
    %414 = vmatpush2.msra.mxu0 0.0
    %415 = vmatprep.subr.mxu0 0.0
    %416 = vmatpush2.msra.mxu0 0.0
    %417 = vmatprep.subr.mxu0 0.0
    %418 = vmatpush2.msra.mxu0 0.0
    %419 = vmatprep.mubr.f32.mxu0 0.0
    %420 = vmatmul.mubr.f32.gmra.mxu0 %v350
    %v421 = vpop.f32.mrf.mxu0
    %v422 = vadd.f32 0.0, %v421
    %v423 = vpop.f32.mrf.mxu0
    %424 = vmatprep.mubr.f32.mxu0 0.0
    %425 = vmatmul.mubr.f32.gmra.mxu0 %v353
    %v426 = vpop.f32.mrf.mxu0
    %v427 = vadd.f32 0.0, %v426
    %v428 = vpop.f32.mrf.mxu0
    %429 = vdwg.mxu0
    %v430 = vld [vmem:[#allocation2 + $0x228] sm:$0xff]
    %v431 = vmul.f32 %v422, %v430
    %v432 = vmul.f32 %v427, %v430
    %434 = vrot.lane.b32.xlu0 %v430, 32
    %v435 = vpop.permute.xlu0 %434
    %v437 = vmul.f32 %v422, %v435
    %v438 = vmul.f32 %v427, %v435
    %441 = vrot.lane.b32.xlu0 %v431, 112
    %v442 = vpop.permute.xlu0 %441
    %443 = vrot.lane.b32.xlu0 %v432, 112
    %v444 = vpop.permute.xlu0 %443
    %447 = vrot.lane.b32.xlu0 %v437, 112
    %v448 = vpop.permute.xlu0 %447
    %449 = vrot.lane.b32.xlu0 %v438, 112
    %v450 = vpop.permute.xlu0 %449
    %453 = vrot.lane.b32.xlu0 %v422, 112
    %v454 = vpop.permute.xlu0 %453
    %455 = vrot.lane.b32.xlu0 %v427, 112
    %v456 = vpop.permute.xlu0 %455
    %v457 = vld [vmem:[#allocation2 + $0x230] sm:$0xff]
    %458 = vrot.lane.b32.xlu0 %v437, 96
    %v459 = vpop.permute.xlu0 %458
    %vm460 = vcmask 130048
    %v461 = vsel %vm460, %v431, 0
    %v463 = vsel %vm460, %v459, 0
    %465 = vmatprep.subr.mxu0 0.0
    %466 = vmatpush1.xpose.msra.mxu0 0.0
    %467 = vmatprep.subr.mxu0 0.0
    %468 = vmatpush1.xpose.msra.mxu0 0.0
    %469 = vmatprep.subr.mxu0 0.0
    %470 = vmatpush1.xpose.msra.mxu0 0.0
    %471 = vmatprep.subr.mxu0 0.0
    %472 = vmatpush1.xpose.msra.mxu0 0.0
    %473 = vmatprep.subr.mxu0 0.0
    %474 = vmatpush1.xpose.msra.mxu0 0.0
    %475 = vmatprep.subr.mxu0 0.0
    %476 = vmatpush1.xpose.msra.mxu0 0.0
    %477 = vmatprep.subr.mxu0 0.0
    %478 = vmatpush1.xpose.msra.mxu0 0.0
    %479 = vmatprep.subr.mxu0 0.0
    %480 = vmatpush1.xpose.msra.mxu0 0.0
    %481 = vmatprep.subr.mxu0 0.0
    %482 = vmatpush1.xpose.msra.mxu0 0.0
    %483 = vmatprep.subr.mxu0 0.0
    %484 = vmatpush1.xpose.msra.mxu0 0.0
    %485 = vmatprep.subr.mxu0 0.0
    %486 = vmatpush1.xpose.msra.mxu0 0.0
    %487 = vmatprep.subr.mxu0 0.0
    %488 = vmatpush1.xpose.msra.mxu0 0.0
    %489 = vmatprep.subr.mxu0 0.0
    %490 = vmatpush1.xpose.msra.mxu0 0.0
    %491 = vmatprep.subr.mxu0 0.0
    %492 = vmatpush1.xpose.msra.mxu0 0.0
    %493 = vmatprep.subr.mxu0 0.0
    %494 = vmatpush1.xpose.msra.mxu0 0.0
    %495 = vmatprep.subr.mxu0 0.0
    %496 = vmatpush1.xpose.msra.mxu0 %v463
    %497 = vmatprep.subr.mxu0 0.0
    %498 = vmatpush2.xpose.msra.mxu0 0.0
    %499 = vmatprep.subr.mxu0 0.0
    %500 = vmatpush2.xpose.msra.mxu0 0.0
    %501 = vmatprep.subr.mxu0 0.0
    %502 = vmatpush2.xpose.msra.mxu0 0.0
    %503 = vmatprep.subr.mxu0 0.0
    %504 = vmatpush2.xpose.msra.mxu0 0.0
    %505 = vmatprep.subr.mxu0 0.0
    %506 = vmatpush2.xpose.msra.mxu0 0.0
    %507 = vmatprep.subr.mxu0 0.0
    %508 = vmatpush2.xpose.msra.mxu0 0.0
    %509 = vmatprep.subr.mxu0 0.0
    %510 = vmatpush2.xpose.msra.mxu0 0.0
    %511 = vmatprep.subr.mxu0 0.0
    %512 = vmatpush2.xpose.msra.mxu0 0.0
    %513 = vmatprep.subr.mxu0 0.0
    %514 = vmatpush2.xpose.msra.mxu0 0.0
    %515 = vmatprep.subr.mxu0 0.0
    %516 = vmatpush2.xpose.msra.mxu0 0.0
    %517 = vmatprep.subr.mxu0 0.0
    %518 = vmatpush2.xpose.msra.mxu0 0.0
    %519 = vmatprep.subr.mxu0 0.0
    %520 = vmatpush2.xpose.msra.mxu0 0.0
    %521 = vmatprep.subr.mxu0 0.0
    %522 = vmatpush2.xpose.msra.mxu0 0.0
    %523 = vmatprep.subr.mxu0 0.0
    %524 = vmatpush2.xpose.msra.mxu0 0.0
    %525 = vmatprep.subr.mxu0 0.0
    %526 = vmatpush2.xpose.msra.mxu0 0.0
    %527 = vmatprep.subr.mxu0 0.0
    %528 = vmatpush2.xpose.msra.mxu0 0.0
    %529 = vmatprep.mubr.f32.mxu0 0.0
    %530 = vmatmul.mubr.f32.gmra.mxu0 %v461
    %v531 = vpop.f32.mrf.mxu0
    %v532 = vadd.f32 %v457, %v531
    %v533 = vpop.f32.mrf.mxu0
    %534 = vdwg.mxu0
    %535 = vrot.lane.b32.xlu0 %v438, 96
    %v536 = vpop.permute.xlu0 %535
    %v537 = vsel %vm460, %v432, 0
    %v539 = vsel %vm460, %v536, 0
    %541 = vmatprep.subr.mxu0 0.0
    %542 = vmatpush1.xpose.msra.mxu0 0.0
    %543 = vmatprep.subr.mxu0 0.0
    %544 = vmatpush1.xpose.msra.mxu0 0.0
    %545 = vmatprep.subr.mxu0 0.0
    %546 = vmatpush1.xpose.msra.mxu0 0.0
    %547 = vmatprep.subr.mxu0 0.0
    %548 = vmatpush1.xpose.msra.mxu0 0.0
    %549 = vmatprep.subr.mxu0 0.0
    %550 = vmatpush1.xpose.msra.mxu0 0.0
    %551 = vmatprep.subr.mxu0 0.0
    %552 = vmatpush1.xpose.msra.mxu0 0.0
    %553 = vmatprep.subr.mxu0 0.0
    %554 = vmatpush1.xpose.msra.mxu0 0.0
    %555 = vmatprep.subr.mxu0 0.0
    %556 = vmatpush1.xpose.msra.mxu0 0.0
    %557 = vmatprep.subr.mxu0 0.0
    %558 = vmatpush1.xpose.msra.mxu0 0.0
    %559 = vmatprep.subr.mxu0 0.0
    %560 = vmatpush1.xpose.msra.mxu0 0.0
    %561 = vmatprep.subr.mxu0 0.0
    %562 = vmatpush1.xpose.msra.mxu0 0.0
    %563 = vmatprep.subr.mxu0 0.0
    %564 = vmatpush1.xpose.msra.mxu0 0.0
    %565 = vmatprep.subr.mxu0 0.0
    %566 = vmatpush1.xpose.msra.mxu0 0.0
    %567 = vmatprep.subr.mxu0 0.0
    %568 = vmatpush1.xpose.msra.mxu0 0.0
    %569 = vmatprep.subr.mxu0 0.0
    %570 = vmatpush1.xpose.msra.mxu0 0.0
    %571 = vmatprep.subr.mxu0 0.0
    %572 = vmatpush1.xpose.msra.mxu0 %v539
    %573 = vmatprep.subr.mxu0 0.0
    %574 = vmatpush2.xpose.msra.mxu0 0.0
    %575 = vmatprep.subr.mxu0 0.0
    %576 = vmatpush2.xpose.msra.mxu0 0.0
    %577 = vmatprep.subr.mxu0 0.0
    %578 = vmatpush2.xpose.msra.mxu0 0.0
    %579 = vmatprep.subr.mxu0 0.0
    %580 = vmatpush2.xpose.msra.mxu0 0.0
    %581 = vmatprep.subr.mxu0 0.0
    %582 = vmatpush2.xpose.msra.mxu0 0.0
    %583 = vmatprep.subr.mxu0 0.0
    %584 = vmatpush2.xpose.msra.mxu0 0.0
    %585 = vmatprep.subr.mxu0 0.0
    %586 = vmatpush2.xpose.msra.mxu0 0.0
    %587 = vmatprep.subr.mxu0 0.0
    %588 = vmatpush2.xpose.msra.mxu0 0.0
    %589 = vmatprep.subr.mxu0 0.0
    %590 = vmatpush2.xpose.msra.mxu0 0.0
    %591 = vmatprep.subr.mxu0 0.0
    %592 = vmatpush2.xpose.msra.mxu0 0.0
    %593 = vmatprep.subr.mxu0 0.0
    %594 = vmatpush2.xpose.msra.mxu0 0.0
    %595 = vmatprep.subr.mxu0 0.0
    %596 = vmatpush2.xpose.msra.mxu0 0.0
    %597 = vmatprep.subr.mxu0 0.0
    %598 = vmatpush2.xpose.msra.mxu0 0.0
    %599 = vmatprep.subr.mxu0 0.0
    %600 = vmatpush2.xpose.msra.mxu0 0.0
    %601 = vmatprep.subr.mxu0 0.0
    %602 = vmatpush2.xpose.msra.mxu0 0.0
    %603 = vmatprep.subr.mxu0 0.0
    %604 = vmatpush2.xpose.msra.mxu0 0.0
    %605 = vmatprep.mubr.f32.mxu0 0.0
    %606 = vmatmul.mubr.f32.gmra.mxu0 %v537
    %v607 = vpop.f32.mrf.mxu0
    %v608 = vadd.f32 %v457, %v607
    %v609 = vpop.f32.mrf.mxu0
    %610 = vdwg.mxu0
    %611 = vrot.lane.b32.xlu0 %v448, 96
    %v612 = vpop.permute.xlu0 %611
    %v613 = vsel %vm460, %v442, 0
    %v615 = vsel %vm460, %v612, 0
    %617 = vmatprep.subr.mxu0 0.0
    %618 = vmatpush1.xpose.msra.mxu0 0.0
    %619 = vmatprep.subr.mxu0 0.0
    %620 = vmatpush1.xpose.msra.mxu0 0.0
    %621 = vmatprep.subr.mxu0 0.0
    %622 = vmatpush1.xpose.msra.mxu0 0.0
    %623 = vmatprep.subr.mxu0 0.0
    %624 = vmatpush1.xpose.msra.mxu0 0.0
    %625 = vmatprep.subr.mxu0 0.0
    %626 = vmatpush1.xpose.msra.mxu0 0.0
    %627 = vmatprep.subr.mxu0 0.0
    %628 = vmatpush1.xpose.msra.mxu0 0.0
    %629 = vmatprep.subr.mxu0 0.0
    %630 = vmatpush1.xpose.msra.mxu0 0.0
    %631 = vmatprep.subr.mxu0 0.0
    %632 = vmatpush1.xpose.msra.mxu0 0.0
    %633 = vmatprep.subr.mxu0 0.0
    %634 = vmatpush1.xpose.msra.mxu0 0.0
    %635 = vmatprep.subr.mxu0 0.0
    %636 = vmatpush1.xpose.msra.mxu0 0.0
    %637 = vmatprep.subr.mxu0 0.0
    %638 = vmatpush1.xpose.msra.mxu0 0.0
    %639 = vmatprep.subr.mxu0 0.0
    %640 = vmatpush1.xpose.msra.mxu0 0.0
    %641 = vmatprep.subr.mxu0 0.0
    %642 = vmatpush1.xpose.msra.mxu0 0.0
    %643 = vmatprep.subr.mxu0 0.0
    %644 = vmatpush1.xpose.msra.mxu0 0.0
    %645 = vmatprep.subr.mxu0 0.0
    %646 = vmatpush1.xpose.msra.mxu0 0.0
    %647 = vmatprep.subr.mxu0 0.0
    %648 = vmatpush1.xpose.msra.mxu0 %v615
    %649 = vmatprep.subr.mxu0 0.0
    %650 = vmatpush2.xpose.msra.mxu0 0.0
    %651 = vmatprep.subr.mxu0 0.0
    %652 = vmatpush2.xpose.msra.mxu0 0.0
    %653 = vmatprep.subr.mxu0 0.0
    %654 = vmatpush2.xpose.msra.mxu0 0.0
    %655 = vmatprep.subr.mxu0 0.0
    %656 = vmatpush2.xpose.msra.mxu0 0.0
    %657 = vmatprep.subr.mxu0 0.0
    %658 = vmatpush2.xpose.msra.mxu0 0.0
    %659 = vmatprep.subr.mxu0 0.0
    %660 = vmatpush2.xpose.msra.mxu0 0.0
    %661 = vmatprep.subr.mxu0 0.0
    %662 = vmatpush2.xpose.msra.mxu0 0.0
    %663 = vmatprep.subr.mxu0 0.0
    %664 = vmatpush2.xpose.msra.mxu0 0.0
    %665 = vmatprep.subr.mxu0 0.0
    %666 = vmatpush2.xpose.msra.mxu0 0.0
    %667 = vmatprep.subr.mxu0 0.0
    %668 = vmatpush2.xpose.msra.mxu0 0.0
    %669 = vmatprep.subr.mxu0 0.0
    %670 = vmatpush2.xpose.msra.mxu0 0.0
    %671 = vmatprep.subr.mxu0 0.0
    %672 = vmatpush2.xpose.msra.mxu0 0.0
    %673 = vmatprep.subr.mxu0 0.0
    %674 = vmatpush2.xpose.msra.mxu0 0.0
    %675 = vmatprep.subr.mxu0 0.0
    %676 = vmatpush2.xpose.msra.mxu0 0.0
    %677 = vmatprep.subr.mxu0 0.0
    %678 = vmatpush2.xpose.msra.mxu0 0.0
    %679 = vmatprep.subr.mxu0 0.0
    %680 = vmatpush2.xpose.msra.mxu0 0.0
    %681 = vmatprep.mubr.f32.mxu0 0.0
    %682 = vmatmul.mubr.f32.gmra.mxu0 %v613
    %v683 = vpop.f32.mrf.mxu0
    %v684 = vadd.f32 %v457, %v683
    %v685 = vpop.f32.mrf.mxu0
    %686 = vdwg.mxu0
    %687 = vrot.lane.b32.xlu0 %v450, 96
    %v688 = vpop.permute.xlu0 %687
    %v689 = vsel %vm460, %v444, 0
    %v691 = vsel %vm460, %v688, 0
    %693 = vmatprep.subr.mxu0 0.0
    %694 = vmatpush1.xpose.msra.mxu0 0.0
    %695 = vmatprep.subr.mxu0 0.0
    %696 = vmatpush1.xpose.msra.mxu0 0.0
    %697 = vmatprep.subr.mxu0 0.0
    %698 = vmatpush1.xpose.msra.mxu0 0.0
    %699 = vmatprep.subr.mxu0 0.0
    %700 = vmatpush1.xpose.msra.mxu0 0.0
    %701 = vmatprep.subr.mxu0 0.0
    %702 = vmatpush1.xpose.msra.mxu0 0.0
    %703 = vmatprep.subr.mxu0 0.0
    %704 = vmatpush1.xpose.msra.mxu0 0.0
    %705 = vmatprep.subr.mxu0 0.0
    %706 = vmatpush1.xpose.msra.mxu0 0.0
    %707 = vmatprep.subr.mxu0 0.0
    %708 = vmatpush1.xpose.msra.mxu0 0.0
    %709 = vmatprep.subr.mxu0 0.0
    %710 = vmatpush1.xpose.msra.mxu0 0.0
    %711 = vmatprep.subr.mxu0 0.0
    %712 = vmatpush1.xpose.msra.mxu0 0.0
    %713 = vmatprep.subr.mxu0 0.0
    %714 = vmatpush1.xpose.msra.mxu0 0.0
    %715 = vmatprep.subr.mxu0 0.0
    %716 = vmatpush1.xpose.msra.mxu0 0.0
    %717 = vmatprep.subr.mxu0 0.0
    %718 = vmatpush1.xpose.msra.mxu0 0.0
    %719 = vmatprep.subr.mxu0 0.0
    %720 = vmatpush1.xpose.msra.mxu0 0.0
    %721 = vmatprep.subr.mxu0 0.0
    %722 = vmatpush1.xpose.msra.mxu0 0.0
    %723 = vmatprep.subr.mxu0 0.0
    %724 = vmatpush1.xpose.msra.mxu0 %v691
    %725 = vmatprep.subr.mxu0 0.0
    %726 = vmatpush2.xpose.msra.mxu0 0.0
    %727 = vmatprep.subr.mxu0 0.0
    %728 = vmatpush2.xpose.msra.mxu0 0.0
    %729 = vmatprep.subr.mxu0 0.0
    %730 = vmatpush2.xpose.msra.mxu0 0.0
    %731 = vmatprep.subr.mxu0 0.0
    %732 = vmatpush2.xpose.msra.mxu0 0.0
    %733 = vmatprep.subr.mxu0 0.0
    %734 = vmatpush2.xpose.msra.mxu0 0.0
    %735 = vmatprep.subr.mxu0 0.0
    %736 = vmatpush2.xpose.msra.mxu0 0.0
    %737 = vmatprep.subr.mxu0 0.0
    %738 = vmatpush2.xpose.msra.mxu0 0.0
    %739 = vmatprep.subr.mxu0 0.0
    %740 = vmatpush2.xpose.msra.mxu0 0.0
    %741 = vmatprep.subr.mxu0 0.0
    %742 = vmatpush2.xpose.msra.mxu0 0.0
    %743 = vmatprep.subr.mxu0 0.0
    %744 = vmatpush2.xpose.msra.mxu0 0.0
    %745 = vmatprep.subr.mxu0 0.0
    %746 = vmatpush2.xpose.msra.mxu0 0.0
    %747 = vmatprep.subr.mxu0 0.0
    %748 = vmatpush2.xpose.msra.mxu0 0.0
    %749 = vmatprep.subr.mxu0 0.0
    %750 = vmatpush2.xpose.msra.mxu0 0.0
    %751 = vmatprep.subr.mxu0 0.0
    %752 = vmatpush2.xpose.msra.mxu0 0.0
    %753 = vmatprep.subr.mxu0 0.0
    %754 = vmatpush2.xpose.msra.mxu0 0.0
    %755 = vmatprep.subr.mxu0 0.0
    %756 = vmatpush2.xpose.msra.mxu0 0.0
    %757 = vmatprep.mubr.f32.mxu0 0.0
    %758 = vmatmul.mubr.f32.gmra.mxu0 %v689
    %v759 = vpop.f32.mrf.mxu0
    %v760 = vadd.f32 %v457, %v759
    %v761 = vpop.f32.mrf.mxu0
    %762 = vdwg.mxu0
    %vm763 = vcmask 64512
    %v764 = vsel %vm763, %v532, -inf
    %765 = vmax.xlane.f32.xlu0 %v764
    %v766 = vpop.xlane.xlu0 %765
    %v767 = vsel %vm763, %v608, -inf
    %768 = vmax.xlane.f32.xlu0 %v767
    %v769 = vpop.xlane.xlu0 %768
    %v770 = vsel %vm763, %v684, -inf
    %771 = vmax.xlane.f32.xlu0 %v770
    %v772 = vpop.xlane.xlu0 %771
    %v773 = vsel %vm763, %v760, -inf
    %774 = vmax.xlane.f32.xlu0 %v773
    %v775 = vpop.xlane.xlu0 %774
    %v776 = vsub.f32 %v532, %v766
    %v777 = vsub.f32 %v608, %v769
    %v778 = vsub.f32 %v684, %v772
    %v779 = vsub.f32 %v760, %v775
    %v780 = vmul.f32 %v776, 1.442695
    %v781 = vpow.pop %v780
    %v782 = vmul.f32 %v777, 1.442695
    %v783 = vpow.pop %v782
    %v784 = vmul.f32 %v778, 1.442695
    %v785 = vpow.pop %v784
    %v786 = vmul.f32 %v779, 1.442695
    %v787 = vpow.pop %v786
    %v788 = vsel %vm763, %v781, 0.0
    %789 = vadd.xlane.f32.xlu0 %v788
    %v790 = vpop.xlane.xlu0 %789
    %v791 = vsel %vm763, %v783, 0.0
    %792 = vadd.xlane.f32.xlu0 %v791
    %v793 = vpop.xlane.xlu0 %792
    %v794 = vsel %vm763, %v785, 0.0
    %795 = vadd.xlane.f32.xlu0 %v794
    %v796 = vpop.xlane.xlu0 %795
    %v797 = vsel %vm763, %v787, 0.0
    %798 = vadd.xlane.f32.xlu0 %v797
    %v799 = vpop.xlane.xlu0 %798
    %v800 = vrcp.pop %v790
    %v801 = vrcp.pop %v793
    %v802 = vrcp.pop %v796
    %v803 = vrcp.pop %v799
    %v804 = vmul.f32 %v781, %v800
    %v805 = vmul.f32 %v783, %v801
    %v806 = vmul.f32 %v785, %v802
    %v807 = vmul.f32 %v787, %v803
    %808 = vrot.lane.b32.xlu0 %v422, 64
    %v809 = vpop.permute.xlu0 %808
    %v812 = vsel %vm763, %v804, 0
    %814 = vmatprep.subr.mxu0 0.0
    %815 = vmatpush1.msra.mxu0 0.0
    %816 = vmatprep.subr.mxu0 0.0
    %817 = vmatpush1.msra.mxu0 0.0
    %818 = vmatprep.subr.mxu0 0.0
    %819 = vmatpush1.msra.mxu0 0.0
    %820 = vmatprep.subr.mxu0 0.0
    %821 = vmatpush1.msra.mxu0 0.0
    %822 = vmatprep.subr.mxu0 0.0
    %823 = vmatpush1.msra.mxu0 0.0
    %824 = vmatprep.subr.mxu0 0.0
    %825 = vmatpush1.msra.mxu0 0.0
    %826 = vmatprep.subr.mxu0 0.0
    %827 = vmatpush1.msra.mxu0 0.0
    %828 = vmatprep.subr.mxu0 0.0
    %829 = vmatpush1.msra.mxu0 0.0
    %830 = vmatprep.subr.mxu0 0.0
    %831 = vmatpush1.msra.mxu0 0.0
    %832 = vmatprep.subr.mxu0 0.0
    %833 = vmatpush1.msra.mxu0 0.0
    %834 = vmatprep.subr.mxu0 0.0
    %835 = vmatpush1.msra.mxu0 0.0
    %836 = vmatprep.subr.mxu0 0.0
    %837 = vmatpush1.msra.mxu0 0.0
    %838 = vmatprep.subr.mxu0 0.0
    %839 = vmatpush1.msra.mxu0 0.0
    %840 = vmatprep.subr.mxu0 0.0
    %841 = vmatpush1.msra.mxu0 0.0
    %842 = vmatprep.subr.mxu0 0.0
    %843 = vmatpush1.msra.mxu0 0.0
    %844 = vmatprep.subr.mxu0 0.0
    %845 = vmatpush1.msra.mxu0 %v809
    %846 = vmatprep.subr.mxu0 0.0
    %847 = vmatpush2.msra.mxu0 0.0
    %848 = vmatprep.subr.mxu0 0.0
    %849 = vmatpush2.msra.mxu0 0.0
    %850 = vmatprep.subr.mxu0 0.0
    %851 = vmatpush2.msra.mxu0 0.0
    %852 = vmatprep.subr.mxu0 0.0
    %853 = vmatpush2.msra.mxu0 0.0
    %854 = vmatprep.subr.mxu0 0.0
    %855 = vmatpush2.msra.mxu0 0.0
    %856 = vmatprep.subr.mxu0 0.0
    %857 = vmatpush2.msra.mxu0 0.0
    %858 = vmatprep.subr.mxu0 0.0
    %859 = vmatpush2.msra.mxu0 0.0
    %860 = vmatprep.subr.mxu0 0.0
    %861 = vmatpush2.msra.mxu0 0.0
    %862 = vmatprep.subr.mxu0 0.0
    %863 = vmatpush2.msra.mxu0 0.0
    %864 = vmatprep.subr.mxu0 0.0
    %865 = vmatpush2.msra.mxu0 0.0
    %866 = vmatprep.subr.mxu0 0.0
    %867 = vmatpush2.msra.mxu0 0.0
    %868 = vmatprep.subr.mxu0 0.0
    %869 = vmatpush2.msra.mxu0 0.0
    %870 = vmatprep.subr.mxu0 0.0
    %871 = vmatpush2.msra.mxu0 0.0
    %872 = vmatprep.subr.mxu0 0.0
    %873 = vmatpush2.msra.mxu0 0.0
    %874 = vmatprep.subr.mxu0 0.0
    %875 = vmatpush2.msra.mxu0 0.0
    %876 = vmatprep.subr.mxu0 0.0
    %877 = vmatpush2.msra.mxu0 0.0
    %878 = vmatprep.mubr.f32.mxu0 0.0
    %879 = vmatmul.mubr.f32.gmra.mxu0 %v812
    %v880 = vpop.f32.mrf.mxu0
    %v881 = vadd.f32 0.0, %v880
    %v882 = vpop.f32.mrf.mxu0
    %883 = vdwg.mxu0
    %884 = vrot.lane.b32.xlu0 %v427, 64
    %v885 = vpop.permute.xlu0 %884
    %v888 = vsel %vm763, %v805, 0
    %890 = vmatprep.subr.mxu0 0.0
    %891 = vmatpush1.msra.mxu0 0.0
    %892 = vmatprep.subr.mxu0 0.0
    %893 = vmatpush1.msra.mxu0 0.0
    %894 = vmatprep.subr.mxu0 0.0
    %895 = vmatpush1.msra.mxu0 0.0
    %896 = vmatprep.subr.mxu0 0.0
    %897 = vmatpush1.msra.mxu0 0.0
    %898 = vmatprep.subr.mxu0 0.0
    %899 = vmatpush1.msra.mxu0 0.0
    %900 = vmatprep.subr.mxu0 0.0
    %901 = vmatpush1.msra.mxu0 0.0
    %902 = vmatprep.subr.mxu0 0.0
    %903 = vmatpush1.msra.mxu0 0.0
    %904 = vmatprep.subr.mxu0 0.0
    %905 = vmatpush1.msra.mxu0 0.0
    %906 = vmatprep.subr.mxu0 0.0
    %907 = vmatpush1.msra.mxu0 0.0
    %908 = vmatprep.subr.mxu0 0.0
    %909 = vmatpush1.msra.mxu0 0.0
    %910 = vmatprep.subr.mxu0 0.0
    %911 = vmatpush1.msra.mxu0 0.0
    %912 = vmatprep.subr.mxu0 0.0
    %913 = vmatpush1.msra.mxu0 0.0
    %914 = vmatprep.subr.mxu0 0.0
    %915 = vmatpush1.msra.mxu0 0.0
    %916 = vmatprep.subr.mxu0 0.0
    %917 = vmatpush1.msra.mxu0 0.0
    %918 = vmatprep.subr.mxu0 0.0
    %919 = vmatpush1.msra.mxu0 0.0
    %920 = vmatprep.subr.mxu0 0.0
    %921 = vmatpush1.msra.mxu0 %v885
    %922 = vmatprep.subr.mxu0 0.0
    %923 = vmatpush2.msra.mxu0 0.0
    %924 = vmatprep.subr.mxu0 0.0
    %925 = vmatpush2.msra.mxu0 0.0
    %926 = vmatprep.subr.mxu0 0.0
    %927 = vmatpush2.msra.mxu0 0.0
    %928 = vmatprep.subr.mxu0 0.0
    %929 = vmatpush2.msra.mxu0 0.0
    %930 = vmatprep.subr.mxu0 0.0
    %931 = vmatpush2.msra.mxu0 0.0
    %932 = vmatprep.subr.mxu0 0.0
    %933 = vmatpush2.msra.mxu0 0.0
    %934 = vmatprep.subr.mxu0 0.0
    %935 = vmatpush2.msra.mxu0 0.0
    %936 = vmatprep.subr.mxu0 0.0
    %937 = vmatpush2.msra.mxu0 0.0
    %938 = vmatprep.subr.mxu0 0.0
    %939 = vmatpush2.msra.mxu0 0.0
    %940 = vmatprep.subr.mxu0 0.0
    %941 = vmatpush2.msra.mxu0 0.0
    %942 = vmatprep.subr.mxu0 0.0
    %943 = vmatpush2.msra.mxu0 0.0
    %944 = vmatprep.subr.mxu0 0.0
    %945 = vmatpush2.msra.mxu0 0.0
    %946 = vmatprep.subr.mxu0 0.0
    %947 = vmatpush2.msra.mxu0 0.0
    %948 = vmatprep.subr.mxu0 0.0
    %949 = vmatpush2.msra.mxu0 0.0
    %950 = vmatprep.subr.mxu0 0.0
    %951 = vmatpush2.msra.mxu0 0.0
    %952 = vmatprep.subr.mxu0 0.0
    %953 = vmatpush2.msra.mxu0 0.0
    %954 = vmatprep.mubr.f32.mxu0 0.0
    %955 = vmatmul.mubr.f32.gmra.mxu0 %v888
    %v956 = vpop.f32.mrf.mxu0
    %v957 = vadd.f32 0.0, %v956
    %v958 = vpop.f32.mrf.mxu0
    %959 = vdwg.mxu0
    %960 = vrot.lane.b32.xlu0 %v454, 64
    %v961 = vpop.permute.xlu0 %960
    %v964 = vsel %vm763, %v806, 0
    %966 = vmatprep.subr.mxu0 0.0
    %967 = vmatpush1.msra.mxu0 0.0
    %968 = vmatprep.subr.mxu0 0.0
    %969 = vmatpush1.msra.mxu0 0.0
    %970 = vmatprep.subr.mxu0 0.0
    %971 = vmatpush1.msra.mxu0 0.0
    %972 = vmatprep.subr.mxu0 0.0
    %973 = vmatpush1.msra.mxu0 0.0
    %974 = vmatprep.subr.mxu0 0.0
    %975 = vmatpush1.msra.mxu0 0.0
    %976 = vmatprep.subr.mxu0 0.0
    %977 = vmatpush1.msra.mxu0 0.0
    %978 = vmatprep.subr.mxu0 0.0
    %979 = vmatpush1.msra.mxu0 0.0
    %980 = vmatprep.subr.mxu0 0.0
    %981 = vmatpush1.msra.mxu0 0.0
    %982 = vmatprep.subr.mxu0 0.0
    %983 = vmatpush1.msra.mxu0 0.0
    %984 = vmatprep.subr.mxu0 0.0
    %985 = vmatpush1.msra.mxu0 0.0
    %986 = vmatprep.subr.mxu0 0.0
    %987 = vmatpush1.msra.mxu0 0.0
    %988 = vmatprep.subr.mxu0 0.0
    %989 = vmatpush1.msra.mxu0 0.0
    %990 = vmatprep.subr.mxu0 0.0
    %991 = vmatpush1.msra.mxu0 0.0
    %992 = vmatprep.subr.mxu0 0.0
    %993 = vmatpush1.msra.mxu0 0.0
    %994 = vmatprep.subr.mxu0 0.0
    %995 = vmatpush1.msra.mxu0 0.0
    %996 = vmatprep.subr.mxu0 0.0
    %997 = vmatpush1.msra.mxu0 %v961
    %998 = vmatprep.subr.mxu0 0.0
    %999 = vmatpush2.msra.mxu0 0.0
    %1000 = vmatprep.subr.mxu0 0.0
    %1001 = vmatpush2.msra.mxu0 0.0
    %1002 = vmatprep.subr.mxu0 0.0
    %1003 = vmatpush2.msra.mxu0 0.0
    %1004 = vmatprep.subr.mxu0 0.0
    %1005 = vmatpush2.msra.mxu0 0.0
    %1006 = vmatprep.subr.mxu0 0.0
    %1007 = vmatpush2.msra.mxu0 0.0
    %1008 = vmatprep.subr.mxu0 0.0
    %1009 = vmatpush2.msra.mxu0 0.0
    %1010 = vmatprep.subr.mxu0 0.0
    %1011 = vmatpush2.msra.mxu0 0.0
    %1012 = vmatprep.subr.mxu0 0.0
    %1013 = vmatpush2.msra.mxu0 0.0
    %1014 = vmatprep.subr.mxu0 0.0
    %1015 = vmatpush2.msra.mxu0 0.0
    %1016 = vmatprep.subr.mxu0 0.0
    %1017 = vmatpush2.msra.mxu0 0.0
    %1018 = vmatprep.subr.mxu0 0.0
    %1019 = vmatpush2.msra.mxu0 0.0
    %1020 = vmatprep.subr.mxu0 0.0
    %1021 = vmatpush2.msra.mxu0 0.0
    %1022 = vmatprep.subr.mxu0 0.0
    %1023 = vmatpush2.msra.mxu0 0.0
    %1024 = vmatprep.subr.mxu0 0.0
    %1025 = vmatpush2.msra.mxu0 0.0
    %1026 = vmatprep.subr.mxu0 0.0
    %1027 = vmatpush2.msra.mxu0 0.0
    %1028 = vmatprep.subr.mxu0 0.0
    %1029 = vmatpush2.msra.mxu0 0.0
    %1030 = vmatprep.mubr.f32.mxu0 0.0
    %1031 = vmatmul.mubr.f32.gmra.mxu0 %v964
    %v1032 = vpop.f32.mrf.mxu0
    %v1033 = vadd.f32 0.0, %v1032
    %v1034 = vpop.f32.mrf.mxu0
    %1035 = vdwg.mxu0
    %1036 = vrot.lane.b32.xlu0 %v456, 64
    %v1037 = vpop.permute.xlu0 %1036
    %v1040 = vsel %vm763, %v807, 0
    %1042 = vmatprep.subr.mxu0 0.0
    %1043 = vmatpush1.msra.mxu0 0.0
    %1044 = vmatprep.subr.mxu0 0.0
    %1045 = vmatpush1.msra.mxu0 0.0
    %1046 = vmatprep.subr.mxu0 0.0
    %1047 = vmatpush1.msra.mxu0 0.0
    %1048 = vmatprep.subr.mxu0 0.0
    %1049 = vmatpush1.msra.mxu0 0.0
    %1050 = vmatprep.subr.mxu0 0.0
    %1051 = vmatpush1.msra.mxu0 0.0
    %1052 = vmatprep.subr.mxu0 0.0
    %1053 = vmatpush1.msra.mxu0 0.0
    %1054 = vmatprep.subr.mxu0 0.0
    %1055 = vmatpush1.msra.mxu0 0.0
    %1056 = vmatprep.subr.mxu0 0.0
    %1057 = vmatpush1.msra.mxu0 0.0
    %1058 = vmatprep.subr.mxu0 0.0
    %1059 = vmatpush1.msra.mxu0 0.0
    %1060 = vmatprep.subr.mxu0 0.0
    %1061 = vmatpush1.msra.mxu0 0.0
    %1062 = vmatprep.subr.mxu0 0.0
    %1063 = vmatpush1.msra.mxu0 0.0
    %1064 = vmatprep.subr.mxu0 0.0
    %1065 = vmatpush1.msra.mxu0 0.0
    %1066 = vmatprep.subr.mxu0 0.0
    %1067 = vmatpush1.msra.mxu0 0.0
    %1068 = vmatprep.subr.mxu0 0.0
    %1069 = vmatpush1.msra.mxu0 0.0
    %1070 = vmatprep.subr.mxu0 0.0
    %1071 = vmatpush1.msra.mxu0 0.0
    %1072 = vmatprep.subr.mxu0 0.0
    %1073 = vmatpush1.msra.mxu0 %v1037
    %1074 = vmatprep.subr.mxu0 0.0
    %1075 = vmatpush2.msra.mxu0 0.0
    %1076 = vmatprep.subr.mxu0 0.0
    %1077 = vmatpush2.msra.mxu0 0.0
    %1078 = vmatprep.subr.mxu0 0.0
    %1079 = vmatpush2.msra.mxu0 0.0
    %1080 = vmatprep.subr.mxu0 0.0
    %1081 = vmatpush2.msra.mxu0 0.0
    %1082 = vmatprep.subr.mxu0 0.0
    %1083 = vmatpush2.msra.mxu0 0.0
    %1084 = vmatprep.subr.mxu0 0.0
    %1085 = vmatpush2.msra.mxu0 0.0
    %1086 = vmatprep.subr.mxu0 0.0
    %1087 = vmatpush2.msra.mxu0 0.0
    %1088 = vmatprep.subr.mxu0 0.0
    %1089 = vmatpush2.msra.mxu0 0.0
    %1090 = vmatprep.subr.mxu0 0.0
    %1091 = vmatpush2.msra.mxu0 0.0
    %1092 = vmatprep.subr.mxu0 0.0
    %1093 = vmatpush2.msra.mxu0 0.0
    %1094 = vmatprep.subr.mxu0 0.0
    %1095 = vmatpush2.msra.mxu0 0.0
    %1096 = vmatprep.subr.mxu0 0.0
    %1097 = vmatpush2.msra.mxu0 0.0
    %1098 = vmatprep.subr.mxu0 0.0
    %1099 = vmatpush2.msra.mxu0 0.0
    %1100 = vmatprep.subr.mxu0 0.0
    %1101 = vmatpush2.msra.mxu0 0.0
    %1102 = vmatprep.subr.mxu0 0.0
    %1103 = vmatpush2.msra.mxu0 0.0
    %1104 = vmatprep.subr.mxu0 0.0
    %1105 = vmatpush2.msra.mxu0 0.0
    %1106 = vmatprep.mubr.f32.mxu0 0.0
    %1107 = vmatmul.mubr.f32.gmra.mxu0 %v1040
    %v1108 = vpop.f32.mrf.mxu0
    %v1109 = vadd.f32 0.0, %v1108
    %v1110 = vpop.f32.mrf.mxu0
    %1111 = vdwg.mxu0
    %1114 = vrot.lane.b32.xlu0 %v1033, 16
    %v1115 = vpop.permute.xlu0 %1114
    %1116 = vrot.lane.b32.xlu0 %v1109, 16
    %v1117 = vpop.permute.xlu0 %1116
    %v1120 = vsel %vm460, %v881, %v1115
    %v1121 = vsel %vm460, %v957, %v1117
    %v1122 = vld [vmem:[#allocation2 + $0x48] sm:$0xff]
    %v1123 = vld [vmem:[#allocation2 + $0x50] sm:$0xff]
    %v1124 = vld [vmem:[#allocation2 + $0x58] sm:$0xff]
    %v1125 = vld [vmem:[#allocation2 + $0x60] sm:$0xff]
    %v1126 = vld [vmem:[#allocation2 + $0x240] sm:$0x1]
    %v1127 = vlaneseq
    %v1128 = vshrl.u32 %v1127, 7
    %v1129 = vsub.s32 0, %v1128
    %v1130 = vrot.slane %v1126, %v1129
    %v1132 = vsel %vm119, %v1120, 0
    %v1135 = vsel %vm119, %v1121, 0
    %1137 = vmatprep.subr.mxu0 0.0
    %1138 = vmatpush1.msra.mxu0 0.0
    %1139 = vmatprep.subr.mxu0 0.0
    %1140 = vmatpush1.msra.mxu0 0.0
    %1141 = vmatprep.subr.mxu0 0.0
    %1142 = vmatpush1.msra.mxu0 0.0
    %1143 = vmatprep.subr.mxu0 0.0
    %1144 = vmatpush1.msra.mxu0 0.0
    %1145 = vmatprep.subr.mxu0 0.0
    %1146 = vmatpush1.msra.mxu0 0.0
    %1147 = vmatprep.subr.mxu0 0.0
    %1148 = vmatpush1.msra.mxu0 0.0
    %1149 = vmatprep.subr.mxu0 0.0
    %1150 = vmatpush1.msra.mxu0 0.0
    %1151 = vmatprep.subr.mxu0 0.0
    %1152 = vmatpush1.msra.mxu0 0.0
    %1153 = vmatprep.subr.mxu0 0.0
    %1154 = vmatpush1.msra.mxu0 0.0
    %1155 = vmatprep.subr.mxu0 0.0
    %1156 = vmatpush1.msra.mxu0 0.0
    %1157 = vmatprep.subr.mxu0 0.0
    %1158 = vmatpush1.msra.mxu0 0.0
    %1159 = vmatprep.subr.mxu0 0.0
    %1160 = vmatpush1.msra.mxu0 0.0
    %1161 = vmatprep.subr.mxu0 0.0
    %1162 = vmatpush1.msra.mxu0 %v1125
    %1163 = vmatprep.subr.mxu0 0.0
    %1164 = vmatpush1.msra.mxu0 %v1124
    %1165 = vmatprep.subr.mxu0 0.0
    %1166 = vmatpush1.msra.mxu0 %v1123
    %1167 = vmatprep.subr.mxu0 0.0
    %1168 = vmatpush1.msra.mxu0 %v1122
    %1169 = vmatprep.subr.mxu0 0.0
    %1170 = vmatpush2.msra.mxu0 0.0
    %1171 = vmatprep.subr.mxu0 0.0
    %1172 = vmatpush2.msra.mxu0 0.0
    %1173 = vmatprep.subr.mxu0 0.0
    %1174 = vmatpush2.msra.mxu0 0.0
    %1175 = vmatprep.subr.mxu0 0.0
    %1176 = vmatpush2.msra.mxu0 0.0
    %1177 = vmatprep.subr.mxu0 0.0
    %1178 = vmatpush2.msra.mxu0 0.0
    %1179 = vmatprep.subr.mxu0 0.0
    %1180 = vmatpush2.msra.mxu0 0.0
    %1181 = vmatprep.subr.mxu0 0.0
    %1182 = vmatpush2.msra.mxu0 0.0
    %1183 = vmatprep.subr.mxu0 0.0
    %1184 = vmatpush2.msra.mxu0 0.0
    %1185 = vmatprep.subr.mxu0 0.0
    %1186 = vmatpush2.msra.mxu0 0.0
    %1187 = vmatprep.subr.mxu0 0.0
    %1188 = vmatpush2.msra.mxu0 0.0
    %1189 = vmatprep.subr.mxu0 0.0
    %1190 = vmatpush2.msra.mxu0 0.0
    %1191 = vmatprep.subr.mxu0 0.0
    %1192 = vmatpush2.msra.mxu0 0.0
    %1193 = vmatprep.subr.mxu0 0.0
    %1194 = vmatpush2.msra.mxu0 0.0
    %1195 = vmatprep.subr.mxu0 0.0
    %1196 = vmatpush2.msra.mxu0 0.0
    %1197 = vmatprep.subr.mxu0 0.0
    %1198 = vmatpush2.msra.mxu0 0.0
    %1199 = vmatprep.subr.mxu0 0.0
    %1200 = vmatpush2.msra.mxu0 0.0
    %1201 = vmatprep.mubr.f32.mxu0 0.0
    %1202 = vmatmul.mubr.f32.gmra.mxu0 %v1132
    %v1203 = vpop.f32.mrf.mxu0
    %v1204 = vadd.f32 %v1130, %v1203
    %v1205 = vpop.f32.mrf.mxu0
    %1206 = vmatprep.mubr.f32.mxu0 0.0
    %1207 = vmatmul.mubr.f32.gmra.mxu0 %v1135
    %v1208 = vpop.f32.mrf.mxu0
    %v1209 = vadd.f32 %v1130, %v1208
    %v1210 = vpop.f32.mrf.mxu0
    %1211 = vdwg.mxu0
    %v1212 = vadd.f32 %v299, %v1204
    %v1213 = vadd.f32 %v300, %v1209
    %v1214 = vld [vmem:[#allocation2 + $0x68] sm:$0xff]
    %v1215 = vld [vmem:[#allocation2 + $0x70] sm:$0xff]
    %v1216 = vld [vmem:[#allocation2 + $0x78] sm:$0xff]
    %v1217 = vld [vmem:[#allocation2 + $0x80] sm:$0xff]
    %v1218 = vld [vmem:[#allocation2 + $0x241] sm:$0x1]
    %v1219 = vlaneseq
    %v1220 = vshrl.u32 %v1219, 7
    %v1221 = vsub.s32 0, %v1220
    %v1222 = vrot.slane %v1218, %v1221
    %v1224 = vsel %vm119, %v1212, 0
    %v1227 = vsel %vm119, %v1213, 0
    %1229 = vmatprep.subr.mxu0 0.0
    %1230 = vmatpush1.msra.mxu0 0.0
    %1231 = vmatprep.subr.mxu0 0.0
    %1232 = vmatpush1.msra.mxu0 0.0
    %1233 = vmatprep.subr.mxu0 0.0
    %1234 = vmatpush1.msra.mxu0 0.0
    %1235 = vmatprep.subr.mxu0 0.0
    %1236 = vmatpush1.msra.mxu0 0.0
    %1237 = vmatprep.subr.mxu0 0.0
    %1238 = vmatpush1.msra.mxu0 0.0
    %1239 = vmatprep.subr.mxu0 0.0
    %1240 = vmatpush1.msra.mxu0 0.0
    %1241 = vmatprep.subr.mxu0 0.0
    %1242 = vmatpush1.msra.mxu0 0.0
    %1243 = vmatprep.subr.mxu0 0.0
    %1244 = vmatpush1.msra.mxu0 0.0
    %1245 = vmatprep.subr.mxu0 0.0
    %1246 = vmatpush1.msra.mxu0 0.0
    %1247 = vmatprep.subr.mxu0 0.0
    %1248 = vmatpush1.msra.mxu0 0.0
    %1249 = vmatprep.subr.mxu0 0.0
    %1250 = vmatpush1.msra.mxu0 0.0
    %1251 = vmatprep.subr.mxu0 0.0
    %1252 = vmatpush1.msra.mxu0 0.0
    %1253 = vmatprep.subr.mxu0 0.0
    %1254 = vmatpush1.msra.mxu0 %v1217
    %1255 = vmatprep.subr.mxu0 0.0
    %1256 = vmatpush1.msra.mxu0 %v1216
    %1257 = vmatprep.subr.mxu0 0.0
    %1258 = vmatpush1.msra.mxu0 %v1215
    %1259 = vmatprep.subr.mxu0 0.0
    %1260 = vmatpush1.msra.mxu0 %v1214
    %1261 = vmatprep.subr.mxu0 0.0
    %1262 = vmatpush2.msra.mxu0 0.0
    %1263 = vmatprep.subr.mxu0 0.0
    %1264 = vmatpush2.msra.mxu0 0.0
    %1265 = vmatprep.subr.mxu0 0.0
    %1266 = vmatpush2.msra.mxu0 0.0
    %1267 = vmatprep.subr.mxu0 0.0
    %1268 = vmatpush2.msra.mxu0 0.0
    %1269 = vmatprep.subr.mxu0 0.0
    %1270 = vmatpush2.msra.mxu0 0.0
    %1271 = vmatprep.subr.mxu0 0.0
    %1272 = vmatpush2.msra.mxu0 0.0
    %1273 = vmatprep.subr.mxu0 0.0
    %1274 = vmatpush2.msra.mxu0 0.0
    %1275 = vmatprep.subr.mxu0 0.0
    %1276 = vmatpush2.msra.mxu0 0.0
    %1277 = vmatprep.subr.mxu0 0.0
    %1278 = vmatpush2.msra.mxu0 0.0
    %1279 = vmatprep.subr.mxu0 0.0
    %1280 = vmatpush2.msra.mxu0 0.0
    %1281 = vmatprep.subr.mxu0 0.0
    %1282 = vmatpush2.msra.mxu0 0.0
    %1283 = vmatprep.subr.mxu0 0.0
    %1284 = vmatpush2.msra.mxu0 0.0
    %1285 = vmatprep.subr.mxu0 0.0
    %1286 = vmatpush2.msra.mxu0 0.0
    %1287 = vmatprep.subr.mxu0 0.0
    %1288 = vmatpush2.msra.mxu0 0.0
    %1289 = vmatprep.subr.mxu0 0.0
    %1290 = vmatpush2.msra.mxu0 0.0
    %1291 = vmatprep.subr.mxu0 0.0
    %1292 = vmatpush2.msra.mxu0 0.0
    %1293 = vmatprep.mubr.f32.mxu0 0.0
    %1294 = vmatmul.mubr.f32.gmra.mxu0 %v1224
    %v1295 = vpop.f32.mrf.mxu0
    %v1296 = vadd.f32 %v1222, %v1295
    %v1297 = vpop.f32.mrf.mxu0
    %1298 = vmatprep.mubr.f32.mxu0 0.0
    %1299 = vmatmul.mubr.f32.gmra.mxu0 %v1227
    %v1300 = vpop.f32.mrf.mxu0
    %v1301 = vadd.f32 %v1222, %v1300
    %v1302 = vpop.f32.mrf.mxu0
    %1303 = vdwg.mxu0
    %v1304 = vld [vmem:[#allocation2 + $0x88] sm:$0xff]
    %v1305 = vld [vmem:[#allocation2 + $0x90] sm:$0xff]
    %v1306 = vld [vmem:[#allocation2 + $0x98] sm:$0xff]
    %v1307 = vld [vmem:[#allocation2 + $0xa0] sm:$0xff]
    %v1309 = vsel %vm119, 0.0, 0
    %1311 = vmatprep.subr.mxu0 0.0
    %1312 = vmatpush1.msra.mxu0 0.0
    %1313 = vmatprep.subr.mxu0 0.0
    %1314 = vmatpush1.msra.mxu0 0.0
    %1315 = vmatprep.subr.mxu0 0.0
    %1316 = vmatpush1.msra.mxu0 0.0
    %1317 = vmatprep.subr.mxu0 0.0
    %1318 = vmatpush1.msra.mxu0 0.0
    %1319 = vmatprep.subr.mxu0 0.0
    %1320 = vmatpush1.msra.mxu0 0.0
    %1321 = vmatprep.subr.mxu0 0.0
    %1322 = vmatpush1.msra.mxu0 0.0
    %1323 = vmatprep.subr.mxu0 0.0
    %1324 = vmatpush1.msra.mxu0 0.0
    %1325 = vmatprep.subr.mxu0 0.0
    %1326 = vmatpush1.msra.mxu0 0.0
    %1327 = vmatprep.subr.mxu0 0.0
    %1328 = vmatpush1.msra.mxu0 0.0
    %1329 = vmatprep.subr.mxu0 0.0
    %1330 = vmatpush1.msra.mxu0 0.0
    %1331 = vmatprep.subr.mxu0 0.0
    %1332 = vmatpush1.msra.mxu0 0.0
    %1333 = vmatprep.subr.mxu0 0.0
    %1334 = vmatpush1.msra.mxu0 0.0
    %1335 = vmatprep.subr.mxu0 0.0
    %1336 = vmatpush1.msra.mxu0 %v1307
    %1337 = vmatprep.subr.mxu0 0.0
    %1338 = vmatpush1.msra.mxu0 %v1306
    %1339 = vmatprep.subr.mxu0 0.0
    %1340 = vmatpush1.msra.mxu0 %v1305
    %1341 = vmatprep.subr.mxu0 0.0
    %1342 = vmatpush1.msra.mxu0 %v1304
    %1343 = vmatprep.subr.mxu0 0.0
    %1344 = vmatpush2.msra.mxu0 0.0
    %1345 = vmatprep.subr.mxu0 0.0
    %1346 = vmatpush2.msra.mxu0 0.0
    %1347 = vmatprep.subr.mxu0 0.0
    %1348 = vmatpush2.msra.mxu0 0.0
    %1349 = vmatprep.subr.mxu0 0.0
    %1350 = vmatpush2.msra.mxu0 0.0
    %1351 = vmatprep.subr.mxu0 0.0
    %1352 = vmatpush2.msra.mxu0 0.0
    %1353 = vmatprep.subr.mxu0 0.0
    %1354 = vmatpush2.msra.mxu0 0.0
    %1355 = vmatprep.subr.mxu0 0.0
    %1356 = vmatpush2.msra.mxu0 0.0
    %1357 = vmatprep.subr.mxu0 0.0
    %1358 = vmatpush2.msra.mxu0 0.0
    %1359 = vmatprep.subr.mxu0 0.0
    %1360 = vmatpush2.msra.mxu0 0.0
    %1361 = vmatprep.subr.mxu0 0.0
    %1362 = vmatpush2.msra.mxu0 0.0
    %1363 = vmatprep.subr.mxu0 0.0
    %1364 = vmatpush2.msra.mxu0 0.0
    %1365 = vmatprep.subr.mxu0 0.0
    %1366 = vmatpush2.msra.mxu0 0.0
    %1367 = vmatprep.subr.mxu0 0.0
    %1368 = vmatpush2.msra.mxu0 0.0
    %1369 = vmatprep.subr.mxu0 0.0
    %1370 = vmatpush2.msra.mxu0 0.0
    %1371 = vmatprep.subr.mxu0 0.0
    %1372 = vmatpush2.msra.mxu0 0.0
    %1373 = vmatprep.subr.mxu0 0.0
    %1374 = vmatpush2.msra.mxu0 0.0
    %1375 = vmatprep.mubr.f32.mxu0 0.0
    %1376 = vmatmul.mubr.f32.gmra.mxu0 %v1309
    %v1377 = vpop.f32.mrf.mxu0
    %v1378 = vadd.f32 0.0, %v1377
    %v1379 = vpop.f32.mrf.mxu0
    %1380 = vdwg.mxu0
    %v1382 = vrot.slane %v1378, 1
    %v1385 = vadd.f32 %v1296, %v1378
    %v1386 = vadd.f32 %v1301, %v1382
    %v1387 = vxor.u32 %v1385, 2147483648
    %v1388 = vxor.u32 %v1386, 2147483648
    %v1389 = vmul.f32 %v1387, 1.442695
    %v1390 = vpow.pop %v1389
    %v1391 = vmul.f32 %v1388, 1.442695
    %v1392 = vpow.pop %v1391
    %v1393 = vadd.f32 %v1390, 1.0
    %v1394 = vadd.f32 %v1392, 1.0
    %v1395 = vrcp.pop %v1393
    %v1396 = vmul.f32 1.0, %v1395
    %v1397 = vrcp.pop %v1394
    %v1398 = vmul.f32 1.0, %v1397
    %v1399 = vtanh.pop %v1385
    %v1400 = vtanh.pop %v1386
    %v1401 = vmul.f32 %v1396, 0.0
    %v1402 = vmul.f32 %v1398, 0.0
    %1405 = vrot.lane.b32.xlu0 %v1399, 64
    %v1406 = vpop.permute.xlu0 %1405
    %1407 = vrot.lane.b32.xlu0 %v1400, 64
    %v1408 = vpop.permute.xlu0 %1407
    %v1411 = vmul.f32 %v1396, %v1406
    %v1412 = vmul.f32 %v1398, %v1408
    %1415 = vrot.lane.b32.xlu0 %v1411, 32
    %v1416 = vpop.permute.xlu0 %1415
    %1417 = vrot.lane.b32.xlu0 %v1412, 32
    %v1418 = vpop.permute.xlu0 %1417
    %v1421 = vadd.f32 %v1401, %v1416
    %v1422 = vadd.f32 %v1402, %v1418
    %v1423 = vtanh.pop %v1421
    %v1424 = vtanh.pop %v1422
    %1427 = vrot.lane.b32.xlu0 %v1423, 64
    %v1428 = vpop.permute.xlu0 %1427
    %1429 = vrot.lane.b32.xlu0 %v1424, 64
    %v1430 = vpop.permute.xlu0 %1429
    %v1433 = vmul.f32 %v1396, %v1428
    %v1434 = vmul.f32 %v1398, %v1430
    %v1437 = vrot.slane %v1434, 7
    %vm1438 = vcmask 1041409
    %v1439 = vsel %vm1438, %v1437, %v1433
    %1440 = vrot.lane.b32.xlu0 %v1439, 32
    %v1441 = vpop.permute.xlu0 %1440
    %v1442 = vsel %vm119, %v1441, 0
    %1444 = vmatprep.subr.mxu0 0.0
    %1445 = vmatpush1.msra.mxu0 0.0
    %1446 = vmatprep.subr.mxu0 0.0
    %1447 = vmatpush1.msra.mxu0 0.0
    %1448 = vmatprep.subr.mxu0 0.0
    %1449 = vmatpush1.msra.mxu0 0.0
    %1450 = vmatprep.subr.mxu0 0.0
    %1451 = vmatpush1.msra.mxu0 0.0
    %1452 = vmatprep.subr.mxu0 0.0
    %1453 = vmatpush1.msra.mxu0 0.0
    %1454 = vmatprep.subr.mxu0 0.0
    %1455 = vmatpush1.msra.mxu0 0.0
    %1456 = vmatprep.subr.mxu0 0.0
    %1457 = vmatpush1.msra.mxu0 0.0
    %1458 = vmatprep.subr.mxu0 0.0
    %1459 = vmatpush1.msra.mxu0 0.0
    %1460 = vmatprep.subr.mxu0 0.0
    %1461 = vmatpush1.msra.mxu0 0.0
    %1462 = vmatprep.subr.mxu0 0.0
    %1463 = vmatpush1.msra.mxu0 0.0
    %1464 = vmatprep.subr.mxu0 0.0
    %1465 = vmatpush1.msra.mxu0 0.0
    %1466 = vmatprep.subr.mxu0 0.0
    %1467 = vmatpush1.msra.mxu0 0.0
    %1468 = vmatprep.subr.mxu0 0.0
    %1469 = vmatpush1.msra.mxu0 %v1307
    %1470 = vmatprep.subr.mxu0 0.0
    %1471 = vmatpush1.msra.mxu0 %v1306
    %1472 = vmatprep.subr.mxu0 0.0
    %1473 = vmatpush1.msra.mxu0 %v1305
    %1474 = vmatprep.subr.mxu0 0.0
    %1475 = vmatpush1.msra.mxu0 %v1304
    %1476 = vmatprep.subr.mxu0 0.0
    %1477 = vmatpush2.msra.mxu0 0.0
    %1478 = vmatprep.subr.mxu0 0.0
    %1479 = vmatpush2.msra.mxu0 0.0
    %1480 = vmatprep.subr.mxu0 0.0
    %1481 = vmatpush2.msra.mxu0 0.0
    %1482 = vmatprep.subr.mxu0 0.0
    %1483 = vmatpush2.msra.mxu0 0.0
    %1484 = vmatprep.subr.mxu0 0.0
    %1485 = vmatpush2.msra.mxu0 0.0
    %1486 = vmatprep.subr.mxu0 0.0
    %1487 = vmatpush2.msra.mxu0 0.0
    %1488 = vmatprep.subr.mxu0 0.0
    %1489 = vmatpush2.msra.mxu0 0.0
    %1490 = vmatprep.subr.mxu0 0.0
    %1491 = vmatpush2.msra.mxu0 0.0
    %1492 = vmatprep.subr.mxu0 0.0
    %1493 = vmatpush2.msra.mxu0 0.0
    %1494 = vmatprep.subr.mxu0 0.0
    %1495 = vmatpush2.msra.mxu0 0.0
    %1496 = vmatprep.subr.mxu0 0.0
    %1497 = vmatpush2.msra.mxu0 0.0
    %1498 = vmatprep.subr.mxu0 0.0
    %1499 = vmatpush2.msra.mxu0 0.0
    %1500 = vmatprep.subr.mxu0 0.0
    %1501 = vmatpush2.msra.mxu0 0.0
    %1502 = vmatprep.subr.mxu0 0.0
    %1503 = vmatpush2.msra.mxu0 0.0
    %1504 = vmatprep.subr.mxu0 0.0
    %1505 = vmatpush2.msra.mxu0 0.0
    %1506 = vmatprep.subr.mxu0 0.0
    %1507 = vmatpush2.msra.mxu0 0.0
    %1508 = vmatprep.mubr.f32.mxu0 0.0
    %1509 = vmatmul.mubr.f32.gmra.mxu0 %v1442
    %v1510 = vpop.f32.mrf.mxu0
    %v1511 = vadd.f32 0.0, %v1510
    %v1512 = vpop.f32.mrf.mxu0
    %1513 = vdwg.mxu0
    %v1515 = vrot.slane %v1511, 7
    %v1518 = vadd.f32 %v1296, %v1515
    %v1519 = vadd.f32 %v1301, %v1511
    %v1520 = vxor.u32 %v1518, 2147483648
    %v1521 = vxor.u32 %v1519, 2147483648
    %v1522 = vmul.f32 %v1520, 1.442695
    %v1523 = vpow.pop %v1522
    %v1524 = vmul.f32 %v1521, 1.442695
    %v1525 = vpow.pop %v1524
    %v1526 = vadd.f32 %v1523, 1.0
    %v1527 = vadd.f32 %v1525, 1.0
    %v1528 = vrcp.pop %v1526
    %v1529 = vmul.f32 1.0, %v1528
    %v1530 = vrcp.pop %v1527
    %v1531 = vmul.f32 1.0, %v1530
    %v1532 = vtanh.pop %v1518
    %v1533 = vtanh.pop %v1519
    %v1536 = vrot.slane %v1421, 7
    %v1537 = vrot.slane %v1422, 7
    %v1540 = vmul.f32 %v1529, %v1536
    %v1541 = vmul.f32 %v1531, %v1537
    %1544 = vrot.lane.b32.xlu0 %v1532, 64
    %v1545 = vpop.permute.xlu0 %1544
    %1546 = vrot.lane.b32.xlu0 %v1533, 64
    %v1547 = vpop.permute.xlu0 %1546
    %v1550 = vmul.f32 %v1529, %v1545
    %v1551 = vmul.f32 %v1531, %v1547
    %1554 = vrot.lane.b32.xlu0 %v1550, 32
    %v1555 = vpop.permute.xlu0 %1554
    %1556 = vrot.lane.b32.xlu0 %v1551, 32
    %v1557 = vpop.permute.xlu0 %1556
    %v1560 = vadd.f32 %v1540, %v1555
    %v1561 = vadd.f32 %v1541, %v1557
    %v1562 = vtanh.pop %v1560
    %v1563 = vtanh.pop %v1561
    %1566 = vrot.lane.b32.xlu0 %v1562, 64
    %v1567 = vpop.permute.xlu0 %1566
    %1568 = vrot.lane.b32.xlu0 %v1563, 64
    %v1569 = vpop.permute.xlu0 %1568
    %v1572 = vmul.f32 %v1529, %v1567
    %v1573 = vmul.f32 %v1531, %v1569
    %v1576 = vrot.slane %v1572, 1
    %v1577 = vsel %vm1438, %v1573, %v1576
    %1578 = vrot.lane.b32.xlu0 %v1577, 32
    %v1579 = vpop.permute.xlu0 %1578
    %v1580 = vsel %vm119, %v1579, 0
    %1582 = vmatprep.subr.mxu0 0.0
    %1583 = vmatpush1.msra.mxu0 0.0
    %1584 = vmatprep.subr.mxu0 0.0
    %1585 = vmatpush1.msra.mxu0 0.0
    %1586 = vmatprep.subr.mxu0 0.0
    %1587 = vmatpush1.msra.mxu0 0.0
    %1588 = vmatprep.subr.mxu0 0.0
    %1589 = vmatpush1.msra.mxu0 0.0
    %1590 = vmatprep.subr.mxu0 0.0
    %1591 = vmatpush1.msra.mxu0 0.0
    %1592 = vmatprep.subr.mxu0 0.0
    %1593 = vmatpush1.msra.mxu0 0.0
    %1594 = vmatprep.subr.mxu0 0.0
    %1595 = vmatpush1.msra.mxu0 0.0
    %1596 = vmatprep.subr.mxu0 0.0
    %1597 = vmatpush1.msra.mxu0 0.0
    %1598 = vmatprep.subr.mxu0 0.0
    %1599 = vmatpush1.msra.mxu0 0.0
    %1600 = vmatprep.subr.mxu0 0.0
    %1601 = vmatpush1.msra.mxu0 0.0
    %1602 = vmatprep.subr.mxu0 0.0
    %1603 = vmatpush1.msra.mxu0 0.0
    %1604 = vmatprep.subr.mxu0 0.0
    %1605 = vmatpush1.msra.mxu0 0.0
    %1606 = vmatprep.subr.mxu0 0.0
    %1607 = vmatpush1.msra.mxu0 %v1307
    %1608 = vmatprep.subr.mxu0 0.0
    %1609 = vmatpush1.msra.mxu0 %v1306
    %1610 = vmatprep.subr.mxu0 0.0
    %1611 = vmatpush1.msra.mxu0 %v1305
    %1612 = vmatprep.subr.mxu0 0.0
    %1613 = vmatpush1.msra.mxu0 %v1304
    %1614 = vmatprep.subr.mxu0 0.0
    %1615 = vmatpush2.msra.mxu0 0.0
    %1616 = vmatprep.subr.mxu0 0.0
    %1617 = vmatpush2.msra.mxu0 0.0
    %1618 = vmatprep.subr.mxu0 0.0
    %1619 = vmatpush2.msra.mxu0 0.0
    %1620 = vmatprep.subr.mxu0 0.0
    %1621 = vmatpush2.msra.mxu0 0.0
    %1622 = vmatprep.subr.mxu0 0.0
    %1623 = vmatpush2.msra.mxu0 0.0
    %1624 = vmatprep.subr.mxu0 0.0
    %1625 = vmatpush2.msra.mxu0 0.0
    %1626 = vmatprep.subr.mxu0 0.0
    %1627 = vmatpush2.msra.mxu0 0.0
    %1628 = vmatprep.subr.mxu0 0.0
    %1629 = vmatpush2.msra.mxu0 0.0
    %1630 = vmatprep.subr.mxu0 0.0
    %1631 = vmatpush2.msra.mxu0 0.0
    %1632 = vmatprep.subr.mxu0 0.0
    %1633 = vmatpush2.msra.mxu0 0.0
    %1634 = vmatprep.subr.mxu0 0.0
    %1635 = vmatpush2.msra.mxu0 0.0
    %1636 = vmatprep.subr.mxu0 0.0
    %1637 = vmatpush2.msra.mxu0 0.0
    %1638 = vmatprep.subr.mxu0 0.0
    %1639 = vmatpush2.msra.mxu0 0.0
    %1640 = vmatprep.subr.mxu0 0.0
    %1641 = vmatpush2.msra.mxu0 0.0
    %1642 = vmatprep.subr.mxu0 0.0
    %1643 = vmatpush2.msra.mxu0 0.0
    %1644 = vmatprep.subr.mxu0 0.0
    %1645 = vmatpush2.msra.mxu0 0.0
    %1646 = vmatprep.mubr.f32.mxu0 0.0
    %1647 = vmatmul.mubr.f32.gmra.mxu0 %v1580
    %v1648 = vpop.f32.mrf.mxu0
    %v1649 = vadd.f32 0.0, %v1648
    %v1650 = vpop.f32.mrf.mxu0
    %1651 = vdwg.mxu0
    %v1653 = vrot.slane %v1649, 6
    %v1654 = vrot.slane %v1649, 7
    %v1657 = vadd.f32 %v1296, %v1653
    %v1658 = vadd.f32 %v1301, %v1654
    %v1659 = vxor.u32 %v1657, 2147483648
    %v1660 = vxor.u32 %v1658, 2147483648
    %v1661 = vmul.f32 %v1659, 1.442695
    %v1662 = vpow.pop %v1661
    %v1663 = vmul.f32 %v1660, 1.442695
    %v1664 = vpow.pop %v1663
    %v1665 = vadd.f32 %v1662, 1.0
    %v1666 = vadd.f32 %v1664, 1.0
    %v1667 = vrcp.pop %v1665
    %v1668 = vmul.f32 1.0, %v1667
    %v1669 = vrcp.pop %v1666
    %v1670 = vmul.f32 1.0, %v1669
    %v1671 = vtanh.pop %v1657
    %v1672 = vtanh.pop %v1658
    %v1675 = vrot.slane %v1560, 7
    %v1676 = vrot.slane %v1561, 7
    %v1679 = vmul.f32 %v1668, %v1675
    %v1680 = vmul.f32 %v1670, %v1676
    %1683 = vrot.lane.b32.xlu0 %v1671, 64
    %v1684 = vpop.permute.xlu0 %1683
    %1685 = vrot.lane.b32.xlu0 %v1672, 64
    %v1686 = vpop.permute.xlu0 %1685
    %v1689 = vmul.f32 %v1668, %v1684
    %v1690 = vmul.f32 %v1670, %v1686
    %1693 = vrot.lane.b32.xlu0 %v1689, 32
    %v1694 = vpop.permute.xlu0 %1693
    %1695 = vrot.lane.b32.xlu0 %v1690, 32
    %v1696 = vpop.permute.xlu0 %1695
    %v1699 = vadd.f32 %v1679, %v1694
    %v1700 = vadd.f32 %v1680, %v1696
    %v1701 = vtanh.pop %v1699
    %v1702 = vtanh.pop %v1700
    %1705 = vrot.lane.b32.xlu0 %v1701, 64
    %v1706 = vpop.permute.xlu0 %1705
    %1707 = vrot.lane.b32.xlu0 %v1702, 64
    %v1708 = vpop.permute.xlu0 %1707
    %v1711 = vmul.f32 %v1668, %v1706
    %v1712 = vmul.f32 %v1670, %v1708
    %v1715 = vrot.slane %v1711, 2
    %v1716 = vrot.slane %v1712, 1
    %v1717 = vsel %vm1438, %v1716, %v1715
    %1718 = vrot.lane.b32.xlu0 %v1717, 32
    %v1719 = vpop.permute.xlu0 %1718
    %v1720 = vsel %vm119, %v1719, 0
    %1722 = vmatprep.subr.mxu0 0.0
    %1723 = vmatpush1.msra.mxu0 0.0
    %1724 = vmatprep.subr.mxu0 0.0
    %1725 = vmatpush1.msra.mxu0 0.0
    %1726 = vmatprep.subr.mxu0 0.0
    %1727 = vmatpush1.msra.mxu0 0.0
    %1728 = vmatprep.subr.mxu0 0.0
    %1729 = vmatpush1.msra.mxu0 0.0
    %1730 = vmatprep.subr.mxu0 0.0
    %1731 = vmatpush1.msra.mxu0 0.0
    %1732 = vmatprep.subr.mxu0 0.0
    %1733 = vmatpush1.msra.mxu0 0.0
    %1734 = vmatprep.subr.mxu0 0.0
    %1735 = vmatpush1.msra.mxu0 0.0
    %1736 = vmatprep.subr.mxu0 0.0
    %1737 = vmatpush1.msra.mxu0 0.0
    %1738 = vmatprep.subr.mxu0 0.0
    %1739 = vmatpush1.msra.mxu0 0.0
    %1740 = vmatprep.subr.mxu0 0.0
    %1741 = vmatpush1.msra.mxu0 0.0
    %1742 = vmatprep.subr.mxu0 0.0
    %1743 = vmatpush1.msra.mxu0 0.0
    %1744 = vmatprep.subr.mxu0 0.0
    %1745 = vmatpush1.msra.mxu0 0.0
    %1746 = vmatprep.subr.mxu0 0.0
    %1747 = vmatpush1.msra.mxu0 %v1307
    %1748 = vmatprep.subr.mxu0 0.0
    %1749 = vmatpush1.msra.mxu0 %v1306
    %1750 = vmatprep.subr.mxu0 0.0
    %1751 = vmatpush1.msra.mxu0 %v1305
    %1752 = vmatprep.subr.mxu0 0.0
    %1753 = vmatpush1.msra.mxu0 %v1304
    %1754 = vmatprep.subr.mxu0 0.0
    %1755 = vmatpush2.msra.mxu0 0.0
    %1756 = vmatprep.subr.mxu0 0.0
    %1757 = vmatpush2.msra.mxu0 0.0
    %1758 = vmatprep.subr.mxu0 0.0
    %1759 = vmatpush2.msra.mxu0 0.0
    %1760 = vmatprep.subr.mxu0 0.0
    %1761 = vmatpush2.msra.mxu0 0.0
    %1762 = vmatprep.subr.mxu0 0.0
    %1763 = vmatpush2.msra.mxu0 0.0
    %1764 = vmatprep.subr.mxu0 0.0
    %1765 = vmatpush2.msra.mxu0 0.0
    %1766 = vmatprep.subr.mxu0 0.0
    %1767 = vmatpush2.msra.mxu0 0.0
    %1768 = vmatprep.subr.mxu0 0.0
    %1769 = vmatpush2.msra.mxu0 0.0
    %1770 = vmatprep.subr.mxu0 0.0
    %1771 = vmatpush2.msra.mxu0 0.0
    %1772 = vmatprep.subr.mxu0 0.0
    %1773 = vmatpush2.msra.mxu0 0.0
    %1774 = vmatprep.subr.mxu0 0.0
    %1775 = vmatpush2.msra.mxu0 0.0
    %1776 = vmatprep.subr.mxu0 0.0
    %1777 = vmatpush2.msra.mxu0 0.0
    %1778 = vmatprep.subr.mxu0 0.0
    %1779 = vmatpush2.msra.mxu0 0.0
    %1780 = vmatprep.subr.mxu0 0.0
    %1781 = vmatpush2.msra.mxu0 0.0
    %1782 = vmatprep.subr.mxu0 0.0
    %1783 = vmatpush2.msra.mxu0 0.0
    %1784 = vmatprep.subr.mxu0 0.0
    %1785 = vmatpush2.msra.mxu0 0.0
    %1786 = vmatprep.mubr.f32.mxu0 0.0
    %1787 = vmatmul.mubr.f32.gmra.mxu0 %v1720
    %v1788 = vpop.f32.mrf.mxu0
    %v1789 = vadd.f32 0.0, %v1788
    %v1790 = vpop.f32.mrf.mxu0
    %1791 = vdwg.mxu0
    %v1793 = vrot.slane %v1789, 5
    %v1794 = vrot.slane %v1789, 6
    %v1797 = vadd.f32 %v1296, %v1793
    %v1798 = vadd.f32 %v1301, %v1794
    %v1799 = vxor.u32 %v1797, 2147483648
    %v1800 = vxor.u32 %v1798, 2147483648
    %v1801 = vmul.f32 %v1799, 1.442695
    %v1802 = vpow.pop %v1801
    %v1803 = vmul.f32 %v1800, 1.442695
    %v1804 = vpow.pop %v1803
    %v1805 = vadd.f32 %v1802, 1.0
    %v1806 = vadd.f32 %v1804, 1.0
    %v1807 = vrcp.pop %v1805
    %v1808 = vmul.f32 1.0, %v1807
    %v1809 = vrcp.pop %v1806
    %v1810 = vmul.f32 1.0, %v1809
    %v1811 = vtanh.pop %v1797
    %v1812 = vtanh.pop %v1798
    %v1815 = vrot.slane %v1699, 7
    %v1816 = vrot.slane %v1700, 7
    %v1819 = vmul.f32 %v1808, %v1815
    %v1820 = vmul.f32 %v1810, %v1816
    %1823 = vrot.lane.b32.xlu0 %v1811, 64
    %v1824 = vpop.permute.xlu0 %1823
    %1825 = vrot.lane.b32.xlu0 %v1812, 64
    %v1826 = vpop.permute.xlu0 %1825
    %v1829 = vmul.f32 %v1808, %v1824
    %v1830 = vmul.f32 %v1810, %v1826
    %1833 = vrot.lane.b32.xlu0 %v1829, 32
    %v1834 = vpop.permute.xlu0 %1833
    %1835 = vrot.lane.b32.xlu0 %v1830, 32
    %v1836 = vpop.permute.xlu0 %1835
    %v1839 = vadd.f32 %v1819, %v1834
    %v1840 = vadd.f32 %v1820, %v1836
    %v1841 = vtanh.pop %v1839
    %v1842 = vtanh.pop %v1840
    %1845 = vrot.lane.b32.xlu0 %v1841, 64
    %v1846 = vpop.permute.xlu0 %1845
    %1847 = vrot.lane.b32.xlu0 %v1842, 64
    %v1848 = vpop.permute.xlu0 %1847
    %v1851 = vmul.f32 %v1808, %v1846
    %v1852 = vmul.f32 %v1810, %v1848
    %v1855 = vrot.slane %v1851, 3
    %v1856 = vrot.slane %v1852, 2
    %v1857 = vsel %vm1438, %v1856, %v1855
    %1858 = vrot.lane.b32.xlu0 %v1857, 32
    %v1859 = vpop.permute.xlu0 %1858
    %v1860 = vsel %vm119, %v1859, 0
    %1862 = vmatprep.subr.mxu0 0.0
    %1863 = vmatpush1.msra.mxu0 0.0
    %1864 = vmatprep.subr.mxu0 0.0
    %1865 = vmatpush1.msra.mxu0 0.0
    %1866 = vmatprep.subr.mxu0 0.0
    %1867 = vmatpush1.msra.mxu0 0.0
    %1868 = vmatprep.subr.mxu0 0.0
    %1869 = vmatpush1.msra.mxu0 0.0
    %1870 = vmatprep.subr.mxu0 0.0
    %1871 = vmatpush1.msra.mxu0 0.0
    %1872 = vmatprep.subr.mxu0 0.0
    %1873 = vmatpush1.msra.mxu0 0.0
    %1874 = vmatprep.subr.mxu0 0.0
    %1875 = vmatpush1.msra.mxu0 0.0
    %1876 = vmatprep.subr.mxu0 0.0
    %1877 = vmatpush1.msra.mxu0 0.0
    %1878 = vmatprep.subr.mxu0 0.0
    %1879 = vmatpush1.msra.mxu0 0.0
    %1880 = vmatprep.subr.mxu0 0.0
    %1881 = vmatpush1.msra.mxu0 0.0
    %1882 = vmatprep.subr.mxu0 0.0
    %1883 = vmatpush1.msra.mxu0 0.0
    %1884 = vmatprep.subr.mxu0 0.0
    %1885 = vmatpush1.msra.mxu0 0.0
    %1886 = vmatprep.subr.mxu0 0.0
    %1887 = vmatpush1.msra.mxu0 %v1307
    %1888 = vmatprep.subr.mxu0 0.0
    %1889 = vmatpush1.msra.mxu0 %v1306
    %1890 = vmatprep.subr.mxu0 0.0
    %1891 = vmatpush1.msra.mxu0 %v1305
    %1892 = vmatprep.subr.mxu0 0.0
    %1893 = vmatpush1.msra.mxu0 %v1304
    %1894 = vmatprep.subr.mxu0 0.0
    %1895 = vmatpush2.msra.mxu0 0.0
    %1896 = vmatprep.subr.mxu0 0.0
    %1897 = vmatpush2.msra.mxu0 0.0
    %1898 = vmatprep.subr.mxu0 0.0
    %1899 = vmatpush2.msra.mxu0 0.0
    %1900 = vmatprep.subr.mxu0 0.0
    %1901 = vmatpush2.msra.mxu0 0.0
    %1902 = vmatprep.subr.mxu0 0.0
    %1903 = vmatpush2.msra.mxu0 0.0
    %1904 = vmatprep.subr.mxu0 0.0
    %1905 = vmatpush2.msra.mxu0 0.0
    %1906 = vmatprep.subr.mxu0 0.0
    %1907 = vmatpush2.msra.mxu0 0.0
    %1908 = vmatprep.subr.mxu0 0.0
    %1909 = vmatpush2.msra.mxu0 0.0
    %1910 = vmatprep.subr.mxu0 0.0
    %1911 = vmatpush2.msra.mxu0 0.0
    %1912 = vmatprep.subr.mxu0 0.0
    %1913 = vmatpush2.msra.mxu0 0.0
    %1914 = vmatprep.subr.mxu0 0.0
    %1915 = vmatpush2.msra.mxu0 0.0
    %1916 = vmatprep.subr.mxu0 0.0
    %1917 = vmatpush2.msra.mxu0 0.0
    %1918 = vmatprep.subr.mxu0 0.0
    %1919 = vmatpush2.msra.mxu0 0.0
    %1920 = vmatprep.subr.mxu0 0.0
    %1921 = vmatpush2.msra.mxu0 0.0
    %1922 = vmatprep.subr.mxu0 0.0
    %1923 = vmatpush2.msra.mxu0 0.0
    %1924 = vmatprep.subr.mxu0 0.0
    %1925 = vmatpush2.msra.mxu0 0.0
    %1926 = vmatprep.mubr.f32.mxu0 0.0
    %1927 = vmatmul.mubr.f32.gmra.mxu0 %v1860
    %v1928 = vpop.f32.mrf.mxu0
    %v1929 = vadd.f32 0.0, %v1928
    %v1930 = vpop.f32.mrf.mxu0
    %1931 = vdwg.mxu0
    %v1933 = vrot.slane %v1929, 4
    %v1934 = vrot.slane %v1929, 5
    %v1937 = vadd.f32 %v1296, %v1933
    %v1938 = vadd.f32 %v1301, %v1934
    %v1939 = vxor.u32 %v1937, 2147483648
    %v1940 = vxor.u32 %v1938, 2147483648
    %v1941 = vmul.f32 %v1939, 1.442695
    %v1942 = vpow.pop %v1941
    %v1943 = vmul.f32 %v1940, 1.442695
    %v1944 = vpow.pop %v1943
    %v1945 = vadd.f32 %v1942, 1.0
    %v1946 = vadd.f32 %v1944, 1.0
    %v1947 = vrcp.pop %v1945
    %v1948 = vmul.f32 1.0, %v1947
    %v1949 = vrcp.pop %v1946
    %v1950 = vmul.f32 1.0, %v1949
    %v1951 = vtanh.pop %v1937
    %v1952 = vtanh.pop %v1938
    %v1955 = vrot.slane %v1839, 7
    %v1956 = vrot.slane %v1840, 7
    %v1959 = vmul.f32 %v1948, %v1955
    %v1960 = vmul.f32 %v1950, %v1956
    %1963 = vrot.lane.b32.xlu0 %v1951, 64
    %v1964 = vpop.permute.xlu0 %1963
    %1965 = vrot.lane.b32.xlu0 %v1952, 64
    %v1966 = vpop.permute.xlu0 %1965
    %v1969 = vmul.f32 %v1948, %v1964
    %v1970 = vmul.f32 %v1950, %v1966
    %1973 = vrot.lane.b32.xlu0 %v1969, 32
    %v1974 = vpop.permute.xlu0 %1973
    %1975 = vrot.lane.b32.xlu0 %v1970, 32
    %v1976 = vpop.permute.xlu0 %1975
    %v1979 = vadd.f32 %v1959, %v1974
    %v1980 = vadd.f32 %v1960, %v1976
    %v1981 = vtanh.pop %v1979
    %v1982 = vtanh.pop %v1980
    %1985 = vrot.lane.b32.xlu0 %v1981, 64
    %v1986 = vpop.permute.xlu0 %1985
    %1987 = vrot.lane.b32.xlu0 %v1982, 64
    %v1988 = vpop.permute.xlu0 %1987
    %v1991 = vmul.f32 %v1948, %v1986
    %v1992 = vmul.f32 %v1950, %v1988
    %v1995 = vrot.slane %v1991, 4
    %v1996 = vrot.slane %v1992, 3
    %v1997 = vsel %vm1438, %v1996, %v1995
    %1998 = vrot.lane.b32.xlu0 %v1997, 32
    %v1999 = vpop.permute.xlu0 %1998
    %v2000 = vsel %vm119, %v1999, 0
    %2002 = vmatprep.subr.mxu0 0.0
    %2003 = vmatpush1.msra.mxu0 0.0
    %2004 = vmatprep.subr.mxu0 0.0
    %2005 = vmatpush1.msra.mxu0 0.0
    %2006 = vmatprep.subr.mxu0 0.0
    %2007 = vmatpush1.msra.mxu0 0.0
    %2008 = vmatprep.subr.mxu0 0.0
    %2009 = vmatpush1.msra.mxu0 0.0
    %2010 = vmatprep.subr.mxu0 0.0
    %2011 = vmatpush1.msra.mxu0 0.0
    %2012 = vmatprep.subr.mxu0 0.0
    %2013 = vmatpush1.msra.mxu0 0.0
    %2014 = vmatprep.subr.mxu0 0.0
    %2015 = vmatpush1.msra.mxu0 0.0
    %2016 = vmatprep.subr.mxu0 0.0
    %2017 = vmatpush1.msra.mxu0 0.0
    %2018 = vmatprep.subr.mxu0 0.0
    %2019 = vmatpush1.msra.mxu0 0.0
    %2020 = vmatprep.subr.mxu0 0.0
    %2021 = vmatpush1.msra.mxu0 0.0
    %2022 = vmatprep.subr.mxu0 0.0
    %2023 = vmatpush1.msra.mxu0 0.0
    %2024 = vmatprep.subr.mxu0 0.0
    %2025 = vmatpush1.msra.mxu0 0.0
    %2026 = vmatprep.subr.mxu0 0.0
    %2027 = vmatpush1.msra.mxu0 %v1307
    %2028 = vmatprep.subr.mxu0 0.0
    %2029 = vmatpush1.msra.mxu0 %v1306
    %2030 = vmatprep.subr.mxu0 0.0
    %2031 = vmatpush1.msra.mxu0 %v1305
    %2032 = vmatprep.subr.mxu0 0.0
    %2033 = vmatpush1.msra.mxu0 %v1304
    %2034 = vmatprep.subr.mxu0 0.0
    %2035 = vmatpush2.msra.mxu0 0.0
    %2036 = vmatprep.subr.mxu0 0.0
    %2037 = vmatpush2.msra.mxu0 0.0
    %2038 = vmatprep.subr.mxu0 0.0
    %2039 = vmatpush2.msra.mxu0 0.0
    %2040 = vmatprep.subr.mxu0 0.0
    %2041 = vmatpush2.msra.mxu0 0.0
    %2042 = vmatprep.subr.mxu0 0.0
    %2043 = vmatpush2.msra.mxu0 0.0
    %2044 = vmatprep.subr.mxu0 0.0
    %2045 = vmatpush2.msra.mxu0 0.0
    %2046 = vmatprep.subr.mxu0 0.0
    %2047 = vmatpush2.msra.mxu0 0.0
    %2048 = vmatprep.subr.mxu0 0.0
    %2049 = vmatpush2.msra.mxu0 0.0
    %2050 = vmatprep.subr.mxu0 0.0
    %2051 = vmatpush2.msra.mxu0 0.0
    %2052 = vmatprep.subr.mxu0 0.0
    %2053 = vmatpush2.msra.mxu0 0.0
    %2054 = vmatprep.subr.mxu0 0.0
    %2055 = vmatpush2.msra.mxu0 0.0
    %2056 = vmatprep.subr.mxu0 0.0
    %2057 = vmatpush2.msra.mxu0 0.0
    %2058 = vmatprep.subr.mxu0 0.0
    %2059 = vmatpush2.msra.mxu0 0.0
    %2060 = vmatprep.subr.mxu0 0.0
    %2061 = vmatpush2.msra.mxu0 0.0
    %2062 = vmatprep.subr.mxu0 0.0
    %2063 = vmatpush2.msra.mxu0 0.0
    %2064 = vmatprep.subr.mxu0 0.0
    %2065 = vmatpush2.msra.mxu0 0.0
    %2066 = vmatprep.mubr.f32.mxu0 0.0
    %2067 = vmatmul.mubr.f32.gmra.mxu0 %v2000
    %v2068 = vpop.f32.mrf.mxu0
    %v2069 = vadd.f32 0.0, %v2068
    %v2070 = vpop.f32.mrf.mxu0
    %2071 = vdwg.mxu0
    %v2073 = vrot.slane %v2069, 3
    %v2074 = vrot.slane %v2069, 4
    %v2077 = vadd.f32 %v1296, %v2073
    %v2078 = vadd.f32 %v1301, %v2074
    %v2079 = vxor.u32 %v2077, 2147483648
    %v2080 = vxor.u32 %v2078, 2147483648
    %v2081 = vmul.f32 %v2079, 1.442695
    %v2082 = vpow.pop %v2081
    %v2083 = vmul.f32 %v2080, 1.442695
    %v2084 = vpow.pop %v2083
    %v2085 = vadd.f32 %v2082, 1.0
    %v2086 = vadd.f32 %v2084, 1.0
    %v2087 = vrcp.pop %v2085
    %v2088 = vmul.f32 1.0, %v2087
    %v2089 = vrcp.pop %v2086
    %v2090 = vmul.f32 1.0, %v2089
    %v2091 = vtanh.pop %v2077
    %v2092 = vtanh.pop %v2078
    %v2095 = vrot.slane %v1979, 7
    %v2096 = vrot.slane %v1980, 7
    %v2099 = vmul.f32 %v2088, %v2095
    %v2100 = vmul.f32 %v2090, %v2096
    %2103 = vrot.lane.b32.xlu0 %v2091, 64
    %v2104 = vpop.permute.xlu0 %2103
    %2105 = vrot.lane.b32.xlu0 %v2092, 64
    %v2106 = vpop.permute.xlu0 %2105
    %v2109 = vmul.f32 %v2088, %v2104
    %v2110 = vmul.f32 %v2090, %v2106
    %2113 = vrot.lane.b32.xlu0 %v2109, 32
    %v2114 = vpop.permute.xlu0 %2113
    %2115 = vrot.lane.b32.xlu0 %v2110, 32
    %v2116 = vpop.permute.xlu0 %2115
    %v2119 = vadd.f32 %v2099, %v2114
    %v2120 = vadd.f32 %v2100, %v2116
    %v2121 = vtanh.pop %v2119
    %v2122 = vtanh.pop %v2120
    %2125 = vrot.lane.b32.xlu0 %v2121, 64
    %v2126 = vpop.permute.xlu0 %2125
    %2127 = vrot.lane.b32.xlu0 %v2122, 64
    %v2128 = vpop.permute.xlu0 %2127
    %v2131 = vmul.f32 %v2088, %v2126
    %v2132 = vmul.f32 %v2090, %v2128
    %v2135 = vrot.slane %v2131, 5
    %v2136 = vrot.slane %v2132, 4
    %v2137 = vsel %vm1438, %v2136, %v2135
    %2138 = vrot.lane.b32.xlu0 %v2137, 32
    %v2139 = vpop.permute.xlu0 %2138
    %v2140 = vsel %vm119, %v2139, 0
    %2142 = vmatprep.subr.mxu0 0.0
    %2143 = vmatpush1.msra.mxu0 0.0
    %2144 = vmatprep.subr.mxu0 0.0
    %2145 = vmatpush1.msra.mxu0 0.0
    %2146 = vmatprep.subr.mxu0 0.0
    %2147 = vmatpush1.msra.mxu0 0.0
    %2148 = vmatprep.subr.mxu0 0.0
    %2149 = vmatpush1.msra.mxu0 0.0
    %2150 = vmatprep.subr.mxu0 0.0
    %2151 = vmatpush1.msra.mxu0 0.0
    %2152 = vmatprep.subr.mxu0 0.0
    %2153 = vmatpush1.msra.mxu0 0.0
    %2154 = vmatprep.subr.mxu0 0.0
    %2155 = vmatpush1.msra.mxu0 0.0
    %2156 = vmatprep.subr.mxu0 0.0
    %2157 = vmatpush1.msra.mxu0 0.0
    %2158 = vmatprep.subr.mxu0 0.0
    %2159 = vmatpush1.msra.mxu0 0.0
    %2160 = vmatprep.subr.mxu0 0.0
    %2161 = vmatpush1.msra.mxu0 0.0
    %2162 = vmatprep.subr.mxu0 0.0
    %2163 = vmatpush1.msra.mxu0 0.0
    %2164 = vmatprep.subr.mxu0 0.0
    %2165 = vmatpush1.msra.mxu0 0.0
    %2166 = vmatprep.subr.mxu0 0.0
    %2167 = vmatpush1.msra.mxu0 %v1307
    %2168 = vmatprep.subr.mxu0 0.0
    %2169 = vmatpush1.msra.mxu0 %v1306
    %2170 = vmatprep.subr.mxu0 0.0
    %2171 = vmatpush1.msra.mxu0 %v1305
    %2172 = vmatprep.subr.mxu0 0.0
    %2173 = vmatpush1.msra.mxu0 %v1304
    %2174 = vmatprep.subr.mxu0 0.0
    %2175 = vmatpush2.msra.mxu0 0.0
    %2176 = vmatprep.subr.mxu0 0.0
    %2177 = vmatpush2.msra.mxu0 0.0
    %2178 = vmatprep.subr.mxu0 0.0
    %2179 = vmatpush2.msra.mxu0 0.0
    %2180 = vmatprep.subr.mxu0 0.0
    %2181 = vmatpush2.msra.mxu0 0.0
    %2182 = vmatprep.subr.mxu0 0.0
    %2183 = vmatpush2.msra.mxu0 0.0
    %2184 = vmatprep.subr.mxu0 0.0
    %2185 = vmatpush2.msra.mxu0 0.0
    %2186 = vmatprep.subr.mxu0 0.0
    %2187 = vmatpush2.msra.mxu0 0.0
    %2188 = vmatprep.subr.mxu0 0.0
    %2189 = vmatpush2.msra.mxu0 0.0
    %2190 = vmatprep.subr.mxu0 0.0
    %2191 = vmatpush2.msra.mxu0 0.0
    %2192 = vmatprep.subr.mxu0 0.0
    %2193 = vmatpush2.msra.mxu0 0.0
    %2194 = vmatprep.subr.mxu0 0.0
    %2195 = vmatpush2.msra.mxu0 0.0
    %2196 = vmatprep.subr.mxu0 0.0
    %2197 = vmatpush2.msra.mxu0 0.0
    %2198 = vmatprep.subr.mxu0 0.0
    %2199 = vmatpush2.msra.mxu0 0.0
    %2200 = vmatprep.subr.mxu0 0.0
    %2201 = vmatpush2.msra.mxu0 0.0
    %2202 = vmatprep.subr.mxu0 0.0
    %2203 = vmatpush2.msra.mxu0 0.0
    %2204 = vmatprep.subr.mxu0 0.0
    %2205 = vmatpush2.msra.mxu0 0.0
    %2206 = vmatprep.mubr.f32.mxu0 0.0
    %2207 = vmatmul.mubr.f32.gmra.mxu0 %v2140
    %v2208 = vpop.f32.mrf.mxu0
    %v2209 = vadd.f32 0.0, %v2208
    %v2210 = vpop.f32.mrf.mxu0
    %2211 = vdwg.mxu0
    %v2213 = vrot.slane %v2209, 2
    %v2214 = vrot.slane %v2209, 3
    %v2217 = vadd.f32 %v1296, %v2213
    %v2218 = vadd.f32 %v1301, %v2214
    %v2219 = vxor.u32 %v2217, 2147483648
    %v2220 = vxor.u32 %v2218, 2147483648
    %v2221 = vmul.f32 %v2219, 1.442695
    %v2222 = vpow.pop %v2221
    %v2223 = vmul.f32 %v2220, 1.442695
    %v2224 = vpow.pop %v2223
    %v2225 = vadd.f32 %v2222, 1.0
    %v2226 = vadd.f32 %v2224, 1.0
    %v2227 = vrcp.pop %v2225
    %v2228 = vmul.f32 1.0, %v2227
    %v2229 = vrcp.pop %v2226
    %v2230 = vmul.f32 1.0, %v2229
    %v2231 = vtanh.pop %v2217
    %v2232 = vtanh.pop %v2218
    %v2235 = vrot.slane %v2119, 7
    %v2236 = vrot.slane %v2120, 7
    %v2239 = vmul.f32 %v2228, %v2235
    %v2240 = vmul.f32 %v2230, %v2236
    %2243 = vrot.lane.b32.xlu0 %v2231, 64
    %v2244 = vpop.permute.xlu0 %2243
    %2245 = vrot.lane.b32.xlu0 %v2232, 64
    %v2246 = vpop.permute.xlu0 %2245
    %v2249 = vmul.f32 %v2228, %v2244
    %v2250 = vmul.f32 %v2230, %v2246
    %2253 = vrot.lane.b32.xlu0 %v2249, 32
    %v2254 = vpop.permute.xlu0 %2253
    %2255 = vrot.lane.b32.xlu0 %v2250, 32
    %v2256 = vpop.permute.xlu0 %2255
    %v2259 = vadd.f32 %v2239, %v2254
    %v2260 = vadd.f32 %v2240, %v2256
    %v2261 = vtanh.pop %v2259
    %v2262 = vtanh.pop %v2260
    %2265 = vrot.lane.b32.xlu0 %v2261, 64
    %v2266 = vpop.permute.xlu0 %2265
    %2267 = vrot.lane.b32.xlu0 %v2262, 64
    %v2268 = vpop.permute.xlu0 %2267
    %v2271 = vmul.f32 %v2228, %v2266
    %v2272 = vmul.f32 %v2230, %v2268
    %v2275 = vrot.slane %v2271, 6
    %v2276 = vrot.slane %v2272, 5
    %v2277 = vsel %vm1438, %v2276, %v2275
    %2278 = vrot.lane.b32.xlu0 %v2277, 32
    %v2279 = vpop.permute.xlu0 %2278
    %v2280 = vsel %vm119, %v2279, 0
    %2282 = vmatprep.subr.mxu0 0.0
    %2283 = vmatpush1.msra.mxu0 0.0
    %2284 = vmatprep.subr.mxu0 0.0
    %2285 = vmatpush1.msra.mxu0 0.0
    %2286 = vmatprep.subr.mxu0 0.0
    %2287 = vmatpush1.msra.mxu0 0.0
    %2288 = vmatprep.subr.mxu0 0.0
    %2289 = vmatpush1.msra.mxu0 0.0
    %2290 = vmatprep.subr.mxu0 0.0
    %2291 = vmatpush1.msra.mxu0 0.0
    %2292 = vmatprep.subr.mxu0 0.0
    %2293 = vmatpush1.msra.mxu0 0.0
    %2294 = vmatprep.subr.mxu0 0.0
    %2295 = vmatpush1.msra.mxu0 0.0
    %2296 = vmatprep.subr.mxu0 0.0
    %2297 = vmatpush1.msra.mxu0 0.0
    %2298 = vmatprep.subr.mxu0 0.0
    %2299 = vmatpush1.msra.mxu0 0.0
    %2300 = vmatprep.subr.mxu0 0.0
    %2301 = vmatpush1.msra.mxu0 0.0
    %2302 = vmatprep.subr.mxu0 0.0
    %2303 = vmatpush1.msra.mxu0 0.0
    %2304 = vmatprep.subr.mxu0 0.0
    %2305 = vmatpush1.msra.mxu0 0.0
    %2306 = vmatprep.subr.mxu0 0.0
    %2307 = vmatpush1.msra.mxu0 %v1307
    %2308 = vmatprep.subr.mxu0 0.0
    %2309 = vmatpush1.msra.mxu0 %v1306
    %2310 = vmatprep.subr.mxu0 0.0
    %2311 = vmatpush1.msra.mxu0 %v1305
    %2312 = vmatprep.subr.mxu0 0.0
    %2313 = vmatpush1.msra.mxu0 %v1304
    %2314 = vmatprep.subr.mxu0 0.0
    %2315 = vmatpush2.msra.mxu0 0.0
    %2316 = vmatprep.subr.mxu0 0.0
    %2317 = vmatpush2.msra.mxu0 0.0
    %2318 = vmatprep.subr.mxu0 0.0
    %2319 = vmatpush2.msra.mxu0 0.0
    %2320 = vmatprep.subr.mxu0 0.0
    %2321 = vmatpush2.msra.mxu0 0.0
    %2322 = vmatprep.subr.mxu0 0.0
    %2323 = vmatpush2.msra.mxu0 0.0
    %2324 = vmatprep.subr.mxu0 0.0
    %2325 = vmatpush2.msra.mxu0 0.0
    %2326 = vmatprep.subr.mxu0 0.0
    %2327 = vmatpush2.msra.mxu0 0.0
    %2328 = vmatprep.subr.mxu0 0.0
    %2329 = vmatpush2.msra.mxu0 0.0
    %2330 = vmatprep.subr.mxu0 0.0
    %2331 = vmatpush2.msra.mxu0 0.0
    %2332 = vmatprep.subr.mxu0 0.0
    %2333 = vmatpush2.msra.mxu0 0.0
    %2334 = vmatprep.subr.mxu0 0.0
    %2335 = vmatpush2.msra.mxu0 0.0
    %2336 = vmatprep.subr.mxu0 0.0
    %2337 = vmatpush2.msra.mxu0 0.0
    %2338 = vmatprep.subr.mxu0 0.0
    %2339 = vmatpush2.msra.mxu0 0.0
    %2340 = vmatprep.subr.mxu0 0.0
    %2341 = vmatpush2.msra.mxu0 0.0
    %2342 = vmatprep.subr.mxu0 0.0
    %2343 = vmatpush2.msra.mxu0 0.0
    %2344 = vmatprep.subr.mxu0 0.0
    %2345 = vmatpush2.msra.mxu0 0.0
    %2346 = vmatprep.mubr.f32.mxu0 0.0
    %2347 = vmatmul.mubr.f32.gmra.mxu0 %v2280
    %v2348 = vpop.f32.mrf.mxu0
    %v2349 = vadd.f32 0.0, %v2348
    %v2350 = vpop.f32.mrf.mxu0
    %2351 = vdwg.mxu0
    %v2353 = vrot.slane %v2349, 1
    %v2354 = vrot.slane %v2349, 2
    %v2357 = vadd.f32 %v1296, %v2353
    %v2358 = vadd.f32 %v1301, %v2354
    %v2359 = vxor.u32 %v2357, 2147483648
    %v2360 = vxor.u32 %v2358, 2147483648
    %v2361 = vmul.f32 %v2359, 1.442695
    %v2362 = vpow.pop %v2361
    %v2363 = vmul.f32 %v2360, 1.442695
    %v2364 = vpow.pop %v2363
    %v2365 = vadd.f32 %v2362, 1.0
    %v2366 = vadd.f32 %v2364, 1.0
    %v2367 = vrcp.pop %v2365
    %v2368 = vmul.f32 1.0, %v2367
    %v2369 = vrcp.pop %v2366
    %v2370 = vmul.f32 1.0, %v2369
    %v2371 = vtanh.pop %v2357
    %v2372 = vtanh.pop %v2358
    %v2375 = vrot.slane %v2259, 7
    %v2376 = vrot.slane %v2260, 7
    %v2379 = vmul.f32 %v2368, %v2375
    %v2380 = vmul.f32 %v2370, %v2376
    %2383 = vrot.lane.b32.xlu0 %v2371, 64
    %v2384 = vpop.permute.xlu0 %2383
    %2385 = vrot.lane.b32.xlu0 %v2372, 64
    %v2386 = vpop.permute.xlu0 %2385
    %v2389 = vmul.f32 %v2368, %v2384
    %v2390 = vmul.f32 %v2370, %v2386
    %2393 = vrot.lane.b32.xlu0 %v2389, 32
    %v2394 = vpop.permute.xlu0 %2393
    %2395 = vrot.lane.b32.xlu0 %v2390, 32
    %v2396 = vpop.permute.xlu0 %2395
    %v2399 = vadd.f32 %v2379, %v2394
    %v2400 = vadd.f32 %v2380, %v2396
    %v2401 = vtanh.pop %v2399
    %v2402 = vtanh.pop %v2400
    %2405 = vrot.lane.b32.xlu0 %v2401, 64
    %v2406 = vpop.permute.xlu0 %2405
    %2407 = vrot.lane.b32.xlu0 %v2402, 64
    %v2408 = vpop.permute.xlu0 %2407
    %v2411 = vmul.f32 %v2368, %v2406
    %v2412 = vmul.f32 %v2370, %v2408
    %v2413 = vld [vmem:[#allocation2 + $0x242] sm:$0x1]
    %v2414 = vlaneseq
    %v2415 = vshrl.u32 %v2414, 7
    %v2416 = vsub.s32 0, %v2415
    %v2417 = vrot.slane %v2413, %v2416
    %v2420 = vrot.slane %v2412, 7
    %2421 = vrot.lane.b32.xlu0 %v2411, 32
    %v2422 = vpop.permute.xlu0 %2421
    %2423 = vrot.lane.b32.xlu0 %v2420, 32
    %v2424 = vpop.permute.xlu0 %2423
    %2428 = vrot.lane.b32.xlu0 %v2417, 32
    %v2429 = vpop.permute.xlu0 %2428
    %v2431 = vsel %vm119, %v2422, %v2429
    %v2432 = vsel %vm119, %v2424, %v2429
    %v2433 = vld [vmem:[#allocation2 + $0xa8] sm:$0xff]
    %v2434 = vld [vmem:[#allocation2 + $0xb0] sm:$0xff]
    %v2435 = vld [vmem:[#allocation2 + $0xb8] sm:$0xff]
    %v2436 = vld [vmem:[#allocation2 + $0xc0] sm:$0xff]
    %v2437 = vld [vmem:[#allocation2 + $0xc8] sm:$0xff]
    %v2438 = vld [vmem:[#allocation2 + $0xd0] sm:$0xff]
    %v2439 = vld [vmem:[#allocation2 + $0xd8] sm:$0xff]
    %v2440 = vld [vmem:[#allocation2 + $0xe0] sm:$0xff]
    %v2441 = vld [vmem:[#allocation2 + $0x243] sm:$0x1]
    %v2442 = vlaneseq
    %v2443 = vshrl.u32 %v2442, 7
    %v2444 = vsub.s32 0, %v2443
    %v2445 = vrot.slane %v2441, %v2444
    %vm2448 = vcmask 1040384
    %v2449 = vrot.slane %v2431, 7
    %v2450 = vrot.slane %v2432, 7
    %v2451 = vsel %vm2448, %v2449, %v2450
    %vm2452 = vcmask 523264
    %v2453 = vsel %vm2452, %v2451, 0
    %2455 = vmatprep.subr.mxu0 0.0
    %2456 = vmatpush1.msra.mxu0 0.0
    %2457 = vmatprep.subr.mxu0 0.0
    %2458 = vmatpush1.msra.mxu0 0.0
    %2459 = vmatprep.subr.mxu0 0.0
    %2460 = vmatpush1.msra.mxu0 0.0
    %2461 = vmatprep.subr.mxu0 0.0
    %2462 = vmatpush1.msra.mxu0 0.0
    %2463 = vmatprep.subr.mxu0 0.0
    %2464 = vmatpush1.msra.mxu0 0.0
    %2465 = vmatprep.subr.mxu0 0.0
    %2466 = vmatpush1.msra.mxu0 0.0
    %2467 = vmatprep.subr.mxu0 0.0
    %2468 = vmatpush1.msra.mxu0 0.0
    %2469 = vmatprep.subr.mxu0 0.0
    %2470 = vmatpush1.msra.mxu0 0.0
    %2471 = vmatprep.subr.mxu0 0.0
    %2472 = vmatpush1.msra.mxu0 %v2440
    %2473 = vmatprep.subr.mxu0 0.0
    %2474 = vmatpush1.msra.mxu0 %v2439
    %2475 = vmatprep.subr.mxu0 0.0
    %2476 = vmatpush1.msra.mxu0 %v2438
    %2477 = vmatprep.subr.mxu0 0.0
    %2478 = vmatpush1.msra.mxu0 %v2437
    %2479 = vmatprep.subr.mxu0 0.0
    %2480 = vmatpush1.msra.mxu0 %v2436
    %2481 = vmatprep.subr.mxu0 0.0
    %2482 = vmatpush1.msra.mxu0 %v2435
    %2483 = vmatprep.subr.mxu0 0.0
    %2484 = vmatpush1.msra.mxu0 %v2434
    %2485 = vmatprep.subr.mxu0 0.0
    %2486 = vmatpush1.msra.mxu0 %v2433
    %2487 = vmatprep.subr.mxu0 0.0
    %2488 = vmatpush2.msra.mxu0 0.0
    %2489 = vmatprep.subr.mxu0 0.0
    %2490 = vmatpush2.msra.mxu0 0.0
    %2491 = vmatprep.subr.mxu0 0.0
    %2492 = vmatpush2.msra.mxu0 0.0
    %2493 = vmatprep.subr.mxu0 0.0
    %2494 = vmatpush2.msra.mxu0 0.0
    %2495 = vmatprep.subr.mxu0 0.0
    %2496 = vmatpush2.msra.mxu0 0.0
    %2497 = vmatprep.subr.mxu0 0.0
    %2498 = vmatpush2.msra.mxu0 0.0
    %2499 = vmatprep.subr.mxu0 0.0
    %2500 = vmatpush2.msra.mxu0 0.0
    %2501 = vmatprep.subr.mxu0 0.0
    %2502 = vmatpush2.msra.mxu0 0.0
    %2503 = vmatprep.subr.mxu0 0.0
    %2504 = vmatpush2.msra.mxu0 0.0
    %2505 = vmatprep.subr.mxu0 0.0
    %2506 = vmatpush2.msra.mxu0 0.0
    %2507 = vmatprep.subr.mxu0 0.0
    %2508 = vmatpush2.msra.mxu0 0.0
    %2509 = vmatprep.subr.mxu0 0.0
    %2510 = vmatpush2.msra.mxu0 0.0
    %2511 = vmatprep.subr.mxu0 0.0
    %2512 = vmatpush2.msra.mxu0 0.0
    %2513 = vmatprep.subr.mxu0 0.0
    %2514 = vmatpush2.msra.mxu0 0.0
    %2515 = vmatprep.subr.mxu0 0.0
    %2516 = vmatpush2.msra.mxu0 0.0
    %2517 = vmatprep.subr.mxu0 0.0
    %2518 = vmatpush2.msra.mxu0 0.0
    %2519 = vmatprep.mubr.f32.mxu0 0.0
    %2520 = vmatmul.mubr.f32.gmra.mxu0 %v2453
    %v2521 = vpop.f32.mrf.mxu0
    %v2522 = vadd.f32 %v2445, %v2521
    %v2523 = vpop.f32.mrf.mxu0
    %2524 = vdwg.mxu0
    %vm2525 = vcmask 517120
    %v2526 = vsel %vm2525, %v2522, 0.0
    %2527 = vadd.xlane.f32.xlu0 %v2526
    %v2528 = vpop.xlane.xlu0 %2527
    %v2529 = vrcp.pop 64.0
    %v2530 = vmul.f32 %v2528, %v2529
    %v2531 = vmul.f32 %v2522, %v2522
    %v2532 = vsel %vm2525, %v2531, 0.0
    %2533 = vadd.xlane.f32.xlu0 %v2532
    %v2534 = vpop.xlane.xlu0 %2533
    %v2535 = vmul.f32 %v2534, %v2529
    %v2536 = vmul.f32 %v2530, %v2530
    %v2537 = vsub.f32 %v2535, %v2536
    %v2538 = vsub.f32 %v2522, %v2530
    %v2539 = vadd.f32 %v2537, 1e-05
    %v2540 = vrsqrt.pop %v2539
    %v2541 = vmul.f32 %v2538, %v2540
    %v2542 = vld [vmem:[#allocation2 + $0x244] sm:$0x1]
    %v2543 = vlaneseq
    %v2544 = vshrl.u32 %v2543, 7
    %v2545 = vsub.s32 0, %v2544
    %v2546 = vrot.slane %v2542, %v2545
    %v2547 = vmul.f32 %v2541, %v2546
    %v2548 = vld [vmem:[#allocation2 + $0x245] sm:$0x1]
    %v2549 = vlaneseq
    %v2550 = vshrl.u32 %v2549, 7
    %v2551 = vsub.s32 0, %v2550
    %v2552 = vrot.slane %v2548, %v2551
    %v2553 = vadd.f32 %v2547, %v2552
    %v2554 = vmax.f32 %v2553, 0.0
    %v2555 = vld [vmem:[#allocation2 + $0xe8] sm:$0xff]
    %v2556 = vld [vmem:[#allocation2 + $0xf0] sm:$0xff]
    %v2557 = vld [vmem:[#allocation2 + $0xf8] sm:$0xff]
    %v2558 = vld [vmem:[#allocation2 + $0x100] sm:$0xff]
    %v2559 = vld [vmem:[#allocation2 + $0x108] sm:$0xff]
    %v2560 = vld [vmem:[#allocation2 + $0x110] sm:$0xff]
    %v2561 = vld [vmem:[#allocation2 + $0x118] sm:$0xff]
    %v2562 = vld [vmem:[#allocation2 + $0x120] sm:$0xff]
    %v2563 = vld [vmem:[#allocation2 + $0x246] sm:$0x1]
    %v2564 = vlaneseq
    %v2565 = vshrl.u32 %v2564, 7
    %v2566 = vsub.s32 0, %v2565
    %v2567 = vrot.slane %v2563, %v2566
    %v2569 = vsel %vm2452, %v2554, 0
    %2571 = vmatprep.subr.mxu0 0.0
    %2572 = vmatpush1.msra.mxu0 0.0
    %2573 = vmatprep.subr.mxu0 0.0
    %2574 = vmatpush1.msra.mxu0 0.0
    %2575 = vmatprep.subr.mxu0 0.0
    %2576 = vmatpush1.msra.mxu0 0.0
    %2577 = vmatprep.subr.mxu0 0.0
    %2578 = vmatpush1.msra.mxu0 0.0
    %2579 = vmatprep.subr.mxu0 0.0
    %2580 = vmatpush1.msra.mxu0 0.0
    %2581 = vmatprep.subr.mxu0 0.0
    %2582 = vmatpush1.msra.mxu0 0.0
    %2583 = vmatprep.subr.mxu0 0.0
    %2584 = vmatpush1.msra.mxu0 0.0
    %2585 = vmatprep.subr.mxu0 0.0
    %2586 = vmatpush1.msra.mxu0 0.0
    %2587 = vmatprep.subr.mxu0 0.0
    %2588 = vmatpush1.msra.mxu0 %v2562
    %2589 = vmatprep.subr.mxu0 0.0
    %2590 = vmatpush1.msra.mxu0 %v2561
    %2591 = vmatprep.subr.mxu0 0.0
    %2592 = vmatpush1.msra.mxu0 %v2560
    %2593 = vmatprep.subr.mxu0 0.0
    %2594 = vmatpush1.msra.mxu0 %v2559
    %2595 = vmatprep.subr.mxu0 0.0
    %2596 = vmatpush1.msra.mxu0 %v2558
    %2597 = vmatprep.subr.mxu0 0.0
    %2598 = vmatpush1.msra.mxu0 %v2557
    %2599 = vmatprep.subr.mxu0 0.0
    %2600 = vmatpush1.msra.mxu0 %v2556
    %2601 = vmatprep.subr.mxu0 0.0
    %2602 = vmatpush1.msra.mxu0 %v2555
    %2603 = vmatprep.subr.mxu0 0.0
    %2604 = vmatpush2.msra.mxu0 0.0
    %2605 = vmatprep.subr.mxu0 0.0
    %2606 = vmatpush2.msra.mxu0 0.0
    %2607 = vmatprep.subr.mxu0 0.0
    %2608 = vmatpush2.msra.mxu0 0.0
    %2609 = vmatprep.subr.mxu0 0.0
    %2610 = vmatpush2.msra.mxu0 0.0
    %2611 = vmatprep.subr.mxu0 0.0
    %2612 = vmatpush2.msra.mxu0 0.0
    %2613 = vmatprep.subr.mxu0 0.0
    %2614 = vmatpush2.msra.mxu0 0.0
    %2615 = vmatprep.subr.mxu0 0.0
    %2616 = vmatpush2.msra.mxu0 0.0
    %2617 = vmatprep.subr.mxu0 0.0
    %2618 = vmatpush2.msra.mxu0 0.0
    %2619 = vmatprep.subr.mxu0 0.0
    %2620 = vmatpush2.msra.mxu0 0.0
    %2621 = vmatprep.subr.mxu0 0.0
    %2622 = vmatpush2.msra.mxu0 0.0
    %2623 = vmatprep.subr.mxu0 0.0
    %2624 = vmatpush2.msra.mxu0 0.0
    %2625 = vmatprep.subr.mxu0 0.0
    %2626 = vmatpush2.msra.mxu0 0.0
    %2627 = vmatprep.subr.mxu0 0.0
    %2628 = vmatpush2.msra.mxu0 0.0
    %2629 = vmatprep.subr.mxu0 0.0
    %2630 = vmatpush2.msra.mxu0 0.0
    %2631 = vmatprep.subr.mxu0 0.0
    %2632 = vmatpush2.msra.mxu0 0.0
    %2633 = vmatprep.subr.mxu0 0.0
    %2634 = vmatpush2.msra.mxu0 0.0
    %2635 = vmatprep.mubr.f32.mxu0 0.0
    %2636 = vmatmul.mubr.f32.gmra.mxu0 %v2569
    %v2637 = vpop.f32.mrf.mxu0
    %v2638 = vadd.f32 %v2567, %v2637
    %v2639 = vpop.f32.mrf.mxu0
    %2640 = vdwg.mxu0
    %v2641 = vsel %vm2525, %v2638, 0.0
    %2642 = vadd.xlane.f32.xlu0 %v2641
    %v2643 = vpop.xlane.xlu0 %2642
    %v2644 = vmul.f32 %v2643, %v2529
    %v2645 = vmul.f32 %v2638, %v2638
    %v2646 = vsel %vm2525, %v2645, 0.0
    %2647 = vadd.xlane.f32.xlu0 %v2646
    %v2648 = vpop.xlane.xlu0 %2647
    %v2649 = vmul.f32 %v2648, %v2529
    %v2650 = vmul.f32 %v2644, %v2644
    %v2651 = vsub.f32 %v2649, %v2650
    %v2652 = vsub.f32 %v2638, %v2644
    %v2653 = vadd.f32 %v2651, 1e-05
    %v2654 = vrsqrt.pop %v2653
    %v2655 = vmul.f32 %v2652, %v2654
    %v2656 = vld [vmem:[#allocation2 + $0x247] sm:$0x1]
    %v2657 = vlaneseq
    %v2658 = vshrl.u32 %v2657, 7
    %v2659 = vsub.s32 0, %v2658
    %v2660 = vrot.slane %v2656, %v2659
    %v2661 = vmul.f32 %v2655, %v2660
    %v2662 = vld [vmem:[#allocation2 + $0x248] sm:$0x1]
    %v2663 = vlaneseq
    %v2664 = vshrl.u32 %v2663, 7
    %v2665 = vsub.s32 0, %v2664
    %v2666 = vrot.slane %v2662, %v2665
    %v2667 = vadd.f32 %v2661, %v2666
    %v2668 = vxor.u32 %v2667, 2147483648
    %v2669 = vmul.f32 %v2668, 1.442695
    %v2670 = vpow.pop %v2669
    %v2671 = vadd.f32 %v2670, 1.0
    %v2672 = vrcp.pop %v2671
    %v2673 = vmul.f32 1.0, %v2672
    %v2675 = vrot.slane %v2673, 1
    %v2676 = vrot.slane %v2673, 2
    %2677 = vrot.lane.b32.xlu0 %v2675, 96
    %v2678 = vpop.permute.xlu0 %2677
    %2679 = vrot.lane.b32.xlu0 %v2676, 96
    %v2680 = vpop.permute.xlu0 %2679
    %v2683 = vmul.f32 %v2411, %v2678
    %v2684 = vmul.f32 %v2412, %v2680
    %2685 = vrot.lane.b32.xlu0 %v2673, 96
    %v2686 = vpop.permute.xlu0 %2685
    %v2688 = vmul.f32 %v2417, %v2686
    %v2691 = vrot.slane %v2684, 7
    %2692 = vrot.lane.b32.xlu0 %v2683, 32
    %v2693 = vpop.permute.xlu0 %2692
    %2694 = vrot.lane.b32.xlu0 %v2691, 32
    %v2695 = vpop.permute.xlu0 %2694
    %v2699 = vrot.slane %v2688, 1
    %2700 = vrot.lane.b32.xlu0 %v2699, 32
    %v2701 = vpop.permute.xlu0 %2700
    %v2703 = vsel %vm119, %v2693, %v2701
    %v2704 = vsel %vm119, %v2695, %v2701
    %v2705 = vld [vmem:[#allocation2 + $0x128] sm:$0xff]
    %v2706 = vld [vmem:[#allocation2 + $0x130] sm:$0xff]
    %v2707 = vld [vmem:[#allocation2 + $0x138] sm:$0xff]
    %v2708 = vld [vmem:[#allocation2 + $0x140] sm:$0xff]
    %v2709 = vld [vmem:[#allocation2 + $0x148] sm:$0xff]
    %v2710 = vld [vmem:[#allocation2 + $0x150] sm:$0xff]
    %v2711 = vld [vmem:[#allocation2 + $0x158] sm:$0xff]
    %v2712 = vld [vmem:[#allocation2 + $0x160] sm:$0xff]
    %v2713 = vld [vmem:[#allocation2 + $0x249] sm:$0x1]
    %v2714 = vlaneseq
    %v2715 = vshrl.u32 %v2714, 7
    %v2716 = vsub.s32 0, %v2715
    %v2717 = vrot.slane %v2713, %v2716
    %v2720 = vrot.slane %v2703, 7
    %v2721 = vrot.slane %v2704, 7
    %v2722 = vsel %vm2448, %v2720, %v2721
    %v2723 = vsel %vm2452, %v2722, 0
    %2725 = vmatprep.subr.mxu0 0.0
    %2726 = vmatpush1.msra.mxu0 0.0
    %2727 = vmatprep.subr.mxu0 0.0
    %2728 = vmatpush1.msra.mxu0 0.0
    %2729 = vmatprep.subr.mxu0 0.0
    %2730 = vmatpush1.msra.mxu0 0.0
    %2731 = vmatprep.subr.mxu0 0.0
    %2732 = vmatpush1.msra.mxu0 0.0
    %2733 = vmatprep.subr.mxu0 0.0
    %2734 = vmatpush1.msra.mxu0 0.0
    %2735 = vmatprep.subr.mxu0 0.0
    %2736 = vmatpush1.msra.mxu0 0.0
    %2737 = vmatprep.subr.mxu0 0.0
    %2738 = vmatpush1.msra.mxu0 0.0
    %2739 = vmatprep.subr.mxu0 0.0
    %2740 = vmatpush1.msra.mxu0 0.0
    %2741 = vmatprep.subr.mxu0 0.0
    %2742 = vmatpush1.msra.mxu0 %v2712
    %2743 = vmatprep.subr.mxu0 0.0
    %2744 = vmatpush1.msra.mxu0 %v2711
    %2745 = vmatprep.subr.mxu0 0.0
    %2746 = vmatpush1.msra.mxu0 %v2710
    %2747 = vmatprep.subr.mxu0 0.0
    %2748 = vmatpush1.msra.mxu0 %v2709
    %2749 = vmatprep.subr.mxu0 0.0
    %2750 = vmatpush1.msra.mxu0 %v2708
    %2751 = vmatprep.subr.mxu0 0.0
    %2752 = vmatpush1.msra.mxu0 %v2707
    %2753 = vmatprep.subr.mxu0 0.0
    %2754 = vmatpush1.msra.mxu0 %v2706
    %2755 = vmatprep.subr.mxu0 0.0
    %2756 = vmatpush1.msra.mxu0 %v2705
    %2757 = vmatprep.subr.mxu0 0.0
    %2758 = vmatpush2.msra.mxu0 0.0
    %2759 = vmatprep.subr.mxu0 0.0
    %2760 = vmatpush2.msra.mxu0 0.0
    %2761 = vmatprep.subr.mxu0 0.0
    %2762 = vmatpush2.msra.mxu0 0.0
    %2763 = vmatprep.subr.mxu0 0.0
    %2764 = vmatpush2.msra.mxu0 0.0
    %2765 = vmatprep.subr.mxu0 0.0
    %2766 = vmatpush2.msra.mxu0 0.0
    %2767 = vmatprep.subr.mxu0 0.0
    %2768 = vmatpush2.msra.mxu0 0.0
    %2769 = vmatprep.subr.mxu0 0.0
    %2770 = vmatpush2.msra.mxu0 0.0
    %2771 = vmatprep.subr.mxu0 0.0
    %2772 = vmatpush2.msra.mxu0 0.0
    %2773 = vmatprep.subr.mxu0 0.0
    %2774 = vmatpush2.msra.mxu0 0.0
    %2775 = vmatprep.subr.mxu0 0.0
    %2776 = vmatpush2.msra.mxu0 0.0
    %2777 = vmatprep.subr.mxu0 0.0
    %2778 = vmatpush2.msra.mxu0 0.0
    %2779 = vmatprep.subr.mxu0 0.0
    %2780 = vmatpush2.msra.mxu0 0.0
    %2781 = vmatprep.subr.mxu0 0.0
    %2782 = vmatpush2.msra.mxu0 0.0
    %2783 = vmatprep.subr.mxu0 0.0
    %2784 = vmatpush2.msra.mxu0 0.0
    %2785 = vmatprep.subr.mxu0 0.0
    %2786 = vmatpush2.msra.mxu0 0.0
    %2787 = vmatprep.subr.mxu0 0.0
    %2788 = vmatpush2.msra.mxu0 0.0
    %2789 = vmatprep.mubr.f32.mxu0 0.0
    %2790 = vmatmul.mubr.f32.gmra.mxu0 %v2723
    %v2791 = vpop.f32.mrf.mxu0
    %v2792 = vadd.f32 %v2717, %v2791
    %v2793 = vpop.f32.mrf.mxu0
    %2794 = vdwg.mxu0
    %vm2795 = vcmask 254976
    %v2796 = vsel %vm2795, %v2792, 0.0
    %2797 = vadd.xlane.f32.xlu0 %v2796
    %v2798 = vpop.xlane.xlu0 %2797
    %v2799 = vmul.f32 %v2798, %v126
    %v2800 = vmul.f32 %v2792, %v2792
    %v2801 = vsel %vm2795, %v2800, 0.0
    %2802 = vadd.xlane.f32.xlu0 %v2801
    %v2803 = vpop.xlane.xlu0 %2802
    %v2804 = vmul.f32 %v2803, %v126
    %v2805 = vmul.f32 %v2799, %v2799
    %v2806 = vsub.f32 %v2804, %v2805
    %v2807 = vsub.f32 %v2792, %v2799
    %v2808 = vadd.f32 %v2806, 1e-05
    %v2809 = vrsqrt.pop %v2808
    %v2810 = vmul.f32 %v2807, %v2809
    %v2811 = vld [vmem:[#allocation2 + $0x24a] sm:$0x1]
    %v2812 = vlaneseq
    %v2813 = vshrl.u32 %v2812, 7
    %v2814 = vsub.s32 0, %v2813
    %v2815 = vrot.slane %v2811, %v2814
    %v2816 = vmul.f32 %v2810, %v2815
    %v2817 = vld [vmem:[#allocation2 + $0x24b] sm:$0x1]
    %v2818 = vlaneseq
    %v2819 = vshrl.u32 %v2818, 7
    %v2820 = vsub.s32 0, %v2819
    %v2821 = vrot.slane %v2817, %v2820
    %v2822 = vadd.f32 %v2816, %v2821
    %v2823 = vmax.f32 %v2822, 0.0
    %v2824 = vld [vmem:[#allocation2 + $0x252] sm:$0x1]
    %v2825 = vld [vmem:[#allocation2 + $0x168] sm:$0xff]
    %v2826 = vld [vmem:[#allocation2 + $0x170] sm:$0xff]
    %v2827 = vld [vmem:[#allocation2 + $0x178] sm:$0xff]
    %v2828 = vld [vmem:[#allocation2 + $0x180] sm:$0xff]
    %v2829 = vld [vmem:[#allocation2 + $0x24c] sm:$0x1]
    %v2830 = vlaneseq
    %v2831 = vshrl.u32 %v2830, 7
    %v2832 = vsub.s32 0, %v2831
    %v2833 = vrot.slane %v2829, %v2832
    %v2835 = vsel %vm119, %v2823, 0
    %2837 = vmatprep.subr.mxu0 0.0
    %2838 = vmatpush1.msra.mxu0 0.0
    %2839 = vmatprep.subr.mxu0 0.0
    %2840 = vmatpush1.msra.mxu0 0.0
    %2841 = vmatprep.subr.mxu0 0.0
    %2842 = vmatpush1.msra.mxu0 0.0
    %2843 = vmatprep.subr.mxu0 0.0
    %2844 = vmatpush1.msra.mxu0 0.0
    %2845 = vmatprep.subr.mxu0 0.0
    %2846 = vmatpush1.msra.mxu0 0.0
    %2847 = vmatprep.subr.mxu0 0.0
    %2848 = vmatpush1.msra.mxu0 0.0
    %2849 = vmatprep.subr.mxu0 0.0
    %2850 = vmatpush1.msra.mxu0 0.0
    %2851 = vmatprep.subr.mxu0 0.0
    %2852 = vmatpush1.msra.mxu0 0.0
    %2853 = vmatprep.subr.mxu0 0.0
    %2854 = vmatpush1.msra.mxu0 0.0
    %2855 = vmatprep.subr.mxu0 0.0
    %2856 = vmatpush1.msra.mxu0 0.0
    %2857 = vmatprep.subr.mxu0 0.0
    %2858 = vmatpush1.msra.mxu0 0.0
    %2859 = vmatprep.subr.mxu0 0.0
    %2860 = vmatpush1.msra.mxu0 0.0
    %2861 = vmatprep.subr.mxu0 0.0
    %2862 = vmatpush1.msra.mxu0 %v2828
    %2863 = vmatprep.subr.mxu0 0.0
    %2864 = vmatpush1.msra.mxu0 %v2827
    %2865 = vmatprep.subr.mxu0 0.0
    %2866 = vmatpush1.msra.mxu0 %v2826
    %2867 = vmatprep.subr.mxu0 0.0
    %2868 = vmatpush1.msra.mxu0 %v2825
    %2869 = vmatprep.subr.mxu0 0.0
    %2870 = vmatpush2.msra.mxu0 0.0
    %2871 = vmatprep.subr.mxu0 0.0
    %2872 = vmatpush2.msra.mxu0 0.0
    %2873 = vmatprep.subr.mxu0 0.0
    %2874 = vmatpush2.msra.mxu0 0.0
    %2875 = vmatprep.subr.mxu0 0.0
    %2876 = vmatpush2.msra.mxu0 0.0
    %2877 = vmatprep.subr.mxu0 0.0
    %2878 = vmatpush2.msra.mxu0 0.0
    %2879 = vmatprep.subr.mxu0 0.0
    %2880 = vmatpush2.msra.mxu0 0.0
    %2881 = vmatprep.subr.mxu0 0.0
    %2882 = vmatpush2.msra.mxu0 0.0
    %2883 = vmatprep.subr.mxu0 0.0
    %2884 = vmatpush2.msra.mxu0 0.0
    %2885 = vmatprep.subr.mxu0 0.0
    %2886 = vmatpush2.msra.mxu0 0.0
    %2887 = vmatprep.subr.mxu0 0.0
    %2888 = vmatpush2.msra.mxu0 0.0
    %2889 = vmatprep.subr.mxu0 0.0
    %2890 = vmatpush2.msra.mxu0 0.0
    %2891 = vmatprep.subr.mxu0 0.0
    %2892 = vmatpush2.msra.mxu0 0.0
    %2893 = vmatprep.subr.mxu0 0.0
    %2894 = vmatpush2.msra.mxu0 0.0
    %2895 = vmatprep.subr.mxu0 0.0
    %2896 = vmatpush2.msra.mxu0 0.0
    %2897 = vmatprep.subr.mxu0 0.0
    %2898 = vmatpush2.msra.mxu0 0.0
    %2899 = vmatprep.subr.mxu0 0.0
    %2900 = vmatpush2.msra.mxu0 0.0
    %2901 = vmatprep.mubr.f32.mxu0 0.0
    %2902 = vmatmul.mubr.f32.gmra.mxu0 %v2835
    %v2903 = vpop.f32.mrf.mxu0
    %v2904 = vadd.f32 %v2833, %v2903
    %v2905 = vpop.f32.mrf.mxu0
    %2906 = vdwg.mxu0
    %v2907 = vsel %vm2525, %v2904, 0.0
    %2908 = vadd.xlane.f32.xlu0 %v2907
    %v2909 = vpop.xlane.xlu0 %2908
    %v2910 = vmul.f32 %v2909, %v2529
    %v2911 = vmul.f32 %v2904, %v2904
    %v2912 = vsel %vm2525, %v2911, 0.0
    %2913 = vadd.xlane.f32.xlu0 %v2912
    %v2914 = vpop.xlane.xlu0 %2913
    %v2915 = vmul.f32 %v2914, %v2529
    %v2916 = vmul.f32 %v2910, %v2910
    %v2917 = vsub.f32 %v2915, %v2916
    %v2918 = vsub.f32 %v2904, %v2910
    %v2919 = vadd.f32 %v2917, 1e-05
    %v2920 = vrsqrt.pop %v2919
    %v2921 = vmul.f32 %v2918, %v2920
    %v2922 = vld [vmem:[#allocation2 + $0x24d] sm:$0x1]
    %v2923 = vlaneseq
    %v2924 = vshrl.u32 %v2923, 7
    %v2925 = vsub.s32 0, %v2924
    %v2926 = vrot.slane %v2922, %v2925
    %v2927 = vmul.f32 %v2921, %v2926
    %v2928 = vld [vmem:[#allocation2 + $0x24e] sm:$0x1]
    %v2929 = vlaneseq
    %v2930 = vshrl.u32 %v2929, 7
    %v2931 = vsub.s32 0, %v2930
    %v2932 = vrot.slane %v2928, %v2931
    %v2933 = vadd.f32 %v2927, %v2932
    %v2934 = vmax.f32 %v2933, 0.0
    %v2935 = vld [vmem:[#allocation2 + $0x188] sm:$0xff]
    %v2936 = vld [vmem:[#allocation2 + $0x190] sm:$0xff]
    %v2937 = vld [vmem:[#allocation2 + $0x198] sm:$0xff]
    %v2938 = vld [vmem:[#allocation2 + $0x1a0] sm:$0xff]
    %v2939 = vld [vmem:[#allocation2 + $0x1a8] sm:$0xff]
    %v2940 = vld [vmem:[#allocation2 + $0x1b0] sm:$0xff]
    %v2941 = vld [vmem:[#allocation2 + $0x1b8] sm:$0xff]
    %v2942 = vld [vmem:[#allocation2 + $0x1c0] sm:$0xff]
    %v2943 = vld [vmem:[#allocation2 + $0x24f] sm:$0x1]
    %v2944 = vlaneseq
    %v2945 = vshrl.u32 %v2944, 7
    %v2946 = vsub.s32 0, %v2945
    %v2947 = vrot.slane %v2943, %v2946
    %v2949 = vsel %vm2452, %v2934, 0
    %2951 = vmatprep.subr.mxu0 0.0
    %2952 = vmatpush1.msra.mxu0 0.0
    %2953 = vmatprep.subr.mxu0 0.0
    %2954 = vmatpush1.msra.mxu0 0.0
    %2955 = vmatprep.subr.mxu0 0.0
    %2956 = vmatpush1.msra.mxu0 0.0
    %2957 = vmatprep.subr.mxu0 0.0
    %2958 = vmatpush1.msra.mxu0 0.0
    %2959 = vmatprep.subr.mxu0 0.0
    %2960 = vmatpush1.msra.mxu0 0.0
    %2961 = vmatprep.subr.mxu0 0.0
    %2962 = vmatpush1.msra.mxu0 0.0
    %2963 = vmatprep.subr.mxu0 0.0
    %2964 = vmatpush1.msra.mxu0 0.0
    %2965 = vmatprep.subr.mxu0 0.0
    %2966 = vmatpush1.msra.mxu0 0.0
    %2967 = vmatprep.subr.mxu0 0.0
    %2968 = vmatpush1.msra.mxu0 %v2942
    %2969 = vmatprep.subr.mxu0 0.0
    %2970 = vmatpush1.msra.mxu0 %v2941
    %2971 = vmatprep.subr.mxu0 0.0
    %2972 = vmatpush1.msra.mxu0 %v2940
    %2973 = vmatprep.subr.mxu0 0.0
    %2974 = vmatpush1.msra.mxu0 %v2939
    %2975 = vmatprep.subr.mxu0 0.0
    %2976 = vmatpush1.msra.mxu0 %v2938
    %2977 = vmatprep.subr.mxu0 0.0
    %2978 = vmatpush1.msra.mxu0 %v2937
    %2979 = vmatprep.subr.mxu0 0.0
    %2980 = vmatpush1.msra.mxu0 %v2936
    %2981 = vmatprep.subr.mxu0 0.0
    %2982 = vmatpush1.msra.mxu0 %v2935
    %2983 = vmatprep.subr.mxu0 0.0
    %2984 = vmatpush2.msra.mxu0 0.0
    %2985 = vmatprep.subr.mxu0 0.0
    %2986 = vmatpush2.msra.mxu0 0.0
    %2987 = vmatprep.subr.mxu0 0.0
    %2988 = vmatpush2.msra.mxu0 0.0
    %2989 = vmatprep.subr.mxu0 0.0
    %2990 = vmatpush2.msra.mxu0 0.0
    %2991 = vmatprep.subr.mxu0 0.0
    %2992 = vmatpush2.msra.mxu0 0.0
    %2993 = vmatprep.subr.mxu0 0.0
    %2994 = vmatpush2.msra.mxu0 0.0
    %2995 = vmatprep.subr.mxu0 0.0
    %2996 = vmatpush2.msra.mxu0 0.0
    %2997 = vmatprep.subr.mxu0 0.0
    %2998 = vmatpush2.msra.mxu0 0.0
    %2999 = vmatprep.subr.mxu0 0.0
    %3000 = vmatpush2.msra.mxu0 0.0
    %3001 = vmatprep.subr.mxu0 0.0
    %3002 = vmatpush2.msra.mxu0 0.0
    %3003 = vmatprep.subr.mxu0 0.0
    %3004 = vmatpush2.msra.mxu0 0.0
    %3005 = vmatprep.subr.mxu0 0.0
    %3006 = vmatpush2.msra.mxu0 0.0
    %3007 = vmatprep.subr.mxu0 0.0
    %3008 = vmatpush2.msra.mxu0 0.0
    %3009 = vmatprep.subr.mxu0 0.0
    %3010 = vmatpush2.msra.mxu0 0.0
    %3011 = vmatprep.subr.mxu0 0.0
    %3012 = vmatpush2.msra.mxu0 0.0
    %3013 = vmatprep.subr.mxu0 0.0
    %3014 = vmatpush2.msra.mxu0 0.0
    %3015 = vmatprep.mubr.f32.mxu0 0.0
    %3016 = vmatmul.mubr.f32.gmra.mxu0 %v2949
    %v3017 = vpop.f32.mrf.mxu0
    %v3018 = vadd.f32 %v2947, %v3017
    %v3019 = vpop.f32.mrf.mxu0
    %3020 = vdwg.mxu0
    %v3021 = vsel %vm2795, %v3018, 0.0
    %3022 = vadd.xlane.f32.xlu0 %v3021
    %v3023 = vpop.xlane.xlu0 %3022
    %v3024 = vmul.f32 %v3023, %v126
    %v3025 = vmul.f32 %v3018, %v3018
    %v3026 = vsel %vm2795, %v3025, 0.0
    %3027 = vadd.xlane.f32.xlu0 %v3026
    %v3028 = vpop.xlane.xlu0 %3027
    %v3029 = vmul.f32 %v3028, %v126
    %v3030 = vmul.f32 %v3024, %v3024
    %v3031 = vsub.f32 %v3029, %v3030
    %v3032 = vsub.f32 %v3018, %v3024
    %v3033 = vadd.f32 %v3031, 1e-05
    %v3034 = vrsqrt.pop %v3033
    %v3035 = vmul.f32 %v3032, %v3034
    %v3036 = vld [vmem:[#allocation2 + $0x250] sm:$0x1]
    %v3037 = vlaneseq
    %v3038 = vshrl.u32 %v3037, 7
    %v3039 = vsub.s32 0, %v3038
    %v3040 = vrot.slane %v3036, %v3039
    %v3041 = vmul.f32 %v3035, %v3040
    %v3042 = vld [vmem:[#allocation2 + $0x251] sm:$0x1]
    %v3043 = vlaneseq
    %v3044 = vshrl.u32 %v3043, 7
    %v3045 = vsub.s32 0, %v3044
    %v3046 = vrot.slane %v3042, %v3045
    %v3047 = vadd.f32 %v3041, %v3046
    %s3049 = vtos %v2824
    %v3050 = vstv %s3049
    %v3052 = vmul.f32 %v3050, %v3047
    %v3053 = vadd.f32 %v2823, %v3052
    %v3055 = vsel %vm119, %v3053, 0
    %3057 = vmatprep.subr.mxu0 0.0
    %3058 = vmatpush1.msra.mxu0 0.0
    %3059 = vmatprep.subr.mxu0 0.0
    %3060 = vmatpush1.msra.mxu0 0.0
    %3061 = vmatprep.subr.mxu0 0.0
    %3062 = vmatpush1.msra.mxu0 0.0
    %3063 = vmatprep.subr.mxu0 0.0
    %3064 = vmatpush1.msra.mxu0 0.0
    %3065 = vmatprep.subr.mxu0 0.0
    %3066 = vmatpush1.msra.mxu0 0.0
    %3067 = vmatprep.subr.mxu0 0.0
    %3068 = vmatpush1.msra.mxu0 0.0
    %3069 = vmatprep.subr.mxu0 0.0
    %3070 = vmatpush1.msra.mxu0 0.0
    %3071 = vmatprep.subr.mxu0 0.0
    %3072 = vmatpush1.msra.mxu0 0.0
    %3073 = vmatprep.subr.mxu0 0.0
    %3074 = vmatpush1.msra.mxu0 0.0
    %3075 = vmatprep.subr.mxu0 0.0
    %3076 = vmatpush1.msra.mxu0 0.0
    %3077 = vmatprep.subr.mxu0 0.0
    %3078 = vmatpush1.msra.mxu0 0.0
    %3079 = vmatprep.subr.mxu0 0.0
    %3080 = vmatpush1.msra.mxu0 0.0
    %3081 = vmatprep.subr.mxu0 0.0
    %3082 = vmatpush1.msra.mxu0 %v2828
    %3083 = vmatprep.subr.mxu0 0.0
    %3084 = vmatpush1.msra.mxu0 %v2827
    %3085 = vmatprep.subr.mxu0 0.0
    %3086 = vmatpush1.msra.mxu0 %v2826
    %3087 = vmatprep.subr.mxu0 0.0
    %3088 = vmatpush1.msra.mxu0 %v2825
    %3089 = vmatprep.subr.mxu0 0.0
    %3090 = vmatpush2.msra.mxu0 0.0
    %3091 = vmatprep.subr.mxu0 0.0
    %3092 = vmatpush2.msra.mxu0 0.0
    %3093 = vmatprep.subr.mxu0 0.0
    %3094 = vmatpush2.msra.mxu0 0.0
    %3095 = vmatprep.subr.mxu0 0.0
    %3096 = vmatpush2.msra.mxu0 0.0
    %3097 = vmatprep.subr.mxu0 0.0
    %3098 = vmatpush2.msra.mxu0 0.0
    %3099 = vmatprep.subr.mxu0 0.0
    %3100 = vmatpush2.msra.mxu0 0.0
    %3101 = vmatprep.subr.mxu0 0.0
    %3102 = vmatpush2.msra.mxu0 0.0
    %3103 = vmatprep.subr.mxu0 0.0
    %3104 = vmatpush2.msra.mxu0 0.0
    %3105 = vmatprep.subr.mxu0 0.0
    %3106 = vmatpush2.msra.mxu0 0.0
    %3107 = vmatprep.subr.mxu0 0.0
    %3108 = vmatpush2.msra.mxu0 0.0
    %3109 = vmatprep.subr.mxu0 0.0
    %3110 = vmatpush2.msra.mxu0 0.0
    %3111 = vmatprep.subr.mxu0 0.0
    %3112 = vmatpush2.msra.mxu0 0.0
    %3113 = vmatprep.subr.mxu0 0.0
    %3114 = vmatpush2.msra.mxu0 0.0
    %3115 = vmatprep.subr.mxu0 0.0
    %3116 = vmatpush2.msra.mxu0 0.0
    %3117 = vmatprep.subr.mxu0 0.0
    %3118 = vmatpush2.msra.mxu0 0.0
    %3119 = vmatprep.subr.mxu0 0.0
    %3120 = vmatpush2.msra.mxu0 0.0
    %3121 = vmatprep.mubr.f32.mxu0 0.0
    %3122 = vmatmul.mubr.f32.gmra.mxu0 %v3055
    %v3123 = vpop.f32.mrf.mxu0
    %v3124 = vadd.f32 %v2833, %v3123
    %v3125 = vpop.f32.mrf.mxu0
    %3126 = vdwg.mxu0
    %v3127 = vsel %vm2525, %v3124, 0.0
    %3128 = vadd.xlane.f32.xlu0 %v3127
    %v3129 = vpop.xlane.xlu0 %3128
    %v3130 = vmul.f32 %v3129, %v2529
    %v3131 = vmul.f32 %v3124, %v3124
    %v3132 = vsel %vm2525, %v3131, 0.0
    %3133 = vadd.xlane.f32.xlu0 %v3132
    %v3134 = vpop.xlane.xlu0 %3133
    %v3135 = vmul.f32 %v3134, %v2529
    %v3136 = vmul.f32 %v3130, %v3130
    %v3137 = vsub.f32 %v3135, %v3136
    %v3138 = vsub.f32 %v3124, %v3130
    %v3139 = vadd.f32 %v3137, 1e-05
    %v3140 = vrsqrt.pop %v3139
    %v3141 = vmul.f32 %v3138, %v3140
    %v3142 = vmul.f32 %v3141, %v2926
    %v3143 = vadd.f32 %v3142, %v2932
    %v3144 = vmax.f32 %v3143, 0.0
    %v3146 = vsel %vm2452, %v3144, 0
    %3148 = vmatprep.subr.mxu0 0.0
    %3149 = vmatpush1.msra.mxu0 0.0
    %3150 = vmatprep.subr.mxu0 0.0
    %3151 = vmatpush1.msra.mxu0 0.0
    %3152 = vmatprep.subr.mxu0 0.0
    %3153 = vmatpush1.msra.mxu0 0.0
    %3154 = vmatprep.subr.mxu0 0.0
    %3155 = vmatpush1.msra.mxu0 0.0
    %3156 = vmatprep.subr.mxu0 0.0
    %3157 = vmatpush1.msra.mxu0 0.0
    %3158 = vmatprep.subr.mxu0 0.0
    %3159 = vmatpush1.msra.mxu0 0.0
    %3160 = vmatprep.subr.mxu0 0.0
    %3161 = vmatpush1.msra.mxu0 0.0
    %3162 = vmatprep.subr.mxu0 0.0
    %3163 = vmatpush1.msra.mxu0 0.0
    %3164 = vmatprep.subr.mxu0 0.0
    %3165 = vmatpush1.msra.mxu0 %v2942
    %3166 = vmatprep.subr.mxu0 0.0
    %3167 = vmatpush1.msra.mxu0 %v2941
    %3168 = vmatprep.subr.mxu0 0.0
    %3169 = vmatpush1.msra.mxu0 %v2940
    %3170 = vmatprep.subr.mxu0 0.0
    %3171 = vmatpush1.msra.mxu0 %v2939
    %3172 = vmatprep.subr.mxu0 0.0
    %3173 = vmatpush1.msra.mxu0 %v2938
    %3174 = vmatprep.subr.mxu0 0.0
    %3175 = vmatpush1.msra.mxu0 %v2937
    %3176 = vmatprep.subr.mxu0 0.0
    %3177 = vmatpush1.msra.mxu0 %v2936
    %3178 = vmatprep.subr.mxu0 0.0
    %3179 = vmatpush1.msra.mxu0 %v2935
    %3180 = vmatprep.subr.mxu0 0.0
    %3181 = vmatpush2.msra.mxu0 0.0
    %3182 = vmatprep.subr.mxu0 0.0
    %3183 = vmatpush2.msra.mxu0 0.0
    %3184 = vmatprep.subr.mxu0 0.0
    %3185 = vmatpush2.msra.mxu0 0.0
    %3186 = vmatprep.subr.mxu0 0.0
    %3187 = vmatpush2.msra.mxu0 0.0
    %3188 = vmatprep.subr.mxu0 0.0
    %3189 = vmatpush2.msra.mxu0 0.0
    %3190 = vmatprep.subr.mxu0 0.0
    %3191 = vmatpush2.msra.mxu0 0.0
    %3192 = vmatprep.subr.mxu0 0.0
    %3193 = vmatpush2.msra.mxu0 0.0
    %3194 = vmatprep.subr.mxu0 0.0
    %3195 = vmatpush2.msra.mxu0 0.0
    %3196 = vmatprep.subr.mxu0 0.0
    %3197 = vmatpush2.msra.mxu0 0.0
    %3198 = vmatprep.subr.mxu0 0.0
    %3199 = vmatpush2.msra.mxu0 0.0
    %3200 = vmatprep.subr.mxu0 0.0
    %3201 = vmatpush2.msra.mxu0 0.0
    %3202 = vmatprep.subr.mxu0 0.0
    %3203 = vmatpush2.msra.mxu0 0.0
    %3204 = vmatprep.subr.mxu0 0.0
    %3205 = vmatpush2.msra.mxu0 0.0
    %3206 = vmatprep.subr.mxu0 0.0
    %3207 = vmatpush2.msra.mxu0 0.0
    %3208 = vmatprep.subr.mxu0 0.0
    %3209 = vmatpush2.msra.mxu0 0.0
    %3210 = vmatprep.subr.mxu0 0.0
    %3211 = vmatpush2.msra.mxu0 0.0
    %3212 = vmatprep.mubr.f32.mxu0 0.0
    %3213 = vmatmul.mubr.f32.gmra.mxu0 %v3146
    %v3214 = vpop.f32.mrf.mxu0
    %v3215 = vadd.f32 %v2947, %v3214
    %v3216 = vpop.f32.mrf.mxu0
    %3217 = vdwg.mxu0
    %v3218 = vsel %vm2795, %v3215, 0.0
    %3219 = vadd.xlane.f32.xlu0 %v3218
    %v3220 = vpop.xlane.xlu0 %3219
    %v3221 = vmul.f32 %v3220, %v126
    %v3222 = vmul.f32 %v3215, %v3215
    %v3223 = vsel %vm2795, %v3222, 0.0
    %3224 = vadd.xlane.f32.xlu0 %v3223
    %v3225 = vpop.xlane.xlu0 %3224
    %v3226 = vmul.f32 %v3225, %v126
    %v3227 = vmul.f32 %v3221, %v3221
    %v3228 = vsub.f32 %v3226, %v3227
    %v3229 = vsub.f32 %v3215, %v3221
    %v3230 = vadd.f32 %v3228, 1e-05
    %v3231 = vrsqrt.pop %v3230
    %v3232 = vmul.f32 %v3229, %v3231
    %v3233 = vmul.f32 %v3232, %v3040
    %v3234 = vadd.f32 %v3233, %v3046
    %v3235 = vmul.f32 %v3050, %v3234
    %v3236 = vadd.f32 %v3053, %v3235
    %v3237 = vld [vmem:[#allocation2 + $0x1c8] sm:$0xff]
    %v3238 = vld [vmem:[#allocation2 + $0x1d0] sm:$0xff]
    %v3239 = vld [vmem:[#allocation2 + $0x1d8] sm:$0xff]
    %v3240 = vld [vmem:[#allocation2 + $0x1e0] sm:$0xff]
    %v3241 = vld [vmem:[#allocation2 + $0x253] sm:$0x1]
    %v3242 = vlaneseq
    %v3243 = vshrl.u32 %v3242, 7
    %v3244 = vsub.s32 0, %v3243
    %v3245 = vrot.slane %v3241, %v3244
    %v3247 = vsel %vm119, %v3236, 0
    %3249 = vmatprep.subr.mxu0 0.0
    %3250 = vmatpush1.msra.mxu0 0.0
    %3251 = vmatprep.subr.mxu0 0.0
    %3252 = vmatpush1.msra.mxu0 0.0
    %3253 = vmatprep.subr.mxu0 0.0
    %3254 = vmatpush1.msra.mxu0 0.0
    %3255 = vmatprep.subr.mxu0 0.0
    %3256 = vmatpush1.msra.mxu0 0.0
    %3257 = vmatprep.subr.mxu0 0.0
    %3258 = vmatpush1.msra.mxu0 0.0
    %3259 = vmatprep.subr.mxu0 0.0
    %3260 = vmatpush1.msra.mxu0 0.0
    %3261 = vmatprep.subr.mxu0 0.0
    %3262 = vmatpush1.msra.mxu0 0.0
    %3263 = vmatprep.subr.mxu0 0.0
    %3264 = vmatpush1.msra.mxu0 0.0
    %3265 = vmatprep.subr.mxu0 0.0
    %3266 = vmatpush1.msra.mxu0 0.0
    %3267 = vmatprep.subr.mxu0 0.0
    %3268 = vmatpush1.msra.mxu0 0.0
    %3269 = vmatprep.subr.mxu0 0.0
    %3270 = vmatpush1.msra.mxu0 0.0
    %3271 = vmatprep.subr.mxu0 0.0
    %3272 = vmatpush1.msra.mxu0 0.0
    %3273 = vmatprep.subr.mxu0 0.0
    %3274 = vmatpush1.msra.mxu0 %v3240
    %3275 = vmatprep.subr.mxu0 0.0
    %3276 = vmatpush1.msra.mxu0 %v3239
    %3277 = vmatprep.subr.mxu0 0.0
    %3278 = vmatpush1.msra.mxu0 %v3238
    %3279 = vmatprep.subr.mxu0 0.0
    %3280 = vmatpush1.msra.mxu0 %v3237
    %3281 = vmatprep.subr.mxu0 0.0
    %3282 = vmatpush2.msra.mxu0 0.0
    %3283 = vmatprep.subr.mxu0 0.0
    %3284 = vmatpush2.msra.mxu0 0.0
    %3285 = vmatprep.subr.mxu0 0.0
    %3286 = vmatpush2.msra.mxu0 0.0
    %3287 = vmatprep.subr.mxu0 0.0
    %3288 = vmatpush2.msra.mxu0 0.0
    %3289 = vmatprep.subr.mxu0 0.0
    %3290 = vmatpush2.msra.mxu0 0.0
    %3291 = vmatprep.subr.mxu0 0.0
    %3292 = vmatpush2.msra.mxu0 0.0
    %3293 = vmatprep.subr.mxu0 0.0
    %3294 = vmatpush2.msra.mxu0 0.0
    %3295 = vmatprep.subr.mxu0 0.0
    %3296 = vmatpush2.msra.mxu0 0.0
    %3297 = vmatprep.subr.mxu0 0.0
    %3298 = vmatpush2.msra.mxu0 0.0
    %3299 = vmatprep.subr.mxu0 0.0
    %3300 = vmatpush2.msra.mxu0 0.0
    %3301 = vmatprep.subr.mxu0 0.0
    %3302 = vmatpush2.msra.mxu0 0.0
    %3303 = vmatprep.subr.mxu0 0.0
    %3304 = vmatpush2.msra.mxu0 0.0
    %3305 = vmatprep.subr.mxu0 0.0
    %3306 = vmatpush2.msra.mxu0 0.0
    %3307 = vmatprep.subr.mxu0 0.0
    %3308 = vmatpush2.msra.mxu0 0.0
    %3309 = vmatprep.subr.mxu0 0.0
    %3310 = vmatpush2.msra.mxu0 0.0
    %3311 = vmatprep.subr.mxu0 0.0
    %3312 = vmatpush2.msra.mxu0 0.0
    %3313 = vmatprep.mubr.f32.mxu0 0.0
    %3314 = vmatmul.mubr.f32.gmra.mxu0 %v3247
    %v3315 = vpop.f32.mrf.mxu0
    %v3316 = vadd.f32 %v3245, %v3315
    %v3317 = vpop.f32.mrf.mxu0
    %3318 = vdwg.mxu0
    %v3319 = vsel %vm2795, %v3316, 0.0
    %3320 = vadd.xlane.f32.xlu0 %v3319
    %v3321 = vpop.xlane.xlu0 %3320
    %v3322 = vmul.f32 %v3321, %v126
    %v3323 = vmul.f32 %v3316, %v3316
    %v3324 = vsel %vm2795, %v3323, 0.0
    %3325 = vadd.xlane.f32.xlu0 %v3324
    %v3326 = vpop.xlane.xlu0 %3325
    %v3327 = vmul.f32 %v3326, %v126
    %v3328 = vmul.f32 %v3322, %v3322
    %v3329 = vsub.f32 %v3327, %v3328
    %v3330 = vsub.f32 %v3316, %v3322
    %v3331 = vadd.f32 %v3329, 1e-05
    %v3332 = vrsqrt.pop %v3331
    %v3333 = vmul.f32 %v3330, %v3332
    %v3334 = vld [vmem:[#allocation2 + $0x254] sm:$0x1]
    %v3335 = vlaneseq
    %v3336 = vshrl.u32 %v3335, 7
    %v3337 = vsub.s32 0, %v3336
    %v3338 = vrot.slane %v3334, %v3337
    %v3339 = vmul.f32 %v3333, %v3338
    %v3340 = vld [vmem:[#allocation2 + $0x255] sm:$0x1]
    %v3341 = vlaneseq
    %v3342 = vshrl.u32 %v3341, 7
    %v3343 = vsub.s32 0, %v3342
    %v3344 = vrot.slane %v3340, %v3343
    %v3345 = vadd.f32 %v3339, %v3344
    %v3346 = vmax.f32 %v3345, 0.0
    %v3347 = vld [vmem:[#allocation2 + $0x1e8] sm:$0xff]
    %v3348 = vld [vmem:[#allocation2 + $0x1f0] sm:$0xff]
    %v3349 = vld [vmem:[#allocation2 + $0x1f8] sm:$0xff]
    %v3350 = vld [vmem:[#allocation2 + $0x200] sm:$0xff]
    %v3351 = vld [vmem:[#allocation2 + $0x256] sm:$0x1]
    %v3352 = vlaneseq
    %v3353 = vshrl.u32 %v3352, 7
    %v3354 = vsub.s32 0, %v3353
    %v3355 = vrot.slane %v3351, %v3354
    %v3357 = vsel %vm119, %v3346, 0
    %3359 = vmatprep.subr.mxu0 0.0
    %3360 = vmatpush1.msra.mxu0 0.0
    %3361 = vmatprep.subr.mxu0 0.0
    %3362 = vmatpush1.msra.mxu0 0.0
    %3363 = vmatprep.subr.mxu0 0.0
    %3364 = vmatpush1.msra.mxu0 0.0
    %3365 = vmatprep.subr.mxu0 0.0
    %3366 = vmatpush1.msra.mxu0 0.0
    %3367 = vmatprep.subr.mxu0 0.0
    %3368 = vmatpush1.msra.mxu0 0.0
    %3369 = vmatprep.subr.mxu0 0.0
    %3370 = vmatpush1.msra.mxu0 0.0
    %3371 = vmatprep.subr.mxu0 0.0
    %3372 = vmatpush1.msra.mxu0 0.0
    %3373 = vmatprep.subr.mxu0 0.0
    %3374 = vmatpush1.msra.mxu0 0.0
    %3375 = vmatprep.subr.mxu0 0.0
    %3376 = vmatpush1.msra.mxu0 0.0
    %3377 = vmatprep.subr.mxu0 0.0
    %3378 = vmatpush1.msra.mxu0 0.0
    %3379 = vmatprep.subr.mxu0 0.0
    %3380 = vmatpush1.msra.mxu0 0.0
    %3381 = vmatprep.subr.mxu0 0.0
    %3382 = vmatpush1.msra.mxu0 0.0
    %3383 = vmatprep.subr.mxu0 0.0
    %3384 = vmatpush1.msra.mxu0 %v3350
    %3385 = vmatprep.subr.mxu0 0.0
    %3386 = vmatpush1.msra.mxu0 %v3349
    %3387 = vmatprep.subr.mxu0 0.0
    %3388 = vmatpush1.msra.mxu0 %v3348
    %3389 = vmatprep.subr.mxu0 0.0
    %3390 = vmatpush1.msra.mxu0 %v3347
    %3391 = vmatprep.subr.mxu0 0.0
    %3392 = vmatpush2.msra.mxu0 0.0
    %3393 = vmatprep.subr.mxu0 0.0
    %3394 = vmatpush2.msra.mxu0 0.0
    %3395 = vmatprep.subr.mxu0 0.0
    %3396 = vmatpush2.msra.mxu0 0.0
    %3397 = vmatprep.subr.mxu0 0.0
    %3398 = vmatpush2.msra.mxu0 0.0
    %3399 = vmatprep.subr.mxu0 0.0
    %3400 = vmatpush2.msra.mxu0 0.0
    %3401 = vmatprep.subr.mxu0 0.0
    %3402 = vmatpush2.msra.mxu0 0.0
    %3403 = vmatprep.subr.mxu0 0.0
    %3404 = vmatpush2.msra.mxu0 0.0
    %3405 = vmatprep.subr.mxu0 0.0
    %3406 = vmatpush2.msra.mxu0 0.0
    %3407 = vmatprep.subr.mxu0 0.0
    %3408 = vmatpush2.msra.mxu0 0.0
    %3409 = vmatprep.subr.mxu0 0.0
    %3410 = vmatpush2.msra.mxu0 0.0
    %3411 = vmatprep.subr.mxu0 0.0
    %3412 = vmatpush2.msra.mxu0 0.0
    %3413 = vmatprep.subr.mxu0 0.0
    %3414 = vmatpush2.msra.mxu0 0.0
    %3415 = vmatprep.subr.mxu0 0.0
    %3416 = vmatpush2.msra.mxu0 0.0
    %3417 = vmatprep.subr.mxu0 0.0
    %3418 = vmatpush2.msra.mxu0 0.0
    %3419 = vmatprep.subr.mxu0 0.0
    %3420 = vmatpush2.msra.mxu0 0.0
    %3421 = vmatprep.subr.mxu0 0.0
    %3422 = vmatpush2.msra.mxu0 0.0
    %3423 = vmatprep.mubr.f32.mxu0 0.0
    %3424 = vmatmul.mubr.f32.gmra.mxu0 %v3357
    %v3425 = vpop.f32.mrf.mxu0
    %v3426 = vadd.f32 %v3355, %v3425
    %v3427 = vpop.f32.mrf.mxu0
    %3428 = vdwg.mxu0
    %v3429 = vmax.f32 %v3426, 0.0
    %v3430 = vld [vmem:[#allocation2 + $0x208] sm:$0xff]
    %v3431 = vld [vmem:[#allocation2 + $0x210] sm:$0xff]
    %v3432 = vld [vmem:[#allocation2 + $0x218] sm:$0xff]
    %v3433 = vld [vmem:[#allocation2 + $0x220] sm:$0xff]
    %v3434 = vld [vmem:[#allocation2 + $0x257] sm:$0x1]
    %v3435 = vlaneseq
    %v3436 = vshrl.u32 %v3435, 7
    %v3437 = vsub.s32 0, %v3436
    %v3438 = vrot.slane %v3434, %v3437
    %3440 = vrot.lane.b32.xlu0 %v3429, 124
    %v3441 = vpop.permute.xlu0 %3440
    %v3442 = vsel %vm119, %v3441, 0
    %3444 = vmatprep.subr.mxu0 0.0
    %3445 = vmatpush1.msra.mxu0 0.0
    %3446 = vmatprep.subr.mxu0 0.0
    %3447 = vmatpush1.msra.mxu0 0.0
    %3448 = vmatprep.subr.mxu0 0.0
    %3449 = vmatpush1.msra.mxu0 0.0
    %3450 = vmatprep.subr.mxu0 0.0
    %3451 = vmatpush1.msra.mxu0 0.0
    %3452 = vmatprep.subr.mxu0 0.0
    %3453 = vmatpush1.msra.mxu0 0.0
    %3454 = vmatprep.subr.mxu0 0.0
    %3455 = vmatpush1.msra.mxu0 0.0
    %3456 = vmatprep.subr.mxu0 0.0
    %3457 = vmatpush1.msra.mxu0 0.0
    %3458 = vmatprep.subr.mxu0 0.0
    %3459 = vmatpush1.msra.mxu0 0.0
    %3460 = vmatprep.subr.mxu0 0.0
    %3461 = vmatpush1.msra.mxu0 0.0
    %3462 = vmatprep.subr.mxu0 0.0
    %3463 = vmatpush1.msra.mxu0 0.0
    %3464 = vmatprep.subr.mxu0 0.0
    %3465 = vmatpush1.msra.mxu0 0.0
    %3466 = vmatprep.subr.mxu0 0.0
    %3467 = vmatpush1.msra.mxu0 0.0
    %3468 = vmatprep.subr.mxu0 0.0
    %3469 = vmatpush1.msra.mxu0 %v3433
    %3470 = vmatprep.subr.mxu0 0.0
    %3471 = vmatpush1.msra.mxu0 %v3432
    %3472 = vmatprep.subr.mxu0 0.0
    %3473 = vmatpush1.msra.mxu0 %v3431
    %3474 = vmatprep.subr.mxu0 0.0
    %3475 = vmatpush1.msra.mxu0 %v3430
    %3476 = vmatprep.subr.mxu0 0.0
    %3477 = vmatpush2.msra.mxu0 0.0
    %3478 = vmatprep.subr.mxu0 0.0
    %3479 = vmatpush2.msra.mxu0 0.0
    %3480 = vmatprep.subr.mxu0 0.0
    %3481 = vmatpush2.msra.mxu0 0.0
    %3482 = vmatprep.subr.mxu0 0.0
    %3483 = vmatpush2.msra.mxu0 0.0
    %3484 = vmatprep.subr.mxu0 0.0
    %3485 = vmatpush2.msra.mxu0 0.0
    %3486 = vmatprep.subr.mxu0 0.0
    %3487 = vmatpush2.msra.mxu0 0.0
    %3488 = vmatprep.subr.mxu0 0.0
    %3489 = vmatpush2.msra.mxu0 0.0
    %3490 = vmatprep.subr.mxu0 0.0
    %3491 = vmatpush2.msra.mxu0 0.0
    %3492 = vmatprep.subr.mxu0 0.0
    %3493 = vmatpush2.msra.mxu0 0.0
    %3494 = vmatprep.subr.mxu0 0.0
    %3495 = vmatpush2.msra.mxu0 0.0
    %3496 = vmatprep.subr.mxu0 0.0
    %3497 = vmatpush2.msra.mxu0 0.0
    %3498 = vmatprep.subr.mxu0 0.0
    %3499 = vmatpush2.msra.mxu0 0.0
    %3500 = vmatprep.subr.mxu0 0.0
    %3501 = vmatpush2.msra.mxu0 0.0
    %3502 = vmatprep.subr.mxu0 0.0
    %3503 = vmatpush2.msra.mxu0 0.0
    %3504 = vmatprep.subr.mxu0 0.0
    %3505 = vmatpush2.msra.mxu0 0.0
    %3506 = vmatprep.subr.mxu0 0.0
    %3507 = vmatpush2.msra.mxu0 0.0
    %3508 = vmatprep.mubr.f32.mxu0 0.0
    %3509 = vmatmul.mubr.f32.gmra.mxu0 %v3442
    %v3510 = vpop.f32.mrf.mxu0
    %v3511 = vadd.f32 %v3438, %v3510
    %v3512 = vpop.f32.mrf.mxu0
    %3513 = vdwg.mxu0
    %3515 = vrot.lane.b32.xlu0 %v3511, 4
    %v3516 = vpop.permute.xlu0 %3515
    %v3518 = vrot.slane %v2411, 7
    %v3519 = vrot.slane %v2412, 6
    %v3520 = vsel %vm1438, %v3519, %v3518
    %3521 = vrot.lane.b32.xlu0 %v3520, 64
    %v3522 = vpop.permute.xlu0 %3521
    %v3526 = vrot.slane %v2399, 7
    %v3527 = vrot.slane %v2400, 6
    %v3528 = vsel %vm1438, %v3527, %v3526
    %3529 = vrot.lane.b32.xlu0 %v3528, 32
    %v3530 = vpop.permute.xlu0 %3529
    %vm3532 = vcmask 31744
    %v3533 = vsel %vm3532, %v3426, %v3516
    %v3534 = vsel %vm33, %v3533, 0.0
    %v3535 = vsel %vm119, %v3534, %v3522
    %v3536 = vsel %vm2452, %v3535, %v3530
    %vm3537 = vcmask 785408
    %v3538 = vsel %vm3537, %v3536, 0.0
    %3539 = vst [vmem:[%s2] sm:$0x3] %v3538
    // Predicated region
    $region14: #{forward.1} parent=1 // pred_check
      _
    $region15: #{forward.1} parent=1 // pred_check_branch
      %3541 = sbr.rel (0) target = $region17
    $region16: #{forward.1} parent=1 // pred_region
      _
    $region17: #{forward.1} parent=1 // pred_fallthru
      _
    // Predicated region
    $region18: #{forward.1} parent=1 // pred_check
      _
    $region19: #{forward.1} parent=1 // pred_check_branch
      %3543 = sbr.rel (0) target = $region21
    $region20: #{forward.1} parent=1 // pred_region
      _
    $region21: #{forward.1} parent=1 // pred_fallthru
      _
    %3544 = vsyncpa [#allocation3], 1

</llo_original>
